<compile_context>
chip_gen: v5e
topology: v5e:2x2
jax: 0.10.0
libtpu: 0.0.40
codegen_flags: <defaults>
</compile_context>

<pallas_src>
import functools

import jax
import jax.numpy as jnp
from jax.experimental import pallas as pl
from jax.experimental.pallas import tpu as pltpu

EPS = 1e-5

_PARALLEL = pltpu.CompilerParams(dimension_semantics=("parallel",))


def _pick_tiling(m):
    """Row tile and padded row count for the flat (rows, C) kernels."""
    if m >= 512:
        tm = 512
    else:
        tm = ((m + 7) // 8) * 8          # single tile, sublane aligned
    m_pad = ((m + tm - 1) // tm) * tm
    return tm, m_pad


def _stats_out(t, c):
    return (jax.ShapeDtypeStruct((t, 1, c), jnp.float32),
            jax.ShapeDtypeStruct((t, 1, c), jnp.float32))


# ----------------------------- Pallas kernels ------------------------------

def _conv1x1_stats_kernel(x_ref, w_ref, y_ref, sum_ref, ssq_ref):
    """y = x @ w (MXU, f32 accumulate); emit y tile + per-tile channel stats.

    x and w arrive already in the MXU dtype (no in-kernel cast)."""
    y = jnp.dot(x_ref[...], w_ref[...], preferred_element_type=jnp.float32)
    y_ref[...] = y.astype(y_ref.dtype)
    sum_ref[...] = jnp.sum(y, axis=0, keepdims=True)[None]
    ssq_ref[...] = jnp.sum(y * y, axis=0, keepdims=True)[None]


def _bnrelu_conv1x1_stats_kernel(y_in_ref, scale_ref, shift_ref, w_ref,
                                 y_ref, sum_ref, ssq_ref, *, mxu_dtype,
                                 valid_rows=None):
    """relu(y_in*scale+shift) fused into the next 1x1 conv + per-tile stats.

    When the flat row count was zero-padded, rows >= valid_rows are forced to
    zero so the emitted statistics stay exact (count uses the true M)."""
    x = jnp.maximum(y_in_ref[...] * scale_ref[...] + shift_ref[...], 0.0)
    if valid_rows is not None:
        tm = y_in_ref.shape[0]
        rid = pl.program_id(0) * tm + jax.lax.broadcasted_iota(
            jnp.int32, (tm, 1), 0)
        x = jnp.where(rid < valid_rows, x, 0.0)
    y = jnp.dot(x.astype(mxu_dtype), w_ref[...],
                preferred_element_type=jnp.float32)
    y_ref[...] = y.astype(y_ref.dtype)
    sum_ref[...] = jnp.sum(y, axis=0, keepdims=True)[None]
    ssq_ref[...] = jnp.sum(y * y, axis=0, keepdims=True)[None]


def _bnrelu_conv3x3_stats_kernel(y_in_ref, scale_ref, shift_ref,
                                 lmask_ref, rmask_ref, w9_ref,
                                 y_ref, sum_ref, ssq_ref, halo_ref,
                                 *, W, pad, mxu_dtype):
    """BN1+ReLU fused with a 3x3 (pad=1, stride=1) conv over one image.

    The normalized activation is written into a zero-halo VMEM scratch of
    shape (hw + 2*pad, C); every tap (ky,kx) is a static shifted slice of that
    scratch (vertical out-of-image reads land in the zero rows), only the
    kx=0 / kx=2 taps need a (hw,1) left/right edge mask.  The 9 taps are
    concatenated into a single (hw, 9*C) tile and fed to ONE MXU matmul
    against the (9*C, C) weight."""
    hw, c = y_in_ref.shape
    x = jnp.maximum(y_in_ref[...] * scale_ref[...] + shift_ref[...], 0.0)  # f32

    # Zero halo rows (top / bottom), then the image, all sublane-aligned.
    halo_ref[pl.ds(0, pad), :] = jnp.zeros((pad, c), jnp.float32)
    halo_ref[pl.ds(pad + hw, pad), :] = jnp.zeros((pad, c), jnp.float32)
    halo_ref[pl.ds(pad, hw), :] = x

    lmask = lmask_ref[...]                       # (hw, 1), 1.0 where w != 0
    rmask = rmask_ref[...]                       # (hw, 1), 1.0 where w != W-1

    taps = []
    for ky in range(3):
        for kx in range(3):
            d = (ky - 1) * W + (kx - 1)
            tap = halo_ref[pl.ds(pad + d, hw), :]
            if kx == 0:
                tap = tap * lmask
            elif kx == 2:
                tap = tap * rmask
            taps.append(tap.astype(mxu_dtype))
    big = jnp.concatenate(taps, axis=-1)         # (hw, 9*c) in MXU dtype
    y = jnp.dot(big, w9_ref[...], preferred_element_type=jnp.float32)

    y_ref[...] = y.astype(y_ref.dtype)
    sum_ref[...] = jnp.sum(y, axis=0, keepdims=True)[None]
    ssq_ref[...] = jnp.sum(y * y, axis=0, keepdims=True)[None]


def _bn_add_relu_kernel(y_ref, scale_ref, shift_ref, res_ref, o_ref):
    """Final BN3 + residual add + ReLU epilogue (f32 math, narrow output)."""
    o_ref[...] = jnp.maximum(
        y_ref[...] * scale_ref[...] + shift_ref[...]
        + res_ref[...].astype(jnp.float32),
        0.0).astype(o_ref.dtype)


# --------------------------- pallas_call wrappers ---------------------------

def _conv1x1_stats(x2d, w, tm, *, out_dtype):
    m, cin = x2d.shape
    cout = w.shape[1]
    t = m // tm
    return pl.pallas_call(
        _conv1x1_stats_kernel,
        grid=(t,),
        in_specs=[pl.BlockSpec((tm, cin), lambda i: (i, 0)),
                  pl.BlockSpec((cin, cout), lambda i: (0, 0))],   # resident
        out_specs=[pl.BlockSpec((tm, cout), lambda i: (i, 0)),
                   pl.BlockSpec((1, 1, cout), lambda i: (i, 0, 0)),
                   pl.BlockSpec((1, 1, cout), lambda i: (i, 0, 0))],
        out_shape=[jax.ShapeDtypeStruct((m, cout), out_dtype),
                   *_stats_out(t, cout)],
        compiler_params=_PARALLEL,
    )(x2d, w)


def _bnrelu_conv1x1_stats(y_in, scale, shift, w, tm, valid_rows, *, mxu_dtype):
    m, cin = y_in.shape
    cout = w.shape[1]
    t = m // tm
    kern = functools.partial(
        _bnrelu_conv1x1_stats_kernel, mxu_dtype=mxu_dtype,
        valid_rows=None if valid_rows == m else valid_rows)
    return pl.pallas_call(
        kern,
        grid=(t,),
        in_specs=[pl.BlockSpec((tm, cin), lambda i: (i, 0)),
                  pl.BlockSpec((1, cin), lambda i: (0, 0)),
                  pl.BlockSpec((1, cin), lambda i: (0, 0)),
                  pl.BlockSpec((cin, cout), lambda i: (0, 0))],
        out_specs=[pl.BlockSpec((tm, cout), lambda i: (i, 0)),
                   pl.BlockSpec((1, 1, cout), lambda i: (i, 0, 0)),
                   pl.BlockSpec((1, 1, cout), lambda i: (i, 0, 0))],
        out_shape=[jax.ShapeDtypeStruct((m, cout), mxu_dtype),
                   *_stats_out(t, cout)],
        compiler_params=_PARALLEL,
    )(y_in, scale, shift, w)


def _bnrelu_conv3x3_stats(y_in, scale, shift, lmask, rmask, w9,
                          n_img, h_sp, w_sp, c, m_pad, *, mxu_dtype):
    hw = h_sp * w_sp
    pad = ((w_sp + 1 + 7) // 8) * 8     # halo rows each side, sublane-aligned
    kern = functools.partial(_bnrelu_conv3x3_stats_kernel,
                             W=w_sp, pad=pad, mxu_dtype=mxu_dtype)
    return pl.pallas_call(
        kern,
        grid=(n_img,),
        in_specs=[pl.BlockSpec((hw, c), lambda i: (i, 0)),
                  pl.BlockSpec((1, c), lambda i: (0, 0)),
                  pl.BlockSpec((1, c), lambda i: (0, 0)),
                  pl.BlockSpec((hw, 1), lambda i: (0, 0)),
                  pl.BlockSpec((hw, 1), lambda i: (0, 0)),
                  pl.BlockSpec((9 * c, c), lambda i: (0, 0))],    # resident
        out_specs=[pl.BlockSpec((hw, c), lambda i: (i, 0)),
                   pl.BlockSpec((1, 1, c), lambda i: (i, 0, 0)),
                   pl.BlockSpec((1, 1, c), lambda i: (i, 0, 0))],
        out_shape=[jax.ShapeDtypeStruct((m_pad, c), mxu_dtype),
                   *_stats_out(n_img, c)],
        scratch_shapes=[pltpu.VMEM((hw + 2 * pad, c), jnp.float32)],
        compiler_params=_PARALLEL,
    )(y_in, scale, shift, lmask, rmask, w9)


def _bn_add_relu(y, scale, shift, residual, tm, *, out_dtype):
    m, c = y.shape
    t = m // tm
    return pl.pallas_call(
        _bn_add_relu_kernel,
        grid=(t,),
        in_specs=[pl.BlockSpec((tm, c), lambda i: (i, 0)),
                  pl.BlockSpec((1, c), lambda i: (0, 0)),
                  pl.BlockSpec((1, c), lambda i: (0, 0)),
                  pl.BlockSpec((tm, c), lambda i: (i, 0))],
        out_specs=pl.BlockSpec((tm, c), lambda i: (i, 0)),
        out_shape=jax.ShapeDtypeStruct((m, c), out_dtype),
        compiler_params=_PARALLEL,
    )(y, scale, shift, residual)


# ------------------------------ JAX glue -----------------------------------

def _bn_scale_shift(sum_parts, ssq_parts, count, gamma, beta):
    """Fold batch-statistics BN into per-channel (scale, shift) in f32."""
    total = jnp.sum(sum_parts, axis=(0, 1))
    total_sq = jnp.sum(ssq_parts, axis=(0, 1))
    mean = total / count
    var = jnp.maximum(total_sq / count - mean * mean, 0.0)
    scale = gamma * jax.lax.rsqrt(var + EPS)
    shift = beta - mean * scale
    return scale.reshape(1, -1), shift.reshape(1, -1)


def bottleneck_forward(x_nchw, params, *, mxu_dtype=jnp.bfloat16):
    """Pallas implementation of Bottleneck.forward (stride=1, no downsample)."""
    n, cin, h, w = x_nchw.shape
    w1, w2, w3 = params["w1"], params["w2"], params["w3"]
    c1 = w1.shape[0]
    c3 = w3.shape[0]
    assert cin == c3, "identity add requires in_channels == 4 * out_channels"
    hw = h * w
    assert hw % 8 == 0, "per-image flat row count must be a multiple of 8"

    m = n * hw
    tm, m_pad = _pick_tiling(m)

    # NCHW -> flat channels-last (rows, C); residual / conv1 input stored in
    # the MXU dtype; zero-pad rows to a multiple of the row tile.
    x2d = jnp.transpose(x_nchw, (0, 2, 3, 1)).reshape(m, cin).astype(mxu_dtype)
    if m_pad != m:
        x2d = jnp.pad(x2d, ((0, m_pad - m), (0, 0)))

    # Channels-last weights; conv biases are dropped (batch-stat BN mean
    # subtraction cancels a per-channel pre-BN shift exactly).
    w1m = jnp.transpose(w1[:, :, 0, 0], (1, 0)).astype(mxu_dtype)        # (Cin, C1)
    w9 = jnp.transpose(w2, (2, 3, 1, 0)).reshape(9 * c1, c1).astype(mxu_dtype)
    w3m = jnp.transpose(w3[:, :, 0, 0], (1, 0)).astype(mxu_dtype)        # (C1, C3)

    # (hw, 1) left/right edge masks for the 3x3 taps (computed once, resident).
    col = jnp.arange(hw, dtype=jnp.int32) % w
    lmask = (col != 0).astype(jnp.float32).reshape(hw, 1)
    rmask = (col != w - 1).astype(jnp.float32).reshape(hw, 1)

    # conv1 (1x1) + partial BN1 stats (padded rows are exactly zero).
    y1, s1, q1 = _conv1x1_stats(x2d, w1m, tm, out_dtype=mxu_dtype)
    sc1, sh1 = _bn_scale_shift(s1, q1, m, params["g1"], params["be1"])

    # BN1+ReLU fused into conv2: zero-halo scratch + one (hw,9C1)x(9C1,C1) MXU pass.
    y2, s2, q2 = _bnrelu_conv3x3_stats(y1, sc1, sh1, lmask, rmask, w9,
                                       n, h, w, c1, m_pad, mxu_dtype=mxu_dtype)
    sc2, sh2 = _bn_scale_shift(s2, q2, m, params["g2"], params["be2"])

    # BN2+ReLU fused into conv3 (1x1, expansion); rows >= m masked if padded.
    y3, s3, q3 = _bnrelu_conv1x1_stats(y2, sc2, sh2, w3m, tm, m,
                                       mxu_dtype=mxu_dtype)
    sc3, sh3 = _bn_scale_shift(s3, q3, m, params["g3"], params["be3"])

    # BN3 + identity residual + ReLU; slice off padded rows, back to NCHW.
    out2d = _bn_add_relu(y3, sc3, sh3, x2d, tm, out_dtype=mxu_dtype)
    out = out2d[:m].reshape(n, h, w, c3)
    return jnp.transpose(out, (0, 3, 1, 2))


# --------------------------- Pure-JAX reference ----------------------------

def _ref_conv(x, w, b, stride, pad):
    y = jax.lax.conv_general_dilated(
        x, w, (stride, stride), ((pad, pad), (pad, pad)),
        dimension_numbers=("NCHW", "OIHW", "NCHW"))
    return y + b[None, :, None, None]


def _ref_bn(x, g, b):
    mean = x.mean(axis=(0, 2, 3), keepdims=True)
    var = ((x - mean) ** 2).mean(axis=(0, 2, 3), keepdims=True)
    return (x - mean) * jax.lax.rsqrt(var + EPS) * g[None, :, None, None] + \
        b[None, :, None, None]


def bottleneck_reference(x, p):
    identity = x
    h = jax.nn.relu(_ref_bn(_ref_conv(x, p["w1"], p["b1"], 1, 0), p["g1"], p["be1"]))
    h = jax.nn.relu(_ref_bn(_ref_conv(h, p["w2"], p["b2"], 1, 1), p["g2"], p["be2"]))
    h = _ref_bn(_ref_conv(h, p["w3"], p["b3"], 1, 0), p["g3"], p["be3"])
    return jax.nn.relu(h + identity)


# --------------------------------- main ------------------------------------

if __name__ == "__main__":
    key = jax.random.PRNGKey(0)
    n, out_channels, h, w = 2, 32, 16, 16
    expansion = 4
    in_channels = out_channels * expansion   # 128: residual add needs no downsample
    c1, c3 = out_channels, out_channels * expansion

    ks = jax.random.split(key, 12)
    params = {
        "w1": 0.1 * jax.random.normal(ks[0], (c1, in_channels, 1, 1), jnp.float32),
        "b1": 0.1 * jax.random.normal(ks[1], (c1,), jnp.float32),
        "g1": 1.0 + 0.1 * jax.random.normal(ks[7], (c1,), jnp.float32),
        "be1": 0.1 * jax.random.normal(ks[8], (c1,), jnp.float32),
        "w2": 0.1 * jax.random.normal(ks[2], (c1, c1, 3, 3), jnp.float32),
        "b2": 0.1 * jax.random.normal(ks[3], (c1,), jnp.float32),
        "g2": 1.0 + 0.1 * jax.random.normal(ks[9], (c1,), jnp.float32),
        "be2": 0.1 * jax.random.normal(ks[10], (c1,), jnp.float32),
        "w3": 0.1 * jax.random.normal(ks[4], (c3, c1, 1, 1), jnp.float32),
        "b3": 0.1 * jax.random.normal(ks[5], (c3,), jnp.float32),
        "g3": 1.0 + 0.1 * jax.random.normal(ks[11], (c3,), jnp.float32),
        "be3": jnp.zeros((c3,), jnp.float32),
    }
    x = jax.random.normal(ks[6], (n, in_channels, h, w), jnp.float32)

    ref = jax.block_until_ready(bottleneck_reference(x, params))

    # Exact-precision path (f32 operands end to end) -> tight tolerance.
    fwd_f32 = jax.jit(functools.partial(bottleneck_forward, mxu_dtype=jnp.float32))
    out_f32 = jax.block_until_ready(fwd_f32(x, params))
    assert out_f32.shape == (n, c3, h, w), out_f32.shape
    err_f32 = float(jnp.max(jnp.abs(out_f32 - ref)))
    assert jnp.allclose(out_f32, ref, atol=3e-4, rtol=3e-4), err_f32

    # Production path (bf16 MXU operands / bf16 activations, f32 statistics).
    fwd_bf16 = jax.jit(functools.partial(bottleneck_forward, mxu_dtype=jnp.bfloat16))
    out_bf16 = jax.block_until_ready(fwd_bf16(x, params))
    assert out_bf16.shape == (n, c3, h, w), out_bf16.shape
    err_bf16 = float(jnp.max(jnp.abs(out_bf16.astype(jnp.float32) - ref)))
    assert jnp.allclose(out_bf16.astype(jnp.float32), ref, atol=1e-1, rtol=1e-1), err_bf16

    print("KERNEL_OK")
</pallas_src>

<mosaic_0001>
module attributes {stable_mosaic.version = 11 : i64} {
  func.func @_conv1x1_stats_kernel(%arg0: i32, %arg1: memref<512x128xf32, #tpu.memory_space<vmem>>, %arg2: memref<128x32xf32, #tpu.memory_space<vmem>>, %arg3: memref<512x32xf32, #tpu.memory_space<vmem>>, %arg4: memref<1x1x32xf32, #tpu.memory_space<vmem>>, %arg5: memref<1x1x32xf32, #tpu.memory_space<vmem>>) attributes {dimension_semantics = [#tpu.dimension_semantics<parallel>], iteration_bounds = array<i64: 1>, scalar_prefetch = 0 : i64, scratch_operands = 0 : i64, tpu.core_type = #tpu.core_type<tc>, window_params = [{transform_indices = @transform_0, window_bounds = array<i64: 512, 128>}, {pipeline_mode = #tpu.pipeline_mode<synchronous>, transform_indices = @transform_1, window_bounds = array<i64: 128, 32>}, {transform_indices = @transform_2, window_bounds = array<i64: 512, 32>}, {transform_indices = @transform_3, window_bounds = array<i64: 1, 1, 32>}, {transform_indices = @transform_4, window_bounds = array<i64: 1, 1, 32>}]} {
    %c0 = arith.constant 0 : index
    %c0_0 = arith.constant 0 : index
    %0 = vector.load %arg1[%c0, %c0_0] : memref<512x128xf32, #tpu.memory_space<vmem>>, vector<512x128xf32>
    %c0_1 = arith.constant 0 : index
    %c0_2 = arith.constant 0 : index
    %1 = vector.load %arg2[%c0_1, %c0_2] : memref<128x32xf32, #tpu.memory_space<vmem>>, vector<128x32xf32>
    %cst = arith.constant dense<0.000000e+00> : vector<512x32xf32>
    %2 = tpu.matmul %0, %1, %cst {dimension_numbers = #tpu.dot_dimension_numbers<[1], [0], [0], [1], [0, 0, 1, 1], [], []>} : vector<512x128xf32>, vector<128x32xf32>, vector<512x32xf32> -> vector<512x32xf32>
    %c0_3 = arith.constant 0 : index
    %c0_4 = arith.constant 0 : index
    %3 = vector.load %arg3[%c0_3, %c0_4] : memref<512x32xf32, #tpu.memory_space<vmem>>, vector<512x32xf32>
    tpu.vector_store %arg3[%c0_3, %c0_4], %2 {strides = array<i32>} : memref<512x32xf32, #tpu.memory_space<vmem>>, vector<512x32xf32>,
    %cst_5 = arith.constant dense<0.000000e+00> : vector<32xf32>
    %4 = vector.multi_reduction <add>, %2, %cst_5 [0] : vector<512x32xf32> to vector<32xf32>
    %5 = vector.shape_cast %4 : vector<32xf32> to vector<1x32xf32>
    %6 = vector.shape_cast %5 : vector<1x32xf32> to vector<1x1x32xf32>
    %c0_6 = arith.constant 0 : index
    %c0_7 = arith.constant 0 : index
    %c0_8 = arith.constant 0 : index
    %7 = vector.load %arg4[%c0_6, %c0_7, %c0_8] : memref<1x1x32xf32, #tpu.memory_space<vmem>>, vector<1x1x32xf32>
    tpu.vector_store %arg4[%c0_6, %c0_7, %c0_8], %6 {strides = array<i32>} : memref<1x1x32xf32, #tpu.memory_space<vmem>>, vector<1x1x32xf32>,
    %8 = arith.mulf %2, %2 : vector<512x32xf32>
    %cst_9 = arith.constant dense<0.000000e+00> : vector<32xf32>
    %9 = vector.multi_reduction <add>, %8, %cst_9 [0] : vector<512x32xf32> to vector<32xf32>
    %10 = vector.shape_cast %9 : vector<32xf32> to vector<1x32xf32>
    %11 = vector.shape_cast %10 : vector<1x32xf32> to vector<1x1x32xf32>
    %c0_10 = arith.constant 0 : index
    %c0_11 = arith.constant 0 : index
    %c0_12 = arith.constant 0 : index
    %12 = vector.load %arg5[%c0_10, %c0_11, %c0_12] : memref<1x1x32xf32, #tpu.memory_space<vmem>>, vector<1x1x32xf32>
    tpu.vector_store %arg5[%c0_10, %c0_11, %c0_12], %11 {strides = array<i32>} : memref<1x1x32xf32, #tpu.memory_space<vmem>>, vector<1x1x32xf32>,
    return
  }
  func.func @transform_0(%arg0: i32) -> (i32, i32) {
    %c0_i32 = arith.constant 0 : i32
    %c0_i32_0 = arith.constant 0 : i32
    return %arg0, %c0_i32 : i32, i32
  }
  func.func @transform_1(%arg0: i32) -> (i32, i32) {
    %c0_i32 = arith.constant 0 : i32
    %c0_i32_0 = arith.constant 0 : i32
    %c0_i32_1 = arith.constant 0 : i32
    return %c0_i32, %c0_i32_0 : i32, i32
  }
  func.func @transform_2(%arg0: i32) -> (i32, i32) {
    %c0_i32 = arith.constant 0 : i32
    %c0_i32_0 = arith.constant 0 : i32
    return %arg0, %c0_i32 : i32, i32
  }
  func.func @transform_3(%arg0: i32) -> (i32, i32, i32) {
    %c0_i32 = arith.constant 0 : i32
    %c0_i32_0 = arith.constant 0 : i32
    %c0_i32_1 = arith.constant 0 : i32
    return %arg0, %c0_i32, %c0_i32_0 : i32, i32, i32
  }
  func.func @transform_4(%arg0: i32) -> (i32, i32, i32) {
    %c0_i32 = arith.constant 0 : i32
    %c0_i32_0 = arith.constant 0 : i32
    %c0_i32_1 = arith.constant 0 : i32
    return %arg0, %c0_i32, %c0_i32_0 : i32, i32, i32
  }
}

module attributes {stable_mosaic.version = 11 : i64} {
  func.func @_bnrelu_conv3x3_stats_kernel(%arg0: i32, %arg1: memref<256x32xf32, #tpu.memory_space<vmem>>, %arg2: memref<1x32xf32, #tpu.memory_space<vmem>>, %arg3: memref<1x32xf32, #tpu.memory_space<vmem>>, %arg4: memref<256x1xf32, #tpu.memory_space<vmem>>, %arg5: memref<256x1xf32, #tpu.memory_space<vmem>>, %arg6: memref<288x32xf32, #tpu.memory_space<vmem>>, %arg7: memref<256x32xf32, #tpu.memory_space<vmem>>, %arg8: memref<1x1x32xf32, #tpu.memory_space<vmem>>, %arg9: memref<1x1x32xf32, #tpu.memory_space<vmem>>, %arg10: memref<304x32xf32, #tpu.memory_space<vmem>>) attributes {dimension_semantics = [#tpu.dimension_semantics<parallel>], iteration_bounds = array<i64: 2>, scalar_prefetch = 0 : i64, scratch_operands = 1 : i64, tpu.core_type = #tpu.core_type<tc>, window_params = [{transform_indices = @transform_0, window_bounds = array<i64: 256, 32>}, {pipeline_mode = #tpu.pipeline_mode<synchronous>, transform_indices = @transform_1, window_bounds = array<i64: 1, 32>}, {pipeline_mode = #tpu.pipeline_mode<synchronous>, transform_indices = @transform_2, window_bounds = array<i64: 1, 32>}, {pipeline_mode = #tpu.pipeline_mode<synchronous>, transform_indices = @transform_3, window_bounds = array<i64: 256, 1>}, {pipeline_mode = #tpu.pipeline_mode<synchronous>, transform_indices = @transform_4, window_bounds = array<i64: 256, 1>}, {pipeline_mode = #tpu.pipeline_mode<synchronous>, transform_indices = @transform_5, window_bounds = array<i64: 288, 32>}, {transform_indices = @transform_6, window_bounds = array<i64: 256, 32>}, {transform_indices = @transform_7, window_bounds = array<i64: 1, 1, 32>}, {transform_indices = @transform_8, window_bounds = array<i64: 1, 1, 32>}]} {
    %c0 = arith.constant 0 : index
    %c0_0 = arith.constant 0 : index
    %0 = vector.load %arg1[%c0, %c0_0] : memref<256x32xf32, #tpu.memory_space<vmem>>, vector<256x32xf32>
    %c0_1 = arith.constant 0 : index
    %c0_2 = arith.constant 0 : index
    %1 = vector.load %arg2[%c0_1, %c0_2] : memref<1x32xf32, #tpu.memory_space<vmem>>, vector<1x32xf32>
    %2 = vector.broadcast %1 : vector<1x32xf32> to vector<256x32xf32>
    %3 = arith.mulf %0, %2 : vector<256x32xf32>
    %c0_3 = arith.constant 0 : index
    %c0_4 = arith.constant 0 : index
    %4 = vector.load %arg3[%c0_3, %c0_4] : memref<1x32xf32, #tpu.memory_space<vmem>>, vector<1x32xf32>
    %5 = vector.broadcast %4 : vector<1x32xf32> to vector<256x32xf32>
    %6 = arith.addf %3, %5 : vector<256x32xf32>
    %cst = arith.constant 0.000000e+00 : f32
    %7 = vector.broadcast %cst : f32 to vector<256x32xf32>
    %8 = arith.maximumf %6, %7 : vector<256x32xf32>
    %cst_5 = arith.constant 0.000000e+00 : f32
    %9 = vector.broadcast %cst_5 : f32 to vector<24x32xf32>
    %c0_6 = arith.constant 0 : index
    %c0_7 = arith.constant 0 : index
    %10 = vector.load %arg10[%c0_6, %c0_7] : memref<304x32xf32, #tpu.memory_space<vmem>>, vector<24x32xf32>
    tpu.vector_store %arg10[%c0_6, %c0_7], %9 {strides = array<i32>} : memref<304x32xf32, #tpu.memory_space<vmem>>, vector<24x32xf32>,
    %cst_8 = arith.constant 0.000000e+00 : f32
    %11 = vector.broadcast %cst_8 : f32 to vector<24x32xf32>
    %c280 = arith.constant 280 : index
    %c0_9 = arith.constant 0 : index
    %12 = vector.load %arg10[%c280, %c0_9] : memref<304x32xf32, #tpu.memory_space<vmem>>, vector<24x32xf32>
    tpu.vector_store %arg10[%c280, %c0_9], %11 {strides = array<i32>} : memref<304x32xf32, #tpu.memory_space<vmem>>, vector<24x32xf32>,
    %c24 = arith.constant 24 : index
    %c0_10 = arith.constant 0 : index
    %13 = vector.load %arg10[%c24, %c0_10] : memref<304x32xf32, #tpu.memory_space<vmem>>, vector<256x32xf32>
    tpu.vector_store %arg10[%c24, %c0_10], %8 {strides = array<i32>} : memref<304x32xf32, #tpu.memory_space<vmem>>, vector<256x32xf32>,
    %c0_11 = arith.constant 0 : index
    %c0_12 = arith.constant 0 : index
    %14 = vector.load %arg4[%c0_11, %c0_12] : memref<256x1xf32, #tpu.memory_space<vmem>>, vector<256x1xf32>
    %c0_13 = arith.constant 0 : index
    %c0_14 = arith.constant 0 : index
    %15 = vector.load %arg5[%c0_13, %c0_14] : memref<256x1xf32, #tpu.memory_space<vmem>>, vector<256x1xf32>
    %c7 = arith.constant 7 : index
    %c0_15 = arith.constant 0 : index
    %16 = vector.load %arg10[%c7, %c0_15] : memref<304x32xf32, #tpu.memory_space<vmem>>, vector<256x32xf32>
    %17 = vector.broadcast %14 : vector<256x1xf32> to vector<256x32xf32>
    %18 = arith.mulf %16, %17 : vector<256x32xf32>
    %c8 = arith.constant 8 : index
    %c0_16 = arith.constant 0 : index
    %19 = vector.load %arg10[%c8, %c0_16] : memref<304x32xf32, #tpu.memory_space<vmem>>, vector<256x32xf32>
    %c9 = arith.constant 9 : index
    %c0_17 = arith.constant 0 : index
    %20 = vector.load %arg10[%c9, %c0_17] : memref<304x32xf32, #tpu.memory_space<vmem>>, vector<256x32xf32>
    %21 = vector.broadcast %15 : vector<256x1xf32> to vector<256x32xf32>
    %22 = arith.mulf %20, %21 : vector<256x32xf32>
    %c23 = arith.constant 23 : index
    %c0_18 = arith.constant 0 : index
    %23 = vector.load %arg10[%c23, %c0_18] : memref<304x32xf32, #tpu.memory_space<vmem>>, vector<256x32xf32>
    %24 = vector.broadcast %14 : vector<256x1xf32> to vector<256x32xf32>
    %25 = arith.mulf %23, %24 : vector<256x32xf32>
    %c24_19 = arith.constant 24 : index
    %c0_20 = arith.constant 0 : index
    %26 = vector.load %arg10[%c24_19, %c0_20] : memref<304x32xf32, #tpu.memory_space<vmem>>, vector<256x32xf32>
    %c25 = arith.constant 25 : index
    %c0_21 = arith.constant 0 : index
    %27 = vector.load %arg10[%c25, %c0_21] : memref<304x32xf32, #tpu.memory_space<vmem>>, vector<256x32xf32>
    %28 = vector.broadcast %15 : vector<256x1xf32> to vector<256x32xf32>
    %29 = arith.mulf %27, %28 : vector<256x32xf32>
    %c39 = arith.constant 39 : index
    %c0_22 = arith.constant 0 : index
    %30 = vector.load %arg10[%c39, %c0_22] : memref<304x32xf32, #tpu.memory_space<vmem>>, vector<256x32xf32>
    %31 = vector.broadcast %14 : vector<256x1xf32> to vector<256x32xf32>
    %32 = arith.mulf %30, %31 : vector<256x32xf32>
    %c40 = arith.constant 40 : index
    %c0_23 = arith.constant 0 : index
    %33 = vector.load %arg10[%c40, %c0_23] : memref<304x32xf32, #tpu.memory_space<vmem>>, vector<256x32xf32>
    %c41 = arith.constant 41 : index
    %c0_24 = arith.constant 0 : index
    %34 = vector.load %arg10[%c41, %c0_24] : memref<304x32xf32, #tpu.memory_space<vmem>>, vector<256x32xf32>
    %35 = vector.broadcast %15 : vector<256x1xf32> to vector<256x32xf32>
    %36 = arith.mulf %34, %35 : vector<256x32xf32>
    %37 = tpu.concatenate %18, %19, %22, %25, %26, %29, %32, %33, %36 in 1 : vector<256x32xf32>, vector<256x32xf32>, vector<256x32xf32>, vector<256x32xf32>, vector<256x32xf32>, vector<256x32xf32>, vector<256x32xf32>, vector<256x32xf32>, vector<256x32xf32> -> vector<256x288xf32>
    %c0_25 = arith.constant 0 : index
    %c0_26 = arith.constant 0 : index
    %38 = vector.load %arg6[%c0_25, %c0_26] : memref<288x32xf32, #tpu.memory_space<vmem>>, vector<288x32xf32>
    %cst_27 = arith.constant dense<0.000000e+00> : vector<256x32xf32>
    %39 = tpu.matmul %37, %38, %cst_27 {dimension_numbers = #tpu.dot_dimension_numbers<[1], [0], [0], [1], [0, 0, 1, 1], [], []>} : vector<256x288xf32>, vector<288x32xf32>, vector<256x32xf32> -> vector<256x32xf32>
    %c0_28 = arith.constant 0 : index
    %c0_29 = arith.constant 0 : index
    %40 = vector.load %arg7[%c0_28, %c0_29] : memref<256x32xf32, #tpu.memory_space<vmem>>, vector<256x32xf32>
    tpu.vector_store %arg7[%c0_28, %c0_29], %39 {strides = array<i32>} : memref<256x32xf32, #tpu.memory_space<vmem>>, vector<256x32xf32>,
    %cst_30 = arith.constant dense<0.000000e+00> : vector<32xf32>
    %41 = vector.multi_reduction <add>, %39, %cst_30 [0] : vector<256x32xf32> to vector<32xf32>
    %42 = vector.shape_cast %41 : vector<32xf32> to vector<1x32xf32>
    %43 = vector.shape_cast %42 : vector<1x32xf32> to vector<1x1x32xf32>
    %c0_31 = arith.constant 0 : index
    %c0_32 = arith.constant 0 : index
    %c0_33 = arith.constant 0 : index
    %44 = vector.load %arg8[%c0_31, %c0_32, %c0_33] : memref<1x1x32xf32, #tpu.memory_space<vmem>>, vector<1x1x32xf32>
    tpu.vector_store %arg8[%c0_31, %c0_32, %c0_33], %43 {strides = array<i32>} : memref<1x1x32xf32, #tpu.memory_space<vmem>>, vector<1x1x32xf32>,
    %45 = arith.mulf %39, %39 : vector<256x32xf32>
    %cst_34 = arith.constant dense<0.000000e+00> : vector<32xf32>
    %46 = vector.multi_reduction <add>, %45, %cst_34 [0] : vector<256x32xf32> to vector<32xf32>
    %47 = vector.shape_cast %46 : vector<32xf32> to vector<1x32xf32>
    %48 = vector.shape_cast %47 : vector<1x32xf32> to vector<1x1x32xf32>
    %c0_35 = arith.constant 0 : index
    %c0_36 = arith.constant 0 : index
    %c0_37 = arith.constant 0 : index
    %49 = vector.load %arg9[%c0_35, %c0_36, %c0_37] : memref<1x1x32xf32, #tpu.memory_space<vmem>>, vector<1x1x32xf32>
    tpu.vector_store %arg9[%c0_35, %c0_36, %c0_37], %48 {strides = array<i32>} : memref<1x1x32xf32, #tpu.memory_space<vmem>>, vector<1x1x32xf32>,
    return
  }
  func.func @transform_0(%arg0: i32) -> (i32, i32) {
    %c0_i32 = arith.constant 0 : i32
    %c0_i32_0 = arith.constant 0 : i32
    return %arg0, %c0_i32 : i32, i32
  }
  func.func @transform_1(%arg0: i32) -> (i32, i32) {
    %c0_i32 = arith.constant 0 : i32
    %c0_i32_0 = arith.constant 0 : i32
    %c0_i32_1 = arith.constant 0 : i32
    return %c0_i32, %c0_i32_0 : i32, i32
  }
  func.func @transform_2(%arg0: i32) -> (i32, i32) {
    %c0_i32 = arith.constant 0 : i32
    %c0_i32_0 = arith.constant 0 : i32
    %c0_i32_1 = arith.constant 0 : i32
    return %c0_i32, %c0_i32_0 : i32, i32
  }
  func.func @transform_3(%arg0: i32) -> (i32, i32) {
    %c0_i32 = arith.constant 0 : i32
    %c0_i32_0 = arith.constant 0 : i32
    %c0_i32_1 = arith.constant 0 : i32
    return %c0_i32, %c0_i32_0 : i32, i32
  }
  func.func @transform_4(%arg0: i32) -> (i32, i32) {
    %c0_i32 = arith.constant 0 : i32
    %c0_i32_0 = arith.constant 0 : i32
    %c0_i32_1 = arith.constant 0 : i32
    return %c0_i32, %c0_i32_0 : i32, i32
  }
  func.func @transform_5(%arg0: i32) -> (i32, i32) {
    %c0_i32 = arith.constant 0 : i32
    %c0_i32_0 = arith.constant 0 : i32
    %c0_i32_1 = arith.constant 0 : i32
    return %c0_i32, %c0_i32_0 : i32, i32
  }
  func.func @transform_6(%arg0: i32) -> (i32, i32) {
    %c0_i32 = arith.constant 0 : i32
    %c0_i32_0 = arith.constant 0 : i32
    return %arg0, %c0_i32 : i32, i32
  }
  func.func @transform_7(%arg0: i32) -> (i32, i32, i32) {
    %c0_i32 = arith.constant 0 : i32
    %c0_i32_0 = arith.constant 0 : i32
    %c0_i32_1 = arith.constant 0 : i32
    return %arg0, %c0_i32, %c0_i32_0 : i32, i32, i32
  }
  func.func @transform_8(%arg0: i32) -> (i32, i32, i32) {
    %c0_i32 = arith.constant 0 : i32
    %c0_i32_0 = arith.constant 0 : i32
    %c0_i32_1 = arith.constant 0 : i32
    return %arg0, %c0_i32, %c0_i32_0 : i32, i32, i32
  }
}

module attributes {stable_mosaic.version = 11 : i64} {
  func.func @_bn_add_relu_kernel(%arg0: i32, %arg1: memref<512x128xf32, #tpu.memory_space<vmem>>, %arg2: memref<1x128xf32, #tpu.memory_space<vmem>>, %arg3: memref<1x128xf32, #tpu.memory_space<vmem>>, %arg4: memref<512x128xf32, #tpu.memory_space<vmem>>, %arg5: memref<512x128xf32, #tpu.memory_space<vmem>>) attributes {dimension_semantics = [#tpu.dimension_semantics<parallel>], iteration_bounds = array<i64: 1>, scalar_prefetch = 0 : i64, scratch_operands = 0 : i64, tpu.core_type = #tpu.core_type<tc>, window_params = [{transform_indices = @transform_0, window_bounds = array<i64: 512, 128>}, {pipeline_mode = #tpu.pipeline_mode<synchronous>, transform_indices = @transform_1, window_bounds = array<i64: 1, 128>}, {pipeline_mode = #tpu.pipeline_mode<synchronous>, transform_indices = @transform_2, window_bounds = array<i64: 1, 128>}, {transform_indices = @transform_3, window_bounds = array<i64: 512, 128>}, {transform_indices = @transform_4, window_bounds = array<i64: 512, 128>}]} {
    %c0 = arith.constant 0 : index
    %c0_0 = arith.constant 0 : index
    %0 = vector.load %arg1[%c0, %c0_0] : memref<512x128xf32, #tpu.memory_space<vmem>>, vector<512x128xf32>
    %c0_1 = arith.constant 0 : index
    %c0_2 = arith.constant 0 : index
    %1 = vector.load %arg2[%c0_1, %c0_2] : memref<1x128xf32, #tpu.memory_space<vmem>>, vector<1x128xf32>
    %2 = vector.broadcast %1 : vector<1x128xf32> to vector<512x128xf32>
    %3 = arith.mulf %0, %2 : vector<512x128xf32>
    %c0_3 = arith.constant 0 : index
    %c0_4 = arith.constant 0 : index
    %4 = vector.load %arg3[%c0_3, %c0_4] : memref<1x128xf32, #tpu.memory_space<vmem>>, vector<1x128xf32>
    %5 = vector.broadcast %4 : vector<1x128xf32> to vector<512x128xf32>
    %6 = arith.addf %3, %5 : vector<512x128xf32>
    %c0_5 = arith.constant 0 : index
    %c0_6 = arith.constant 0 : index
    %7 = vector.load %arg4[%c0_5, %c0_6] : memref<512x128xf32, #tpu.memory_space<vmem>>, vector<512x128xf32>
    %8 = arith.addf %6, %7 : vector<512x128xf32>
    %cst = arith.constant 0.000000e+00 : f32
    %9 = vector.broadcast %cst : f32 to vector<512x128xf32>
    %10 = arith.maximumf %8, %9 : vector<512x128xf32>
    %c0_7 = arith.constant 0 : index
    %c0_8 = arith.constant 0 : index
    %11 = vector.load %arg5[%c0_7, %c0_8] : memref<512x128xf32, #tpu.memory_space<vmem>>, vector<512x128xf32>
    tpu.vector_store %arg5[%c0_7, %c0_8], %10 {strides = array<i32>} : memref<512x128xf32, #tpu.memory_space<vmem>>, vector<512x128xf32>,
    return
  }
  func.func @transform_0(%arg0: i32) -> (i32, i32) {
    %c0_i32 = arith.constant 0 : i32
    %c0_i32_0 = arith.constant 0 : i32
    return %arg0, %c0_i32 : i32, i32
  }
  func.func @transform_1(%arg0: i32) -> (i32, i32) {
    %c0_i32 = arith.constant 0 : i32
    %c0_i32_0 = arith.constant 0 : i32
    %c0_i32_1 = arith.constant 0 : i32
    return %c0_i32, %c0_i32_0 : i32, i32
  }
  func.func @transform_2(%arg0: i32) -> (i32, i32) {
    %c0_i32 = arith.constant 0 : i32
    %c0_i32_0 = arith.constant 0 : i32
    %c0_i32_1 = arith.constant 0 : i32
    return %c0_i32, %c0_i32_0 : i32, i32
  }
  func.func @transform_3(%arg0: i32) -> (i32, i32) {
    %c0_i32 = arith.constant 0 : i32
    %c0_i32_0 = arith.constant 0 : i32
    return %arg0, %c0_i32 : i32, i32
  }
  func.func @transform_4(%arg0: i32) -> (i32, i32) {
    %c0_i32 = arith.constant 0 : i32
    %c0_i32_0 = arith.constant 0 : i32
    return %arg0, %c0_i32 : i32, i32
  }
}

module attributes {stable_mosaic.version = 11 : i64} {
  func.func @_bnrelu_conv1x1_stats_kernel(%arg0: i32, %arg1: memref<512x32xf32, #tpu.memory_space<vmem>>, %arg2: memref<1x32xf32, #tpu.memory_space<vmem>>, %arg3: memref<1x32xf32, #tpu.memory_space<vmem>>, %arg4: memref<32x128xf32, #tpu.memory_space<vmem>>, %arg5: memref<512x128xf32, #tpu.memory_space<vmem>>, %arg6: memref<1x1x128xf32, #tpu.memory_space<vmem>>, %arg7: memref<1x1x128xf32, #tpu.memory_space<vmem>>) attributes {dimension_semantics = [#tpu.dimension_semantics<parallel>], iteration_bounds = array<i64: 1>, scalar_prefetch = 0 : i64, scratch_operands = 0 : i64, tpu.core_type = #tpu.core_type<tc>, window_params = [{transform_indices = @transform_0, window_bounds = array<i64: 512, 32>}, {pipeline_mode = #tpu.pipeline_mode<synchronous>, transform_indices = @transform_1, window_bounds = array<i64: 1, 32>}, {pipeline_mode = #tpu.pipeline_mode<synchronous>, transform_indices = @transform_2, window_bounds = array<i64: 1, 32>}, {pipeline_mode = #tpu.pipeline_mode<synchronous>, transform_indices = @transform_3, window_bounds = array<i64: 32, 128>}, {transform_indices = @transform_4, window_bounds = array<i64: 512, 128>}, {transform_indices = @transform_5, window_bounds = array<i64: 1, 1, 128>}, {transform_indices = @transform_6, window_bounds = array<i64: 1, 1, 128>}]} {
    %c0 = arith.constant 0 : index
    %c0_0 = arith.constant 0 : index
    %0 = vector.load %arg1[%c0, %c0_0] : memref<512x32xf32, #tpu.memory_space<vmem>>, vector<512x32xf32>
    %c0_1 = arith.constant 0 : index
    %c0_2 = arith.constant 0 : index
    %1 = vector.load %arg2[%c0_1, %c0_2] : memref<1x32xf32, #tpu.memory_space<vmem>>, vector<1x32xf32>
    %2 = vector.broadcast %1 : vector<1x32xf32> to vector<512x32xf32>
    %3 = arith.mulf %0, %2 : vector<512x32xf32>
    %c0_3 = arith.constant 0 : index
    %c0_4 = arith.constant 0 : index
    %4 = vector.load %arg3[%c0_3, %c0_4] : memref<1x32xf32, #tpu.memory_space<vmem>>, vector<1x32xf32>
    %5 = vector.broadcast %4 : vector<1x32xf32> to vector<512x32xf32>
    %6 = arith.addf %3, %5 : vector<512x32xf32>
    %cst = arith.constant 0.000000e+00 : f32
    %7 = vector.broadcast %cst : f32 to vector<512x32xf32>
    %8 = arith.maximumf %6, %7 : vector<512x32xf32>
    %c0_5 = arith.constant 0 : index
    %c0_6 = arith.constant 0 : index
    %9 = vector.load %arg4[%c0_5, %c0_6] : memref<32x128xf32, #tpu.memory_space<vmem>>, vector<32x128xf32>
    %cst_7 = arith.constant dense<0.000000e+00> : vector<512x128xf32>
    %10 = tpu.matmul %8, %9, %cst_7 {dimension_numbers = #tpu.dot_dimension_numbers<[1], [0], [0], [1], [0, 0, 1, 1], [], []>} : vector<512x32xf32>, vector<32x128xf32>, vector<512x128xf32> -> vector<512x128xf32>
    %c0_8 = arith.constant 0 : index
    %c0_9 = arith.constant 0 : index
    %11 = vector.load %arg5[%c0_8, %c0_9] : memref<512x128xf32, #tpu.memory_space<vmem>>, vector<512x128xf32>
    tpu.vector_store %arg5[%c0_8, %c0_9], %10 {strides = array<i32>} : memref<512x128xf32, #tpu.memory_space<vmem>>, vector<512x128xf32>,
    %cst_10 = arith.constant dense<0.000000e+00> : vector<128xf32>
    %12 = vector.multi_reduction <add>, %10, %cst_10 [0] : vector<512x128xf32> to vector<128xf32>
    %13 = vector.shape_cast %12 : vector<128xf32> to vector<1x128xf32>
    %14 = vector.shape_cast %13 : vector<1x128xf32> to vector<1x1x128xf32>
    %c0_11 = arith.constant 0 : index
    %c0_12 = arith.constant 0 : index
    %c0_13 = arith.constant 0 : index
    %15 = vector.load %arg6[%c0_11, %c0_12, %c0_13] : memref<1x1x128xf32, #tpu.memory_space<vmem>>, vector<1x1x128xf32>
    tpu.vector_store %arg6[%c0_11, %c0_12, %c0_13], %14 {strides = array<i32>} : memref<1x1x128xf32, #tpu.memory_space<vmem>>, vector<1x1x128xf32>,
    %16 = arith.mulf %10, %10 : vector<512x128xf32>
    %cst_14 = arith.constant dense<0.000000e+00> : vector<128xf32>
    %17 = vector.multi_reduction <add>, %16, %cst_14 [0] : vector<512x128xf32> to vector<128xf32>
    %18 = vector.shape_cast %17 : vector<128xf32> to vector<1x128xf32>
    %19 = vector.shape_cast %18 : vector<1x128xf32> to vector<1x1x128xf32>
    %c0_15 = arith.constant 0 : index
    %c0_16 = arith.constant 0 : index
    %c0_17 = arith.constant 0 : index
    %20 = vector.load %arg7[%c0_15, %c0_16, %c0_17] : memref<1x1x128xf32, #tpu.memory_space<vmem>>, vector<1x1x128xf32>
    tpu.vector_store %arg7[%c0_15, %c0_16, %c0_17], %19 {strides = array<i32>} : memref<1x1x128xf32, #tpu.memory_space<vmem>>, vector<1x1x128xf32>,
    return
  }
  func.func @transform_0(%arg0: i32) -> (i32, i32) {
    %c0_i32 = arith.constant 0 : i32
    %c0_i32_0 = arith.constant 0 : i32
    return %arg0, %c0_i32 : i32, i32
  }
  func.func @transform_1(%arg0: i32) -> (i32, i32) {
    %c0_i32 = arith.constant 0 : i32
    %c0_i32_0 = arith.constant 0 : i32
    %c0_i32_1 = arith.constant 0 : i32
    return %c0_i32, %c0_i32_0 : i32, i32
  }
  func.func @transform_2(%arg0: i32) -> (i32, i32) {
    %c0_i32 = arith.constant 0 : i32
    %c0_i32_0 = arith.constant 0 : i32
    %c0_i32_1 = arith.constant 0 : i32
    return %c0_i32, %c0_i32_0 : i32, i32
  }
  func.func @transform_3(%arg0: i32) -> (i32, i32) {
    %c0_i32 = arith.constant 0 : i32
    %c0_i32_0 = arith.constant 0 : i32
    %c0_i32_1 = arith.constant 0 : i32
    return %c0_i32, %c0_i32_0 : i32, i32
  }
  func.func @transform_4(%arg0: i32) -> (i32, i32) {
    %c0_i32 = arith.constant 0 : i32
    %c0_i32_0 = arith.constant 0 : i32
    return %arg0, %c0_i32 : i32, i32
  }
  func.func @transform_5(%arg0: i32) -> (i32, i32, i32) {
    %c0_i32 = arith.constant 0 : i32
    %c0_i32_0 = arith.constant 0 : i32
    %c0_i32_1 = arith.constant 0 : i32
    return %arg0, %c0_i32, %c0_i32_0 : i32, i32, i32
  }
  func.func @transform_6(%arg0: i32) -> (i32, i32, i32) {
    %c0_i32 = arith.constant 0 : i32
    %c0_i32_0 = arith.constant 0 : i32
    %c0_i32_1 = arith.constant 0 : i32
    return %arg0, %c0_i32, %c0_i32_0 : i32, i32, i32
  }
}

</mosaic_0001>

<llo_original>
// kernel: bottleneck_forward.4
$region0: #{bottleneck_forward.4}
  #allocation0 [shape = 'u32[]', space=smem, size = 0x4, offset = 0x4, fixed_abs, tag = 'smem constant byte address 0x4 - core index']
  #allocation1 [shape = 'u32[72,128]{1,0:T(1,128)}', space=vmem, size = 0x9000, scoped, tag = 'internal scratch']
  %s0 = inlined_call_operand.vmem [shape: f32[512,128], index: 0, kind: input, shape index: {}]
  %s1 = inlined_call_operand.vmem [shape: f32[128,32], index: 1, kind: input, shape index: {}]
  %s2 = inlined_call_operand.vmem [shape: f32[512,32], index: 2, kind: output, shape index: {0}]
  %s3 = inlined_call_operand.vmem [shape: f32[1,1,32], index: 3, kind: output, shape index: {1}]
  %s4 = inlined_call_operand.vmem [shape: f32[1,1,32], index: 4, kind: output, shape index: {2}]
  %5 = xla_tuple %s2, %s3, %s4
  %s6 = sld [smem:[#allocation0]]
  $region34: #{bottleneck_forward.4} parent=0
    _
  %s8 = ssub.s32 1, %s6
  %s9 = scalar_select 0, %s8, %s6
  // Predicated region
  $region2: #{bottleneck_forward.4} parent=0 // pred_check
    _
  $region3: #{bottleneck_forward.4} parent=0 // pred_check_branch
    %11 = sbr.rel (0) target = $region5
  $region4: #{bottleneck_forward.4} parent=0 // pred_region
    _
  $region5: #{bottleneck_forward.4} parent=0 // pred_fallthru
    _
  // Predicated region
  $region6: #{bottleneck_forward.4} parent=0 // pred_check
    _
  $region7: #{bottleneck_forward.4} parent=0 // pred_check_branch
    %13 = sbr.rel (0) target = $region9
  $region8: #{bottleneck_forward.4} parent=0 // pred_region
    _
  $region9: #{bottleneck_forward.4} parent=0 // pred_fallthru
    _
  %v14 = vld [vmem:[%s0] sm:$0xff]
  %v15 = vld [vmem:[%s0 + $0x8] sm:$0xff]
  %v16 = vld [vmem:[%s0 + $0x10] sm:$0xff]
  %v17 = vld [vmem:[%s0 + $0x18] sm:$0xff]
  %v18 = vld [vmem:[%s0 + $0x20] sm:$0xff]
  %v19 = vld [vmem:[%s0 + $0x28] sm:$0xff]
  %v20 = vld [vmem:[%s0 + $0x30] sm:$0xff]
  %v21 = vld [vmem:[%s0 + $0x38] sm:$0xff]
  %v22 = vld [vmem:[%s0 + $0x40] sm:$0xff]
  %v23 = vld [vmem:[%s0 + $0x48] sm:$0xff]
  %v24 = vld [vmem:[%s0 + $0x50] sm:$0xff]
  %v25 = vld [vmem:[%s0 + $0x58] sm:$0xff]
  %v26 = vld [vmem:[%s0 + $0x60] sm:$0xff]
  %v27 = vld [vmem:[%s0 + $0x68] sm:$0xff]
  %v28 = vld [vmem:[%s0 + $0x70] sm:$0xff]
  %v29 = vld [vmem:[%s0 + $0x78] sm:$0xff]
  %v30 = vld [vmem:[%s0 + $0x80] sm:$0xff]
  %v31 = vld [vmem:[%s0 + $0x88] sm:$0xff]
  %v32 = vld [vmem:[%s0 + $0x90] sm:$0xff]
  %v33 = vld [vmem:[%s0 + $0x98] sm:$0xff]
  %v34 = vld [vmem:[%s0 + $0xa0] sm:$0xff]
  %v35 = vld [vmem:[%s0 + $0xa8] sm:$0xff]
  %v36 = vld [vmem:[%s0 + $0xb0] sm:$0xff]
  %v37 = vld [vmem:[%s0 + $0xb8] sm:$0xff]
  %v38 = vld [vmem:[%s0 + $0xc0] sm:$0xff]
  %v39 = vld [vmem:[%s0 + $0xc8] sm:$0xff]
  %v40 = vld [vmem:[%s0 + $0xd0] sm:$0xff]
  %v41 = vld [vmem:[%s0 + $0xd8] sm:$0xff]
  %v42 = vld [vmem:[%s0 + $0xe0] sm:$0xff]
  %v43 = vld [vmem:[%s0 + $0xe8] sm:$0xff]
  %v44 = vld [vmem:[%s0 + $0xf0] sm:$0xff]
  %v45 = vld [vmem:[%s0 + $0xf8] sm:$0xff]
  %v46 = vld [vmem:[%s0 + $0x100] sm:$0xff]
  %v47 = vld [vmem:[%s0 + $0x108] sm:$0xff]
  %v48 = vld [vmem:[%s0 + $0x110] sm:$0xff]
  %v49 = vld [vmem:[%s0 + $0x118] sm:$0xff]
  %v50 = vld [vmem:[%s0 + $0x120] sm:$0xff]
  %v51 = vld [vmem:[%s0 + $0x128] sm:$0xff]
  %v52 = vld [vmem:[%s0 + $0x130] sm:$0xff]
  %v53 = vld [vmem:[%s0 + $0x138] sm:$0xff]
  %v54 = vld [vmem:[%s0 + $0x140] sm:$0xff]
  %v55 = vld [vmem:[%s0 + $0x148] sm:$0xff]
  %v56 = vld [vmem:[%s0 + $0x150] sm:$0xff]
  %v57 = vld [vmem:[%s0 + $0x158] sm:$0xff]
  %v58 = vld [vmem:[%s0 + $0x160] sm:$0xff]
  %v59 = vld [vmem:[%s0 + $0x168] sm:$0xff]
  %v60 = vld [vmem:[%s0 + $0x170] sm:$0xff]
  %v61 = vld [vmem:[%s0 + $0x178] sm:$0xff]
  %v62 = vld [vmem:[%s0 + $0x180] sm:$0xff]
  %v63 = vld [vmem:[%s0 + $0x188] sm:$0xff]
  %v64 = vld [vmem:[%s0 + $0x190] sm:$0xff]
  %v65 = vld [vmem:[%s0 + $0x198] sm:$0xff]
  %v66 = vld [vmem:[%s0 + $0x1a0] sm:$0xff]
  %v67 = vld [vmem:[%s0 + $0x1a8] sm:$0xff]
  %v68 = vld [vmem:[%s0 + $0x1b0] sm:$0xff]
  %v69 = vld [vmem:[%s0 + $0x1b8] sm:$0xff]
  %v70 = vld [vmem:[%s0 + $0x1c0] sm:$0xff]
  %v71 = vld [vmem:[%s0 + $0x1c8] sm:$0xff]
  %v72 = vld [vmem:[%s0 + $0x1d0] sm:$0xff]
  %v73 = vld [vmem:[%s0 + $0x1d8] sm:$0xff]
  %v74 = vld [vmem:[%s0 + $0x1e0] sm:$0xff]
  %v75 = vld [vmem:[%s0 + $0x1e8] sm:$0xff]
  %v76 = vld [vmem:[%s0 + $0x1f0] sm:$0xff]
  %v77 = vld [vmem:[%s0 + $0x1f8] sm:$0xff]
  %v78 = vld [vmem:[%s1] sm:$0xff]
  %v79 = vld [vmem:[%s1 + $0x8] sm:$0xff]
  %v80 = vld [vmem:[%s1 + $0x10] sm:$0xff]
  %v81 = vld [vmem:[%s1 + $0x18] sm:$0xff]
  %v82 = vld [vmem:[%s1 + $0x20] sm:$0xff]
  %v83 = vld [vmem:[%s1 + $0x28] sm:$0xff]
  %v84 = vld [vmem:[%s1 + $0x30] sm:$0xff]
  %v85 = vld [vmem:[%s1 + $0x38] sm:$0xff]
  %v86 = vld [vmem:[%s1 + $0x40] sm:$0xff]
  %v87 = vld [vmem:[%s1 + $0x48] sm:$0xff]
  %v88 = vld [vmem:[%s1 + $0x50] sm:$0xff]
  %v89 = vld [vmem:[%s1 + $0x58] sm:$0xff]
  %v90 = vld [vmem:[%s1 + $0x60] sm:$0xff]
  %v91 = vld [vmem:[%s1 + $0x68] sm:$0xff]
  %v92 = vld [vmem:[%s1 + $0x70] sm:$0xff]
  %v93 = vld [vmem:[%s1 + $0x78] sm:$0xff]
  %94 = vmatpush.msra.mxu0 %v93
  %95 = vmatpush.msra.mxu0 %v92
  %96 = vmatpush.msra.mxu0 %v91
  %97 = vmatpush.msra.mxu0 %v90
  %98 = vmatpush.msra.mxu0 %v89
  %99 = vmatpush.msra.mxu0 %v88
  %100 = vmatpush.msra.mxu0 %v87
  %101 = vmatpush.msra.mxu0 %v86
  %102 = vmatpush.msra.mxu0 %v85
  %103 = vmatpush.msra.mxu0 %v84
  %104 = vmatpush.msra.mxu0 %v83
  %105 = vmatpush.msra.mxu0 %v82
  %106 = vmatpush.msra.mxu0 %v81
  %107 = vmatpush.msra.mxu0 %v80
  %108 = vmatpush.msra.mxu0 %v79
  %109 = vmatpush.msra.mxu0 %v78
  %110 = vmatmul.f32.gmra.mxu0 %v14
  %v111 = vpop.f32.mrf.mxu0
  %v112 = vadd.f32 0.0, %v111
  %113 = vmatmul.f32.gmra.mxu0 %v15
  %v114 = vpop.f32.mrf.mxu0
  %v115 = vadd.f32 0.0, %v114
  %116 = vmatmul.f32.gmra.mxu0 %v16
  %v117 = vpop.f32.mrf.mxu0
  %v118 = vadd.f32 0.0, %v117
  %119 = vmatmul.f32.gmra.mxu0 %v17
  %v120 = vpop.f32.mrf.mxu0
  %v121 = vadd.f32 0.0, %v120
  %122 = vmatmul.f32.gmra.mxu0 %v18
  %v123 = vpop.f32.mrf.mxu0
  %v124 = vadd.f32 0.0, %v123
  %125 = vmatmul.f32.gmra.mxu0 %v19
  %v126 = vpop.f32.mrf.mxu0
  %v127 = vadd.f32 0.0, %v126
  %128 = vmatmul.f32.gmra.mxu0 %v20
  %v129 = vpop.f32.mrf.mxu0
  %v130 = vadd.f32 0.0, %v129
  %131 = vmatmul.f32.gmra.mxu0 %v21
  %v132 = vpop.f32.mrf.mxu0
  %v133 = vadd.f32 0.0, %v132
  %134 = vmatmul.f32.gmra.mxu0 %v22
  %v135 = vpop.f32.mrf.mxu0
  %v136 = vadd.f32 0.0, %v135
  %137 = vmatmul.f32.gmra.mxu0 %v23
  %v138 = vpop.f32.mrf.mxu0
  %v139 = vadd.f32 0.0, %v138
  %140 = vmatmul.f32.gmra.mxu0 %v24
  %v141 = vpop.f32.mrf.mxu0
  %v142 = vadd.f32 0.0, %v141
  %143 = vmatmul.f32.gmra.mxu0 %v25
  %v144 = vpop.f32.mrf.mxu0
  %v145 = vadd.f32 0.0, %v144
  %146 = vmatmul.f32.gmra.mxu0 %v26
  %v147 = vpop.f32.mrf.mxu0
  %v148 = vadd.f32 0.0, %v147
  %149 = vmatmul.f32.gmra.mxu0 %v27
  %v150 = vpop.f32.mrf.mxu0
  %v151 = vadd.f32 0.0, %v150
  %152 = vmatmul.f32.gmra.mxu0 %v28
  %v153 = vpop.f32.mrf.mxu0
  %v154 = vadd.f32 0.0, %v153
  %155 = vmatmul.f32.gmra.mxu0 %v29
  %v156 = vpop.f32.mrf.mxu0
  %v157 = vadd.f32 0.0, %v156
  %158 = vmatmul.f32.gmra.mxu0 %v30
  %v159 = vpop.f32.mrf.mxu0
  %v160 = vadd.f32 0.0, %v159
  %161 = vmatmul.f32.gmra.mxu0 %v31
  %v162 = vpop.f32.mrf.mxu0
  %v163 = vadd.f32 0.0, %v162
  %164 = vmatmul.f32.gmra.mxu0 %v32
  %v165 = vpop.f32.mrf.mxu0
  %v166 = vadd.f32 0.0, %v165
  %167 = vmatmul.f32.gmra.mxu0 %v33
  %v168 = vpop.f32.mrf.mxu0
  %v169 = vadd.f32 0.0, %v168
  %170 = vmatmul.f32.gmra.mxu0 %v34
  %v171 = vpop.f32.mrf.mxu0
  %v172 = vadd.f32 0.0, %v171
  %173 = vmatmul.f32.gmra.mxu0 %v35
  %v174 = vpop.f32.mrf.mxu0
  %v175 = vadd.f32 0.0, %v174
  %176 = vmatmul.f32.gmra.mxu0 %v36
  %v177 = vpop.f32.mrf.mxu0
  %v178 = vadd.f32 0.0, %v177
  %179 = vmatmul.f32.gmra.mxu0 %v37
  %v180 = vpop.f32.mrf.mxu0
  %v181 = vadd.f32 0.0, %v180
  %182 = vmatmul.f32.gmra.mxu0 %v38
  %v183 = vpop.f32.mrf.mxu0
  %v184 = vadd.f32 0.0, %v183
  %185 = vmatmul.f32.gmra.mxu0 %v39
  %v186 = vpop.f32.mrf.mxu0
  %v187 = vadd.f32 0.0, %v186
  %188 = vmatmul.f32.gmra.mxu0 %v40
  %v189 = vpop.f32.mrf.mxu0
  %v190 = vadd.f32 0.0, %v189
  %191 = vmatmul.f32.gmra.mxu0 %v41
  %v192 = vpop.f32.mrf.mxu0
  %v193 = vadd.f32 0.0, %v192
  %194 = vmatmul.f32.gmra.mxu0 %v42
  %v195 = vpop.f32.mrf.mxu0
  %v196 = vadd.f32 0.0, %v195
  %197 = vmatmul.f32.gmra.mxu0 %v43
  %v198 = vpop.f32.mrf.mxu0
  %v199 = vadd.f32 0.0, %v198
  %200 = vmatmul.f32.gmra.mxu0 %v44
  %v201 = vpop.f32.mrf.mxu0
  %v202 = vadd.f32 0.0, %v201
  %203 = vmatmul.f32.gmra.mxu0 %v45
  %v204 = vpop.f32.mrf.mxu0
  %v205 = vadd.f32 0.0, %v204
  %206 = vmatmul.f32.gmra.mxu0 %v46
  %v207 = vpop.f32.mrf.mxu0
  %v208 = vadd.f32 0.0, %v207
  %209 = vmatmul.f32.gmra.mxu0 %v47
  %v210 = vpop.f32.mrf.mxu0
  %v211 = vadd.f32 0.0, %v210
  %212 = vmatmul.f32.gmra.mxu0 %v48
  %v213 = vpop.f32.mrf.mxu0
  %v214 = vadd.f32 0.0, %v213
  %215 = vmatmul.f32.gmra.mxu0 %v49
  %v216 = vpop.f32.mrf.mxu0
  %v217 = vadd.f32 0.0, %v216
  %218 = vmatmul.f32.gmra.mxu0 %v50
  %v219 = vpop.f32.mrf.mxu0
  %v220 = vadd.f32 0.0, %v219
  %221 = vmatmul.f32.gmra.mxu0 %v51
  %v222 = vpop.f32.mrf.mxu0
  %v223 = vadd.f32 0.0, %v222
  %224 = vmatmul.f32.gmra.mxu0 %v52
  %v225 = vpop.f32.mrf.mxu0
  %v226 = vadd.f32 0.0, %v225
  %227 = vmatmul.f32.gmra.mxu0 %v53
  %v228 = vpop.f32.mrf.mxu0
  %v229 = vadd.f32 0.0, %v228
  %230 = vmatmul.f32.gmra.mxu0 %v54
  %v231 = vpop.f32.mrf.mxu0
  %v232 = vadd.f32 0.0, %v231
  %233 = vmatmul.f32.gmra.mxu0 %v55
  %v234 = vpop.f32.mrf.mxu0
  %v235 = vadd.f32 0.0, %v234
  %236 = vmatmul.f32.gmra.mxu0 %v56
  %v237 = vpop.f32.mrf.mxu0
  %v238 = vadd.f32 0.0, %v237
  %239 = vmatmul.f32.gmra.mxu0 %v57
  %v240 = vpop.f32.mrf.mxu0
  %v241 = vadd.f32 0.0, %v240
  %242 = vmatmul.f32.gmra.mxu0 %v58
  %v243 = vpop.f32.mrf.mxu0
  %v244 = vadd.f32 0.0, %v243
  %245 = vmatmul.f32.gmra.mxu0 %v59
  %v246 = vpop.f32.mrf.mxu0
  %v247 = vadd.f32 0.0, %v246
  %248 = vmatmul.f32.gmra.mxu0 %v60
  %v249 = vpop.f32.mrf.mxu0
  %v250 = vadd.f32 0.0, %v249
  %251 = vmatmul.f32.gmra.mxu0 %v61
  %v252 = vpop.f32.mrf.mxu0
  %v253 = vadd.f32 0.0, %v252
  %254 = vmatmul.f32.gmra.mxu0 %v62
  %v255 = vpop.f32.mrf.mxu0
  %v256 = vadd.f32 0.0, %v255
  %257 = vmatmul.f32.gmra.mxu0 %v63
  %v258 = vpop.f32.mrf.mxu0
  %v259 = vadd.f32 0.0, %v258
  %260 = vmatmul.f32.gmra.mxu0 %v64
  %v261 = vpop.f32.mrf.mxu0
  %v262 = vadd.f32 0.0, %v261
  %263 = vmatmul.f32.gmra.mxu0 %v65
  %v264 = vpop.f32.mrf.mxu0
  %v265 = vadd.f32 0.0, %v264
  %266 = vmatmul.f32.gmra.mxu0 %v66
  %v267 = vpop.f32.mrf.mxu0
  %v268 = vadd.f32 0.0, %v267
  %269 = vmatmul.f32.gmra.mxu0 %v67
  %v270 = vpop.f32.mrf.mxu0
  %v271 = vadd.f32 0.0, %v270
  %272 = vmatmul.f32.gmra.mxu0 %v68
  %v273 = vpop.f32.mrf.mxu0
  %v274 = vadd.f32 0.0, %v273
  %275 = vmatmul.f32.gmra.mxu0 %v69
  %v276 = vpop.f32.mrf.mxu0
  %v277 = vadd.f32 0.0, %v276
  %278 = vmatmul.f32.gmra.mxu0 %v70
  %v279 = vpop.f32.mrf.mxu0
  %v280 = vadd.f32 0.0, %v279
  %281 = vmatmul.f32.gmra.mxu0 %v71
  %v282 = vpop.f32.mrf.mxu0
  %v283 = vadd.f32 0.0, %v282
  %284 = vmatmul.f32.gmra.mxu0 %v72
  %v285 = vpop.f32.mrf.mxu0
  %v286 = vadd.f32 0.0, %v285
  %287 = vmatmul.f32.gmra.mxu0 %v73
  %v288 = vpop.f32.mrf.mxu0
  %v289 = vadd.f32 0.0, %v288
  %290 = vmatmul.f32.gmra.mxu0 %v74
  %v291 = vpop.f32.mrf.mxu0
  %v292 = vadd.f32 0.0, %v291
  %293 = vmatmul.f32.gmra.mxu0 %v75
  %v294 = vpop.f32.mrf.mxu0
  %v295 = vadd.f32 0.0, %v294
  %296 = vmatmul.f32.gmra.mxu0 %v76
  %v297 = vpop.f32.mrf.mxu0
  %v298 = vadd.f32 0.0, %v297
  %299 = vmatmul.f32.gmra.mxu0 %v77
  %v300 = vpop.f32.mrf.mxu0
  %v301 = vadd.f32 0.0, %v300
  %302 = vdwg.mxu0
  %vm303 = vcmask 261120
  %304 = vst.msk [vmem:[%s2] sm:$0xff] %vm303, %v112
  %305 = vst.msk [vmem:[%s2 + $0x8] sm:$0xff] %vm303, %v115
  %306 = vst.msk [vmem:[%s2 + $0x10] sm:$0xff] %vm303, %v118
  %307 = vst.msk [vmem:[%s2 + $0x18] sm:$0xff] %vm303, %v121
  %308 = vst.msk [vmem:[%s2 + $0x20] sm:$0xff] %vm303, %v124
  %309 = vst.msk [vmem:[%s2 + $0x28] sm:$0xff] %vm303, %v127
  %310 = vst.msk [vmem:[%s2 + $0x30] sm:$0xff] %vm303, %v130
  %311 = vst.msk [vmem:[%s2 + $0x38] sm:$0xff] %vm303, %v133
  %312 = vst.msk [vmem:[%s2 + $0x40] sm:$0xff] %vm303, %v136
  %313 = vst.msk [vmem:[%s2 + $0x48] sm:$0xff] %vm303, %v139
  %314 = vst.msk [vmem:[%s2 + $0x50] sm:$0xff] %vm303, %v142
  %315 = vst.msk [vmem:[%s2 + $0x58] sm:$0xff] %vm303, %v145
  %316 = vst.msk [vmem:[%s2 + $0x60] sm:$0xff] %vm303, %v148
  %317 = vst.msk [vmem:[%s2 + $0x68] sm:$0xff] %vm303, %v151
  %318 = vst.msk [vmem:[%s2 + $0x70] sm:$0xff] %vm303, %v154
  %319 = vst.msk [vmem:[%s2 + $0x78] sm:$0xff] %vm303, %v157
  %320 = vst.msk [vmem:[%s2 + $0x80] sm:$0xff] %vm303, %v160
  %321 = vst.msk [vmem:[%s2 + $0x88] sm:$0xff] %vm303, %v163
  %322 = vst.msk [vmem:[%s2 + $0x90] sm:$0xff] %vm303, %v166
  %323 = vst.msk [vmem:[%s2 + $0x98] sm:$0xff] %vm303, %v169
  %324 = vst.msk [vmem:[%s2 + $0xa0] sm:$0xff] %vm303, %v172
  %325 = vst.msk [vmem:[%s2 + $0xa8] sm:$0xff] %vm303, %v175
  %326 = vst.msk [vmem:[%s2 + $0xb0] sm:$0xff] %vm303, %v178
  %327 = vst.msk [vmem:[%s2 + $0xb8] sm:$0xff] %vm303, %v181
  %328 = vst.msk [vmem:[%s2 + $0xc0] sm:$0xff] %vm303, %v184
  %329 = vst.msk [vmem:[%s2 + $0xc8] sm:$0xff] %vm303, %v187
  %330 = vst.msk [vmem:[%s2 + $0xd0] sm:$0xff] %vm303, %v190
  %331 = vst.msk [vmem:[%s2 + $0xd8] sm:$0xff] %vm303, %v193
  %332 = vst.msk [vmem:[%s2 + $0xe0] sm:$0xff] %vm303, %v196
  %333 = vst.msk [vmem:[%s2 + $0xe8] sm:$0xff] %vm303, %v199
  %334 = vst.msk [vmem:[%s2 + $0xf0] sm:$0xff] %vm303, %v202
  %335 = vst.msk [vmem:[%s2 + $0xf8] sm:$0xff] %vm303, %v205
  %336 = vst.msk [vmem:[%s2 + $0x100] sm:$0xff] %vm303, %v208
  %337 = vst.msk [vmem:[%s2 + $0x108] sm:$0xff] %vm303, %v211
  %338 = vst.msk [vmem:[%s2 + $0x110] sm:$0xff] %vm303, %v214
  %339 = vst.msk [vmem:[%s2 + $0x118] sm:$0xff] %vm303, %v217
  %340 = vst.msk [vmem:[%s2 + $0x120] sm:$0xff] %vm303, %v220
  %341 = vst.msk [vmem:[%s2 + $0x128] sm:$0xff] %vm303, %v223
  %342 = vst.msk [vmem:[%s2 + $0x130] sm:$0xff] %vm303, %v226
  %343 = vst.msk [vmem:[%s2 + $0x138] sm:$0xff] %vm303, %v229
  %344 = vst.msk [vmem:[%s2 + $0x140] sm:$0xff] %vm303, %v232
  %345 = vst.msk [vmem:[%s2 + $0x148] sm:$0xff] %vm303, %v235
  %346 = vst.msk [vmem:[%s2 + $0x150] sm:$0xff] %vm303, %v238
  %347 = vst.msk [vmem:[%s2 + $0x158] sm:$0xff] %vm303, %v241
  %348 = vst.msk [vmem:[%s2 + $0x160] sm:$0xff] %vm303, %v244
  %349 = vst.msk [vmem:[%s2 + $0x168] sm:$0xff] %vm303, %v247
  %350 = vst.msk [vmem:[%s2 + $0x170] sm:$0xff] %vm303, %v250
  %351 = vst.msk [vmem:[%s2 + $0x178] sm:$0xff] %vm303, %v253
  %352 = vst.msk [vmem:[%s2 + $0x180] sm:$0xff] %vm303, %v256
  %353 = vst.msk [vmem:[%s2 + $0x188] sm:$0xff] %vm303, %v259
  %354 = vst.msk [vmem:[%s2 + $0x190] sm:$0xff] %vm303, %v262
  %355 = vst.msk [vmem:[%s2 + $0x198] sm:$0xff] %vm303, %v265
  %356 = vst.msk [vmem:[%s2 + $0x1a0] sm:$0xff] %vm303, %v268
  %357 = vst.msk [vmem:[%s2 + $0x1a8] sm:$0xff] %vm303, %v271
  %358 = vst.msk [vmem:[%s2 + $0x1b0] sm:$0xff] %vm303, %v274
  %359 = vst.msk [vmem:[%s2 + $0x1b8] sm:$0xff] %vm303, %v277
  %360 = vst.msk [vmem:[%s2 + $0x1c0] sm:$0xff] %vm303, %v280
  %361 = vst.msk [vmem:[%s2 + $0x1c8] sm:$0xff] %vm303, %v283
  %362 = vst.msk [vmem:[%s2 + $0x1d0] sm:$0xff] %vm303, %v286
  %363 = vst.msk [vmem:[%s2 + $0x1d8] sm:$0xff] %vm303, %v289
  %364 = vst.msk [vmem:[%s2 + $0x1e0] sm:$0xff] %vm303, %v292
  %365 = vst.msk [vmem:[%s2 + $0x1e8] sm:$0xff] %vm303, %v295
  %366 = vst.msk [vmem:[%s2 + $0x1f0] sm:$0xff] %vm303, %v298
  %367 = vst.msk [vmem:[%s2 + $0x1f8] sm:$0xff] %vm303, %v301
  %v368 = vsel %vm303, %v112, 0.0
  %v369 = vsel %vm303, %v115, 0.0
  %v370 = vadd.f32 %v368, %v369
  %v371 = vsel %vm303, %v118, 0.0
  %v372 = vadd.f32 %v370, %v371
  %v373 = vsel %vm303, %v121, 0.0
  %v374 = vadd.f32 %v372, %v373
  %v375 = vsel %vm303, %v124, 0.0
  %v376 = vadd.f32 %v374, %v375
  %v377 = vsel %vm303, %v127, 0.0
  %v378 = vadd.f32 %v376, %v377
  %v379 = vsel %vm303, %v130, 0.0
  %v380 = vadd.f32 %v378, %v379
  %v381 = vsel %vm303, %v133, 0.0
  %v382 = vadd.f32 %v380, %v381
  %v383 = vsel %vm303, %v136, 0.0
  %v384 = vadd.f32 %v382, %v383
  %v385 = vsel %vm303, %v139, 0.0
  %v386 = vadd.f32 %v384, %v385
  %v387 = vsel %vm303, %v142, 0.0
  %v388 = vadd.f32 %v386, %v387
  %v389 = vsel %vm303, %v145, 0.0
  %v390 = vadd.f32 %v388, %v389
  %v391 = vsel %vm303, %v148, 0.0
  %v392 = vadd.f32 %v390, %v391
  %v393 = vsel %vm303, %v151, 0.0
  %v394 = vadd.f32 %v392, %v393
  %v395 = vsel %vm303, %v154, 0.0
  %v396 = vadd.f32 %v394, %v395
  %v397 = vsel %vm303, %v157, 0.0
  %v398 = vadd.f32 %v396, %v397
  %v399 = vsel %vm303, %v160, 0.0
  %v400 = vadd.f32 %v398, %v399
  %v401 = vsel %vm303, %v163, 0.0
  %v402 = vadd.f32 %v400, %v401
  %v403 = vsel %vm303, %v166, 0.0
  %v404 = vadd.f32 %v402, %v403
  %v405 = vsel %vm303, %v169, 0.0
  %v406 = vadd.f32 %v404, %v405
  %v407 = vsel %vm303, %v172, 0.0
  %v408 = vadd.f32 %v406, %v407
  %v409 = vsel %vm303, %v175, 0.0
  %v410 = vadd.f32 %v408, %v409
  %v411 = vsel %vm303, %v178, 0.0
  %v412 = vadd.f32 %v410, %v411
  %v413 = vsel %vm303, %v181, 0.0
  %v414 = vadd.f32 %v412, %v413
  %v415 = vsel %vm303, %v184, 0.0
  %v416 = vadd.f32 %v414, %v415
  %v417 = vsel %vm303, %v187, 0.0
  %v418 = vadd.f32 %v416, %v417
  %v419 = vsel %vm303, %v190, 0.0
  %v420 = vadd.f32 %v418, %v419
  %v421 = vsel %vm303, %v193, 0.0
  %v422 = vadd.f32 %v420, %v421
  %v423 = vsel %vm303, %v196, 0.0
  %v424 = vadd.f32 %v422, %v423
  %v425 = vsel %vm303, %v199, 0.0
  %v426 = vadd.f32 %v424, %v425
  %v427 = vsel %vm303, %v202, 0.0
  %v428 = vadd.f32 %v426, %v427
  %v429 = vsel %vm303, %v205, 0.0
  %v430 = vadd.f32 %v428, %v429
  %v431 = vsel %vm303, %v208, 0.0
  %v432 = vadd.f32 %v430, %v431
  %v433 = vsel %vm303, %v211, 0.0
  %v434 = vadd.f32 %v432, %v433
  %v435 = vsel %vm303, %v214, 0.0
  %v436 = vadd.f32 %v434, %v435
  %v437 = vsel %vm303, %v217, 0.0
  %v438 = vadd.f32 %v436, %v437
  %v439 = vsel %vm303, %v220, 0.0
  %v440 = vadd.f32 %v438, %v439
  %v441 = vsel %vm303, %v223, 0.0
  %v442 = vadd.f32 %v440, %v441
  %v443 = vsel %vm303, %v226, 0.0
  %v444 = vadd.f32 %v442, %v443
  %v445 = vsel %vm303, %v229, 0.0
  %v446 = vadd.f32 %v444, %v445
  %v447 = vsel %vm303, %v232, 0.0
  %v448 = vadd.f32 %v446, %v447
  %v449 = vsel %vm303, %v235, 0.0
  %v450 = vadd.f32 %v448, %v449
  %v451 = vsel %vm303, %v238, 0.0
  %v452 = vadd.f32 %v450, %v451
  %v453 = vsel %vm303, %v241, 0.0
  %v454 = vadd.f32 %v452, %v453
  %v455 = vsel %vm303, %v244, 0.0
  %v456 = vadd.f32 %v454, %v455
  %v457 = vsel %vm303, %v247, 0.0
  %v458 = vadd.f32 %v456, %v457
  %v459 = vsel %vm303, %v250, 0.0
  %v460 = vadd.f32 %v458, %v459
  %v461 = vsel %vm303, %v253, 0.0
  %v462 = vadd.f32 %v460, %v461
  %v463 = vsel %vm303, %v256, 0.0
  %v464 = vadd.f32 %v462, %v463
  %v465 = vsel %vm303, %v259, 0.0
  %v466 = vadd.f32 %v464, %v465
  %v467 = vsel %vm303, %v262, 0.0
  %v468 = vadd.f32 %v466, %v467
  %v469 = vsel %vm303, %v265, 0.0
  %v470 = vadd.f32 %v468, %v469
  %v471 = vsel %vm303, %v268, 0.0
  %v472 = vadd.f32 %v470, %v471
  %v473 = vsel %vm303, %v271, 0.0
  %v474 = vadd.f32 %v472, %v473
  %v475 = vsel %vm303, %v274, 0.0
  %v476 = vadd.f32 %v474, %v475
  %v477 = vsel %vm303, %v277, 0.0
  %v478 = vadd.f32 %v476, %v477
  %v479 = vsel %vm303, %v280, 0.0
  %v480 = vadd.f32 %v478, %v479
  %v481 = vsel %vm303, %v283, 0.0
  %v482 = vadd.f32 %v480, %v481
  %v483 = vsel %vm303, %v286, 0.0
  %v484 = vadd.f32 %v482, %v483
  %v485 = vsel %vm303, %v289, 0.0
  %v486 = vadd.f32 %v484, %v485
  %v487 = vsel %vm303, %v292, 0.0
  %v488 = vadd.f32 %v486, %v487
  %v489 = vsel %vm303, %v295, 0.0
  %v490 = vadd.f32 %v488, %v489
  %v491 = vsel %vm303, %v298, 0.0
  %v492 = vadd.f32 %v490, %v491
  %v493 = vsel %vm303, %v301, 0.0
  %v494 = vadd.f32 %v492, %v493
  %v495 = vrot.slane %v494, 4
  %v496 = vadd.f32 %v494, %v495
  %v497 = vrot.slane %v496, 2
  %v498 = vadd.f32 %v496, %v497
  %v499 = vrot.slane %v498, 1
  %v500 = vadd.f32 %v498, %v499
  %vm501 = vcmask 253952
  %502 = vst.msk [vmem:[%s3] sm:$0x1] %vm501, %v500
  %v503 = vmul.f32 %v112, %v112
  %v504 = vmul.f32 %v115, %v115
  %v505 = vmul.f32 %v118, %v118
  %v506 = vmul.f32 %v121, %v121
  %v507 = vmul.f32 %v124, %v124
  %v508 = vmul.f32 %v127, %v127
  %v509 = vmul.f32 %v130, %v130
  %v510 = vmul.f32 %v133, %v133
  %v511 = vmul.f32 %v136, %v136
  %v512 = vmul.f32 %v139, %v139
  %v513 = vmul.f32 %v142, %v142
  %v514 = vmul.f32 %v145, %v145
  %v515 = vmul.f32 %v148, %v148
  %v516 = vmul.f32 %v151, %v151
  %v517 = vmul.f32 %v154, %v154
  %v518 = vmul.f32 %v157, %v157
  %v519 = vmul.f32 %v160, %v160
  %v520 = vmul.f32 %v163, %v163
  %v521 = vmul.f32 %v166, %v166
  %v522 = vmul.f32 %v169, %v169
  %v523 = vmul.f32 %v172, %v172
  %v524 = vmul.f32 %v175, %v175
  %v525 = vmul.f32 %v178, %v178
  %v526 = vmul.f32 %v181, %v181
  %v527 = vmul.f32 %v184, %v184
  %v528 = vmul.f32 %v187, %v187
  %v529 = vmul.f32 %v190, %v190
  %v530 = vmul.f32 %v193, %v193
  %v531 = vmul.f32 %v196, %v196
  %v532 = vmul.f32 %v199, %v199
  %v533 = vmul.f32 %v202, %v202
  %v534 = vmul.f32 %v205, %v205
  %v535 = vmul.f32 %v208, %v208
  %v536 = vmul.f32 %v211, %v211
  %v537 = vmul.f32 %v214, %v214
  %v538 = vmul.f32 %v217, %v217
  %v539 = vmul.f32 %v220, %v220
  %v540 = vmul.f32 %v223, %v223
  %v541 = vmul.f32 %v226, %v226
  %v542 = vmul.f32 %v229, %v229
  %v543 = vmul.f32 %v232, %v232
  %v544 = vmul.f32 %v235, %v235
  %v545 = vmul.f32 %v238, %v238
  %v546 = vmul.f32 %v241, %v241
  %v547 = vmul.f32 %v244, %v244
  %v548 = vmul.f32 %v247, %v247
  %v549 = vmul.f32 %v250, %v250
  %v550 = vmul.f32 %v253, %v253
  %v551 = vmul.f32 %v256, %v256
  %v552 = vmul.f32 %v259, %v259
  %v553 = vmul.f32 %v262, %v262
  %v554 = vmul.f32 %v265, %v265
  %v555 = vmul.f32 %v268, %v268
  %v556 = vmul.f32 %v271, %v271
  %v557 = vmul.f32 %v274, %v274
  %v558 = vmul.f32 %v277, %v277
  %v559 = vmul.f32 %v280, %v280
  %v560 = vmul.f32 %v283, %v283
  %v561 = vmul.f32 %v286, %v286
  %v562 = vmul.f32 %v289, %v289
  %v563 = vmul.f32 %v292, %v292
  %v564 = vmul.f32 %v295, %v295
  %v565 = vmul.f32 %v298, %v298
  %v566 = vmul.f32 %v301, %v301
  %v567 = vsel %vm303, %v503, 0.0
  %v568 = vsel %vm303, %v504, 0.0
  %v569 = vadd.f32 %v567, %v568
  %v570 = vsel %vm303, %v505, 0.0
  %v571 = vadd.f32 %v569, %v570
  %v572 = vsel %vm303, %v506, 0.0
  %v573 = vadd.f32 %v571, %v572
  %v574 = vsel %vm303, %v507, 0.0
  %v575 = vadd.f32 %v573, %v574
  %v576 = vsel %vm303, %v508, 0.0
  %v577 = vadd.f32 %v575, %v576
  %v578 = vsel %vm303, %v509, 0.0
  %v579 = vadd.f32 %v577, %v578
  %v580 = vsel %vm303, %v510, 0.0
  %v581 = vadd.f32 %v579, %v580
  %v582 = vsel %vm303, %v511, 0.0
  %v583 = vadd.f32 %v581, %v582
  %v584 = vsel %vm303, %v512, 0.0
  %v585 = vadd.f32 %v583, %v584
  %v586 = vsel %vm303, %v513, 0.0
  %v587 = vadd.f32 %v585, %v586
  %v588 = vsel %vm303, %v514, 0.0
  %v589 = vadd.f32 %v587, %v588
  %v590 = vsel %vm303, %v515, 0.0
  %v591 = vadd.f32 %v589, %v590
  %v592 = vsel %vm303, %v516, 0.0
  %v593 = vadd.f32 %v591, %v592
  %v594 = vsel %vm303, %v517, 0.0
  %v595 = vadd.f32 %v593, %v594
  %v596 = vsel %vm303, %v518, 0.0
  %v597 = vadd.f32 %v595, %v596
  %v598 = vsel %vm303, %v519, 0.0
  %v599 = vadd.f32 %v597, %v598
  %v600 = vsel %vm303, %v520, 0.0
  %v601 = vadd.f32 %v599, %v600
  %v602 = vsel %vm303, %v521, 0.0
  %v603 = vadd.f32 %v601, %v602
  %v604 = vsel %vm303, %v522, 0.0
  %v605 = vadd.f32 %v603, %v604
  %v606 = vsel %vm303, %v523, 0.0
  %v607 = vadd.f32 %v605, %v606
  %v608 = vsel %vm303, %v524, 0.0
  %v609 = vadd.f32 %v607, %v608
  %v610 = vsel %vm303, %v525, 0.0
  %v611 = vadd.f32 %v609, %v610
  %v612 = vsel %vm303, %v526, 0.0
  %v613 = vadd.f32 %v611, %v612
  %v614 = vsel %vm303, %v527, 0.0
  %v615 = vadd.f32 %v613, %v614
  %v616 = vsel %vm303, %v528, 0.0
  %v617 = vadd.f32 %v615, %v616
  %v618 = vsel %vm303, %v529, 0.0
  %v619 = vadd.f32 %v617, %v618
  %v620 = vsel %vm303, %v530, 0.0
  %v621 = vadd.f32 %v619, %v620
  %v622 = vsel %vm303, %v531, 0.0
  %v623 = vadd.f32 %v621, %v622
  %v624 = vsel %vm303, %v532, 0.0
  %v625 = vadd.f32 %v623, %v624
  %v626 = vsel %vm303, %v533, 0.0
  %v627 = vadd.f32 %v625, %v626
  %v628 = vsel %vm303, %v534, 0.0
  %v629 = vadd.f32 %v627, %v628
  %v630 = vsel %vm303, %v535, 0.0
  %v631 = vadd.f32 %v629, %v630
  %v632 = vsel %vm303, %v536, 0.0
  %v633 = vadd.f32 %v631, %v632
  %v634 = vsel %vm303, %v537, 0.0
  %v635 = vadd.f32 %v633, %v634
  %v636 = vsel %vm303, %v538, 0.0
  %v637 = vadd.f32 %v635, %v636
  %v638 = vsel %vm303, %v539, 0.0
  %v639 = vadd.f32 %v637, %v638
  %v640 = vsel %vm303, %v540, 0.0
  %v641 = vadd.f32 %v639, %v640
  %v642 = vsel %vm303, %v541, 0.0
  %v643 = vadd.f32 %v641, %v642
  %v644 = vsel %vm303, %v542, 0.0
  %v645 = vadd.f32 %v643, %v644
  %v646 = vsel %vm303, %v543, 0.0
  %v647 = vadd.f32 %v645, %v646
  %v648 = vsel %vm303, %v544, 0.0
  %v649 = vadd.f32 %v647, %v648
  %v650 = vsel %vm303, %v545, 0.0
  %v651 = vadd.f32 %v649, %v650
  %v652 = vsel %vm303, %v546, 0.0
  %v653 = vadd.f32 %v651, %v652
  %v654 = vsel %vm303, %v547, 0.0
  %v655 = vadd.f32 %v653, %v654
  %v656 = vsel %vm303, %v548, 0.0
  %v657 = vadd.f32 %v655, %v656
  %v658 = vsel %vm303, %v549, 0.0
  %v659 = vadd.f32 %v657, %v658
  %v660 = vsel %vm303, %v550, 0.0
  %v661 = vadd.f32 %v659, %v660
  %v662 = vsel %vm303, %v551, 0.0
  %v663 = vadd.f32 %v661, %v662
  %v664 = vsel %vm303, %v552, 0.0
  %v665 = vadd.f32 %v663, %v664
  %v666 = vsel %vm303, %v553, 0.0
  %v667 = vadd.f32 %v665, %v666
  %v668 = vsel %vm303, %v554, 0.0
  %v669 = vadd.f32 %v667, %v668
  %v670 = vsel %vm303, %v555, 0.0
  %v671 = vadd.f32 %v669, %v670
  %v672 = vsel %vm303, %v556, 0.0
  %v673 = vadd.f32 %v671, %v672
  %v674 = vsel %vm303, %v557, 0.0
  %v675 = vadd.f32 %v673, %v674
  %v676 = vsel %vm303, %v558, 0.0
  %v677 = vadd.f32 %v675, %v676
  %v678 = vsel %vm303, %v559, 0.0
  %v679 = vadd.f32 %v677, %v678
  %v680 = vsel %vm303, %v560, 0.0
  %v681 = vadd.f32 %v679, %v680
  %v682 = vsel %vm303, %v561, 0.0
  %v683 = vadd.f32 %v681, %v682
  %v684 = vsel %vm303, %v562, 0.0
  %v685 = vadd.f32 %v683, %v684
  %v686 = vsel %vm303, %v563, 0.0
  %v687 = vadd.f32 %v685, %v686
  %v688 = vsel %vm303, %v564, 0.0
  %v689 = vadd.f32 %v687, %v688
  %v690 = vsel %vm303, %v565, 0.0
  %v691 = vadd.f32 %v689, %v690
  %v692 = vsel %vm303, %v566, 0.0
  %v693 = vadd.f32 %v691, %v692
  %v694 = vrot.slane %v693, 4
  %v695 = vadd.f32 %v693, %v694
  %v696 = vrot.slane %v695, 2
  %v697 = vadd.f32 %v695, %v696
  %v698 = vrot.slane %v697, 1
  %v699 = vadd.f32 %v697, %v698
  %700 = vst.msk [vmem:[%s4] sm:$0x1] %vm501, %v699
  // Predicated region
  $region10: #{bottleneck_forward.4} parent=0 // pred_check
    _
  $region11: #{bottleneck_forward.4} parent=0 // pred_check_branch
    %702 = sbr.rel (0) target = $region13
  $region12: #{bottleneck_forward.4} parent=0 // pred_region
    _
  $region13: #{bottleneck_forward.4} parent=0 // pred_fallthru
    _
  // Predicated region
  $region14: #{bottleneck_forward.4} parent=0 // pred_check
    _
  $region15: #{bottleneck_forward.4} parent=0 // pred_check_branch
    %704 = sbr.rel (0) target = $region17
  $region16: #{bottleneck_forward.4} parent=0 // pred_region
    _
  $region17: #{bottleneck_forward.4} parent=0 // pred_fallthru
    _
  // Predicated region
  $region18: #{bottleneck_forward.4} parent=0 // pred_check
    _
  $region19: #{bottleneck_forward.4} parent=0 // pred_check_branch
    %706 = sbr.rel (0) target = $region21
  $region20: #{bottleneck_forward.4} parent=0 // pred_region
    _
  $region21: #{bottleneck_forward.4} parent=0 // pred_fallthru
    _
  // Predicated region
  $region22: #{bottleneck_forward.4} parent=0 // pred_check
    _
  $region23: #{bottleneck_forward.4} parent=0 // pred_check_branch
    %708 = sbr.rel (0) target = $region25
  $region24: #{bottleneck_forward.4} parent=0 // pred_region
    _
  $region25: #{bottleneck_forward.4} parent=0 // pred_fallthru
    _
  // Predicated region
  $region26: #{bottleneck_forward.4} parent=0 // pred_check
    _
  $region27: #{bottleneck_forward.4} parent=0 // pred_check_branch
    %710 = sbr.rel (0) target = $region29
  $region28: #{bottleneck_forward.4} parent=0 // pred_region
    _
  $region29: #{bottleneck_forward.4} parent=0 // pred_fallthru
    _
  // Predicated region
  $region30: #{bottleneck_forward.4} parent=0 // pred_check
    _
  $region31: #{bottleneck_forward.4} parent=0 // pred_check_branch
    %712 = sbr.rel (0) target = $region33
  $region32: #{bottleneck_forward.4} parent=0 // pred_region
    _
  $region33: #{bottleneck_forward.4} parent=0 // pred_fallthru
    _

// kernel: bottleneck_forward.7
$region0: #{bottleneck_forward.7}
  #allocation0 [shape = 'u32[]', space=smem, size = 0x4, offset = 0x4, fixed_abs, tag = 'smem constant byte address 0x4 - core index']
  #allocation1 [shape = 'u32[72,128]{1,0:T(1,128)}', space=vmem, size = 0x9000, scoped, tag = 'internal scratch']
  %s0 = inlined_call_operand.vmem [shape: f32[512,128], index: 0, kind: input, shape index: {}]
  %s1 = inlined_call_operand.vmem [shape: f32[1,128], index: 1, kind: input, shape index: {}]
  %s2 = inlined_call_operand.vmem [shape: f32[1,128], index: 2, kind: input, shape index: {}]
  %s3 = inlined_call_operand.vmem [shape: f32[512,128], index: 3, kind: input, shape index: {}]
  %s4 = inlined_call_operand.hbm [shape: f32[512,128], index: 4, kind: output, shape index: {}]
  %s5 = sld [smem:[#allocation0]]
  $region26: #{bottleneck_forward.7} parent=0
    _
  %s7 = ssub.s32 1, %s5
  %s8 = scalar_select 0, %s7, %s5
  $region1: #{bottleneck_forward.7} parent=0
    #allocation2 [shape = 'u8[262144]{0}', space=vmem, size = 0x40000, scoped, tag = 'output window, operand 0, single buffered']
    #allocation3 [shape = 's32[1]{0}', space=sflag, size = 0x4, scoped, tag = 'scoped memory for bottleneck_forward.7']
    %9 = vsyncpa [#allocation3], 0
    // Predicated region
    $region2: #{bottleneck_forward.7} parent=1 // pred_check
      _
    $region3: #{bottleneck_forward.7} parent=1 // pred_check_branch
      %11 = sbr.rel (0) target = $region5
    $region4: #{bottleneck_forward.7} parent=1 // pred_region
      _
    $region5: #{bottleneck_forward.7} parent=1 // pred_fallthru
      _
    // Predicated region
    $region6: #{bottleneck_forward.7} parent=1 // pred_check
      _
    $region7: #{bottleneck_forward.7} parent=1 // pred_check_branch
      %13 = sbr.rel (0) target = $region9
    $region8: #{bottleneck_forward.7} parent=1 // pred_region
      _
    $region9: #{bottleneck_forward.7} parent=1 // pred_fallthru
      _
    // Predicated region
    $region10: #{bottleneck_forward.7} parent=1 // pred_check
      _
    $region11: #{bottleneck_forward.7} parent=1 // pred_check_branch
      %15 = sbr.rel (0) target = $region13
    $region12: #{bottleneck_forward.7} parent=1 // pred_region
      _
    $region13: #{bottleneck_forward.7} parent=1 // pred_fallthru
      _
    // Predicated region
    $region14: #{bottleneck_forward.7} parent=1 // pred_check
      _
    $region15: #{bottleneck_forward.7} parent=1 // pred_check_branch
      %17 = sbr.rel (0) target = $region17
    $region16: #{bottleneck_forward.7} parent=1 // pred_region
      _
    $region17: #{bottleneck_forward.7} parent=1 // pred_fallthru
      _
    %v18 = vld [vmem:[%s0] sm:$0xff]
    %v19 = vld [vmem:[%s0 + $0x8] sm:$0xff]
    %v20 = vld [vmem:[%s0 + $0x10] sm:$0xff]
    %v21 = vld [vmem:[%s0 + $0x18] sm:$0xff]
    %v22 = vld [vmem:[%s0 + $0x20] sm:$0xff]
    %v23 = vld [vmem:[%s0 + $0x28] sm:$0xff]
    %v24 = vld [vmem:[%s0 + $0x30] sm:$0xff]
    %v25 = vld [vmem:[%s0 + $0x38] sm:$0xff]
    %v26 = vld [vmem:[%s0 + $0x40] sm:$0xff]
    %v27 = vld [vmem:[%s0 + $0x48] sm:$0xff]
    %v28 = vld [vmem:[%s0 + $0x50] sm:$0xff]
    %v29 = vld [vmem:[%s0 + $0x58] sm:$0xff]
    %v30 = vld [vmem:[%s0 + $0x60] sm:$0xff]
    %v31 = vld [vmem:[%s0 + $0x68] sm:$0xff]
    %v32 = vld [vmem:[%s0 + $0x70] sm:$0xff]
    %v33 = vld [vmem:[%s0 + $0x78] sm:$0xff]
    %v34 = vld [vmem:[%s0 + $0x80] sm:$0xff]
    %v35 = vld [vmem:[%s0 + $0x88] sm:$0xff]
    %v36 = vld [vmem:[%s0 + $0x90] sm:$0xff]
    %v37 = vld [vmem:[%s0 + $0x98] sm:$0xff]
    %v38 = vld [vmem:[%s0 + $0xa0] sm:$0xff]
    %v39 = vld [vmem:[%s0 + $0xa8] sm:$0xff]
    %v40 = vld [vmem:[%s0 + $0xb0] sm:$0xff]
    %v41 = vld [vmem:[%s0 + $0xb8] sm:$0xff]
    %v42 = vld [vmem:[%s0 + $0xc0] sm:$0xff]
    %v43 = vld [vmem:[%s0 + $0xc8] sm:$0xff]
    %v44 = vld [vmem:[%s0 + $0xd0] sm:$0xff]
    %v45 = vld [vmem:[%s0 + $0xd8] sm:$0xff]
    %v46 = vld [vmem:[%s0 + $0xe0] sm:$0xff]
    %v47 = vld [vmem:[%s0 + $0xe8] sm:$0xff]
    %v48 = vld [vmem:[%s0 + $0xf0] sm:$0xff]
    %v49 = vld [vmem:[%s0 + $0xf8] sm:$0xff]
    %v50 = vld [vmem:[%s0 + $0x100] sm:$0xff]
    %v51 = vld [vmem:[%s0 + $0x108] sm:$0xff]
    %v52 = vld [vmem:[%s0 + $0x110] sm:$0xff]
    %v53 = vld [vmem:[%s0 + $0x118] sm:$0xff]
    %v54 = vld [vmem:[%s0 + $0x120] sm:$0xff]
    %v55 = vld [vmem:[%s0 + $0x128] sm:$0xff]
    %v56 = vld [vmem:[%s0 + $0x130] sm:$0xff]
    %v57 = vld [vmem:[%s0 + $0x138] sm:$0xff]
    %v58 = vld [vmem:[%s0 + $0x140] sm:$0xff]
    %v59 = vld [vmem:[%s0 + $0x148] sm:$0xff]
    %v60 = vld [vmem:[%s0 + $0x150] sm:$0xff]
    %v61 = vld [vmem:[%s0 + $0x158] sm:$0xff]
    %v62 = vld [vmem:[%s0 + $0x160] sm:$0xff]
    %v63 = vld [vmem:[%s0 + $0x168] sm:$0xff]
    %v64 = vld [vmem:[%s0 + $0x170] sm:$0xff]
    %v65 = vld [vmem:[%s0 + $0x178] sm:$0xff]
    %v66 = vld [vmem:[%s0 + $0x180] sm:$0xff]
    %v67 = vld [vmem:[%s0 + $0x188] sm:$0xff]
    %v68 = vld [vmem:[%s0 + $0x190] sm:$0xff]
    %v69 = vld [vmem:[%s0 + $0x198] sm:$0xff]
    %v70 = vld [vmem:[%s0 + $0x1a0] sm:$0xff]
    %v71 = vld [vmem:[%s0 + $0x1a8] sm:$0xff]
    %v72 = vld [vmem:[%s0 + $0x1b0] sm:$0xff]
    %v73 = vld [vmem:[%s0 + $0x1b8] sm:$0xff]
    %v74 = vld [vmem:[%s0 + $0x1c0] sm:$0xff]
    %v75 = vld [vmem:[%s0 + $0x1c8] sm:$0xff]
    %v76 = vld [vmem:[%s0 + $0x1d0] sm:$0xff]
    %v77 = vld [vmem:[%s0 + $0x1d8] sm:$0xff]
    %v78 = vld [vmem:[%s0 + $0x1e0] sm:$0xff]
    %v79 = vld [vmem:[%s0 + $0x1e8] sm:$0xff]
    %v80 = vld [vmem:[%s0 + $0x1f0] sm:$0xff]
    %v81 = vld [vmem:[%s0 + $0x1f8] sm:$0xff]
    %v82 = vld [vmem:[%s1] sm:$0x1]
    %v84 = vperm.slane %v82, 0
    %v86 = vmul.f32 %v18, %v84
    %v87 = vmul.f32 %v19, %v84
    %v88 = vmul.f32 %v20, %v84
    %v89 = vmul.f32 %v21, %v84
    %v90 = vmul.f32 %v22, %v84
    %v91 = vmul.f32 %v23, %v84
    %v92 = vmul.f32 %v24, %v84
    %v93 = vmul.f32 %v25, %v84
    %v94 = vmul.f32 %v26, %v84
    %v95 = vmul.f32 %v27, %v84
    %v96 = vmul.f32 %v28, %v84
    %v97 = vmul.f32 %v29, %v84
    %v98 = vmul.f32 %v30, %v84
    %v99 = vmul.f32 %v31, %v84
    %v100 = vmul.f32 %v32, %v84
    %v101 = vmul.f32 %v33, %v84
    %v102 = vmul.f32 %v34, %v84
    %v103 = vmul.f32 %v35, %v84
    %v104 = vmul.f32 %v36, %v84
    %v105 = vmul.f32 %v37, %v84
    %v106 = vmul.f32 %v38, %v84
    %v107 = vmul.f32 %v39, %v84
    %v108 = vmul.f32 %v40, %v84
    %v109 = vmul.f32 %v41, %v84
    %v110 = vmul.f32 %v42, %v84
    %v111 = vmul.f32 %v43, %v84
    %v112 = vmul.f32 %v44, %v84
    %v113 = vmul.f32 %v45, %v84
    %v114 = vmul.f32 %v46, %v84
    %v115 = vmul.f32 %v47, %v84
    %v116 = vmul.f32 %v48, %v84
    %v117 = vmul.f32 %v49, %v84
    %v118 = vmul.f32 %v50, %v84
    %v119 = vmul.f32 %v51, %v84
    %v120 = vmul.f32 %v52, %v84
    %v121 = vmul.f32 %v53, %v84
    %v122 = vmul.f32 %v54, %v84
    %v123 = vmul.f32 %v55, %v84
    %v124 = vmul.f32 %v56, %v84
    %v125 = vmul.f32 %v57, %v84
    %v126 = vmul.f32 %v58, %v84
    %v127 = vmul.f32 %v59, %v84
    %v128 = vmul.f32 %v60, %v84
    %v129 = vmul.f32 %v61, %v84
    %v130 = vmul.f32 %v62, %v84
    %v131 = vmul.f32 %v63, %v84
    %v132 = vmul.f32 %v64, %v84
    %v133 = vmul.f32 %v65, %v84
    %v134 = vmul.f32 %v66, %v84
    %v135 = vmul.f32 %v67, %v84
    %v136 = vmul.f32 %v68, %v84
    %v137 = vmul.f32 %v69, %v84
    %v138 = vmul.f32 %v70, %v84
    %v139 = vmul.f32 %v71, %v84
    %v140 = vmul.f32 %v72, %v84
    %v141 = vmul.f32 %v73, %v84
    %v142 = vmul.f32 %v74, %v84
    %v143 = vmul.f32 %v75, %v84
    %v144 = vmul.f32 %v76, %v84
    %v145 = vmul.f32 %v77, %v84
    %v146 = vmul.f32 %v78, %v84
    %v147 = vmul.f32 %v79, %v84
    %v148 = vmul.f32 %v80, %v84
    %v149 = vmul.f32 %v81, %v84
    %v150 = vld [vmem:[%s2] sm:$0x1]
    %v152 = vperm.slane %v150, 0
    %v154 = vadd.f32 %v86, %v152
    %v155 = vadd.f32 %v87, %v152
    %v156 = vadd.f32 %v88, %v152
    %v157 = vadd.f32 %v89, %v152
    %v158 = vadd.f32 %v90, %v152
    %v159 = vadd.f32 %v91, %v152
    %v160 = vadd.f32 %v92, %v152
    %v161 = vadd.f32 %v93, %v152
    %v162 = vadd.f32 %v94, %v152
    %v163 = vadd.f32 %v95, %v152
    %v164 = vadd.f32 %v96, %v152
    %v165 = vadd.f32 %v97, %v152
    %v166 = vadd.f32 %v98, %v152
    %v167 = vadd.f32 %v99, %v152
    %v168 = vadd.f32 %v100, %v152
    %v169 = vadd.f32 %v101, %v152
    %v170 = vadd.f32 %v102, %v152
    %v171 = vadd.f32 %v103, %v152
    %v172 = vadd.f32 %v104, %v152
    %v173 = vadd.f32 %v105, %v152
    %v174 = vadd.f32 %v106, %v152
    %v175 = vadd.f32 %v107, %v152
    %v176 = vadd.f32 %v108, %v152
    %v177 = vadd.f32 %v109, %v152
    %v178 = vadd.f32 %v110, %v152
    %v179 = vadd.f32 %v111, %v152
    %v180 = vadd.f32 %v112, %v152
    %v181 = vadd.f32 %v113, %v152
    %v182 = vadd.f32 %v114, %v152
    %v183 = vadd.f32 %v115, %v152
    %v184 = vadd.f32 %v116, %v152
    %v185 = vadd.f32 %v117, %v152
    %v186 = vadd.f32 %v118, %v152
    %v187 = vadd.f32 %v119, %v152
    %v188 = vadd.f32 %v120, %v152
    %v189 = vadd.f32 %v121, %v152
    %v190 = vadd.f32 %v122, %v152
    %v191 = vadd.f32 %v123, %v152
    %v192 = vadd.f32 %v124, %v152
    %v193 = vadd.f32 %v125, %v152
    %v194 = vadd.f32 %v126, %v152
    %v195 = vadd.f32 %v127, %v152
    %v196 = vadd.f32 %v128, %v152
    %v197 = vadd.f32 %v129, %v152
    %v198 = vadd.f32 %v130, %v152
    %v199 = vadd.f32 %v131, %v152
    %v200 = vadd.f32 %v132, %v152
    %v201 = vadd.f32 %v133, %v152
    %v202 = vadd.f32 %v134, %v152
    %v203 = vadd.f32 %v135, %v152
    %v204 = vadd.f32 %v136, %v152
    %v205 = vadd.f32 %v137, %v152
    %v206 = vadd.f32 %v138, %v152
    %v207 = vadd.f32 %v139, %v152
    %v208 = vadd.f32 %v140, %v152
    %v209 = vadd.f32 %v141, %v152
    %v210 = vadd.f32 %v142, %v152
    %v211 = vadd.f32 %v143, %v152
    %v212 = vadd.f32 %v144, %v152
    %v213 = vadd.f32 %v145, %v152
    %v214 = vadd.f32 %v146, %v152
    %v215 = vadd.f32 %v147, %v152
    %v216 = vadd.f32 %v148, %v152
    %v217 = vadd.f32 %v149, %v152
    %v218 = vld [vmem:[%s3] sm:$0xff]
    %v219 = vld [vmem:[%s3 + $0x8] sm:$0xff]
    %v220 = vld [vmem:[%s3 + $0x10] sm:$0xff]
    %v221 = vld [vmem:[%s3 + $0x18] sm:$0xff]
    %v222 = vld [vmem:[%s3 + $0x20] sm:$0xff]
    %v223 = vld [vmem:[%s3 + $0x28] sm:$0xff]
    %v224 = vld [vmem:[%s3 + $0x30] sm:$0xff]
    %v225 = vld [vmem:[%s3 + $0x38] sm:$0xff]
    %v226 = vld [vmem:[%s3 + $0x40] sm:$0xff]
    %v227 = vld [vmem:[%s3 + $0x48] sm:$0xff]
    %v228 = vld [vmem:[%s3 + $0x50] sm:$0xff]
    %v229 = vld [vmem:[%s3 + $0x58] sm:$0xff]
    %v230 = vld [vmem:[%s3 + $0x60] sm:$0xff]
    %v231 = vld [vmem:[%s3 + $0x68] sm:$0xff]
    %v232 = vld [vmem:[%s3 + $0x70] sm:$0xff]
    %v233 = vld [vmem:[%s3 + $0x78] sm:$0xff]
    %v234 = vld [vmem:[%s3 + $0x80] sm:$0xff]
    %v235 = vld [vmem:[%s3 + $0x88] sm:$0xff]
    %v236 = vld [vmem:[%s3 + $0x90] sm:$0xff]
    %v237 = vld [vmem:[%s3 + $0x98] sm:$0xff]
    %v238 = vld [vmem:[%s3 + $0xa0] sm:$0xff]
    %v239 = vld [vmem:[%s3 + $0xa8] sm:$0xff]
    %v240 = vld [vmem:[%s3 + $0xb0] sm:$0xff]
    %v241 = vld [vmem:[%s3 + $0xb8] sm:$0xff]
    %v242 = vld [vmem:[%s3 + $0xc0] sm:$0xff]
    %v243 = vld [vmem:[%s3 + $0xc8] sm:$0xff]
    %v244 = vld [vmem:[%s3 + $0xd0] sm:$0xff]
    %v245 = vld [vmem:[%s3 + $0xd8] sm:$0xff]
    %v246 = vld [vmem:[%s3 + $0xe0] sm:$0xff]
    %v247 = vld [vmem:[%s3 + $0xe8] sm:$0xff]
    %v248 = vld [vmem:[%s3 + $0xf0] sm:$0xff]
    %v249 = vld [vmem:[%s3 + $0xf8] sm:$0xff]
    %v250 = vld [vmem:[%s3 + $0x100] sm:$0xff]
    %v251 = vld [vmem:[%s3 + $0x108] sm:$0xff]
    %v252 = vld [vmem:[%s3 + $0x110] sm:$0xff]
    %v253 = vld [vmem:[%s3 + $0x118] sm:$0xff]
    %v254 = vld [vmem:[%s3 + $0x120] sm:$0xff]
    %v255 = vld [vmem:[%s3 + $0x128] sm:$0xff]
    %v256 = vld [vmem:[%s3 + $0x130] sm:$0xff]
    %v257 = vld [vmem:[%s3 + $0x138] sm:$0xff]
    %v258 = vld [vmem:[%s3 + $0x140] sm:$0xff]
    %v259 = vld [vmem:[%s3 + $0x148] sm:$0xff]
    %v260 = vld [vmem:[%s3 + $0x150] sm:$0xff]
    %v261 = vld [vmem:[%s3 + $0x158] sm:$0xff]
    %v262 = vld [vmem:[%s3 + $0x160] sm:$0xff]
    %v263 = vld [vmem:[%s3 + $0x168] sm:$0xff]
    %v264 = vld [vmem:[%s3 + $0x170] sm:$0xff]
    %v265 = vld [vmem:[%s3 + $0x178] sm:$0xff]
    %v266 = vld [vmem:[%s3 + $0x180] sm:$0xff]
    %v267 = vld [vmem:[%s3 + $0x188] sm:$0xff]
    %v268 = vld [vmem:[%s3 + $0x190] sm:$0xff]
    %v269 = vld [vmem:[%s3 + $0x198] sm:$0xff]
    %v270 = vld [vmem:[%s3 + $0x1a0] sm:$0xff]
    %v271 = vld [vmem:[%s3 + $0x1a8] sm:$0xff]
    %v272 = vld [vmem:[%s3 + $0x1b0] sm:$0xff]
    %v273 = vld [vmem:[%s3 + $0x1b8] sm:$0xff]
    %v274 = vld [vmem:[%s3 + $0x1c0] sm:$0xff]
    %v275 = vld [vmem:[%s3 + $0x1c8] sm:$0xff]
    %v276 = vld [vmem:[%s3 + $0x1d0] sm:$0xff]
    %v277 = vld [vmem:[%s3 + $0x1d8] sm:$0xff]
    %v278 = vld [vmem:[%s3 + $0x1e0] sm:$0xff]
    %v279 = vld [vmem:[%s3 + $0x1e8] sm:$0xff]
    %v280 = vld [vmem:[%s3 + $0x1f0] sm:$0xff]
    %v281 = vld [vmem:[%s3 + $0x1f8] sm:$0xff]
    %v282 = vadd.f32 %v154, %v218
    %v283 = vadd.f32 %v155, %v219
    %v284 = vadd.f32 %v156, %v220
    %v285 = vadd.f32 %v157, %v221
    %v286 = vadd.f32 %v158, %v222
    %v287 = vadd.f32 %v159, %v223
    %v288 = vadd.f32 %v160, %v224
    %v289 = vadd.f32 %v161, %v225
    %v290 = vadd.f32 %v162, %v226
    %v291 = vadd.f32 %v163, %v227
    %v292 = vadd.f32 %v164, %v228
    %v293 = vadd.f32 %v165, %v229
    %v294 = vadd.f32 %v166, %v230
    %v295 = vadd.f32 %v167, %v231
    %v296 = vadd.f32 %v168, %v232
    %v297 = vadd.f32 %v169, %v233
    %v298 = vadd.f32 %v170, %v234
    %v299 = vadd.f32 %v171, %v235
    %v300 = vadd.f32 %v172, %v236
    %v301 = vadd.f32 %v173, %v237
    %v302 = vadd.f32 %v174, %v238
    %v303 = vadd.f32 %v175, %v239
    %v304 = vadd.f32 %v176, %v240
    %v305 = vadd.f32 %v177, %v241
    %v306 = vadd.f32 %v178, %v242
    %v307 = vadd.f32 %v179, %v243
    %v308 = vadd.f32 %v180, %v244
    %v309 = vadd.f32 %v181, %v245
    %v310 = vadd.f32 %v182, %v246
    %v311 = vadd.f32 %v183, %v247
    %v312 = vadd.f32 %v184, %v248
    %v313 = vadd.f32 %v185, %v249
    %v314 = vadd.f32 %v186, %v250
    %v315 = vadd.f32 %v187, %v251
    %v316 = vadd.f32 %v188, %v252
    %v317 = vadd.f32 %v189, %v253
    %v318 = vadd.f32 %v190, %v254
    %v319 = vadd.f32 %v191, %v255
    %v320 = vadd.f32 %v192, %v256
    %v321 = vadd.f32 %v193, %v257
    %v322 = vadd.f32 %v194, %v258
    %v323 = vadd.f32 %v195, %v259
    %v324 = vadd.f32 %v196, %v260
    %v325 = vadd.f32 %v197, %v261
    %v326 = vadd.f32 %v198, %v262
    %v327 = vadd.f32 %v199, %v263
    %v328 = vadd.f32 %v200, %v264
    %v329 = vadd.f32 %v201, %v265
    %v330 = vadd.f32 %v202, %v266
    %v331 = vadd.f32 %v203, %v267
    %v332 = vadd.f32 %v204, %v268
    %v333 = vadd.f32 %v205, %v269
    %v334 = vadd.f32 %v206, %v270
    %v335 = vadd.f32 %v207, %v271
    %v336 = vadd.f32 %v208, %v272
    %v337 = vadd.f32 %v209, %v273
    %v338 = vadd.f32 %v210, %v274
    %v339 = vadd.f32 %v211, %v275
    %v340 = vadd.f32 %v212, %v276
    %v341 = vadd.f32 %v213, %v277
    %v342 = vadd.f32 %v214, %v278
    %v343 = vadd.f32 %v215, %v279
    %v344 = vadd.f32 %v216, %v280
    %v345 = vadd.f32 %v217, %v281
    %v346 = vmax.f32 %v282, 0.0
    %v347 = vmax.f32 %v283, 0.0
    %v348 = vmax.f32 %v284, 0.0
    %v349 = vmax.f32 %v285, 0.0
    %v350 = vmax.f32 %v286, 0.0
    %v351 = vmax.f32 %v287, 0.0
    %v352 = vmax.f32 %v288, 0.0
    %v353 = vmax.f32 %v289, 0.0
    %v354 = vmax.f32 %v290, 0.0
    %v355 = vmax.f32 %v291, 0.0
    %v356 = vmax.f32 %v292, 0.0
    %v357 = vmax.f32 %v293, 0.0
    %v358 = vmax.f32 %v294, 0.0
    %v359 = vmax.f32 %v295, 0.0
    %v360 = vmax.f32 %v296, 0.0
    %v361 = vmax.f32 %v297, 0.0
    %v362 = vmax.f32 %v298, 0.0
    %v363 = vmax.f32 %v299, 0.0
    %v364 = vmax.f32 %v300, 0.0
    %v365 = vmax.f32 %v301, 0.0
    %v366 = vmax.f32 %v302, 0.0
    %v367 = vmax.f32 %v303, 0.0
    %v368 = vmax.f32 %v304, 0.0
    %v369 = vmax.f32 %v305, 0.0
    %v370 = vmax.f32 %v306, 0.0
    %v371 = vmax.f32 %v307, 0.0
    %v372 = vmax.f32 %v308, 0.0
    %v373 = vmax.f32 %v309, 0.0
    %v374 = vmax.f32 %v310, 0.0
    %v375 = vmax.f32 %v311, 0.0
    %v376 = vmax.f32 %v312, 0.0
    %v377 = vmax.f32 %v313, 0.0
    %v378 = vmax.f32 %v314, 0.0
    %v379 = vmax.f32 %v315, 0.0
    %v380 = vmax.f32 %v316, 0.0
    %v381 = vmax.f32 %v317, 0.0
    %v382 = vmax.f32 %v318, 0.0
    %v383 = vmax.f32 %v319, 0.0
    %v384 = vmax.f32 %v320, 0.0
    %v385 = vmax.f32 %v321, 0.0
    %v386 = vmax.f32 %v322, 0.0
    %v387 = vmax.f32 %v323, 0.0
    %v388 = vmax.f32 %v324, 0.0
    %v389 = vmax.f32 %v325, 0.0
    %v390 = vmax.f32 %v326, 0.0
    %v391 = vmax.f32 %v327, 0.0
    %v392 = vmax.f32 %v328, 0.0
    %v393 = vmax.f32 %v329, 0.0
    %v394 = vmax.f32 %v330, 0.0
    %v395 = vmax.f32 %v331, 0.0
    %v396 = vmax.f32 %v332, 0.0
    %v397 = vmax.f32 %v333, 0.0
    %v398 = vmax.f32 %v334, 0.0
    %v399 = vmax.f32 %v335, 0.0
    %v400 = vmax.f32 %v336, 0.0
    %v401 = vmax.f32 %v337, 0.0
    %v402 = vmax.f32 %v338, 0.0
    %v403 = vmax.f32 %v339, 0.0
    %v404 = vmax.f32 %v340, 0.0
    %v405 = vmax.f32 %v341, 0.0
    %v406 = vmax.f32 %v342, 0.0
    %v407 = vmax.f32 %v343, 0.0
    %v408 = vmax.f32 %v344, 0.0
    %v409 = vmax.f32 %v345, 0.0
    %410 = vst [vmem:[#allocation2] sm:$0xff] %v346
    %411 = vst [vmem:[#allocation2 + $0x8] sm:$0xff] %v347
    %412 = vst [vmem:[#allocation2 + $0x10] sm:$0xff] %v348
    %413 = vst [vmem:[#allocation2 + $0x18] sm:$0xff] %v349
    %414 = vst [vmem:[#allocation2 + $0x20] sm:$0xff] %v350
    %415 = vst [vmem:[#allocation2 + $0x28] sm:$0xff] %v351
    %416 = vst [vmem:[#allocation2 + $0x30] sm:$0xff] %v352
    %417 = vst [vmem:[#allocation2 + $0x38] sm:$0xff] %v353
    %418 = vst [vmem:[#allocation2 + $0x40] sm:$0xff] %v354
    %419 = vst [vmem:[#allocation2 + $0x48] sm:$0xff] %v355
    %420 = vst [vmem:[#allocation2 + $0x50] sm:$0xff] %v356
    %421 = vst [vmem:[#allocation2 + $0x58] sm:$0xff] %v357
    %422 = vst [vmem:[#allocation2 + $0x60] sm:$0xff] %v358
    %423 = vst [vmem:[#allocation2 + $0x68] sm:$0xff] %v359
    %424 = vst [vmem:[#allocation2 + $0x70] sm:$0xff] %v360
    %425 = vst [vmem:[#allocation2 + $0x78] sm:$0xff] %v361
    %426 = vst [vmem:[#allocation2 + $0x80] sm:$0xff] %v362
    %427 = vst [vmem:[#allocation2 + $0x88] sm:$0xff] %v363
    %428 = vst [vmem:[#allocation2 + $0x90] sm:$0xff] %v364
    %429 = vst [vmem:[#allocation2 + $0x98] sm:$0xff] %v365
    %430 = vst [vmem:[#allocation2 + $0xa0] sm:$0xff] %v366
    %431 = vst [vmem:[#allocation2 + $0xa8] sm:$0xff] %v367
    %432 = vst [vmem:[#allocation2 + $0xb0] sm:$0xff] %v368
    %433 = vst [vmem:[#allocation2 + $0xb8] sm:$0xff] %v369
    %434 = vst [vmem:[#allocation2 + $0xc0] sm:$0xff] %v370
    %435 = vst [vmem:[#allocation2 + $0xc8] sm:$0xff] %v371
    %436 = vst [vmem:[#allocation2 + $0xd0] sm:$0xff] %v372
    %437 = vst [vmem:[#allocation2 + $0xd8] sm:$0xff] %v373
    %438 = vst [vmem:[#allocation2 + $0xe0] sm:$0xff] %v374
    %439 = vst [vmem:[#allocation2 + $0xe8] sm:$0xff] %v375
    %440 = vst [vmem:[#allocation2 + $0xf0] sm:$0xff] %v376
    %441 = vst [vmem:[#allocation2 + $0xf8] sm:$0xff] %v377
    %442 = vst [vmem:[#allocation2 + $0x100] sm:$0xff] %v378
    %443 = vst [vmem:[#allocation2 + $0x108] sm:$0xff] %v379
    %444 = vst [vmem:[#allocation2 + $0x110] sm:$0xff] %v380
    %445 = vst [vmem:[#allocation2 + $0x118] sm:$0xff] %v381
    %446 = vst [vmem:[#allocation2 + $0x120] sm:$0xff] %v382
    %447 = vst [vmem:[#allocation2 + $0x128] sm:$0xff] %v383
    %448 = vst [vmem:[#allocation2 + $0x130] sm:$0xff] %v384
    %449 = vst [vmem:[#allocation2 + $0x138] sm:$0xff] %v385
    %450 = vst [vmem:[#allocation2 + $0x140] sm:$0xff] %v386
    %451 = vst [vmem:[#allocation2 + $0x148] sm:$0xff] %v387
    %452 = vst [vmem:[#allocation2 + $0x150] sm:$0xff] %v388
    %453 = vst [vmem:[#allocation2 + $0x158] sm:$0xff] %v389
    %454 = vst [vmem:[#allocation2 + $0x160] sm:$0xff] %v390
    %455 = vst [vmem:[#allocation2 + $0x168] sm:$0xff] %v391
    %456 = vst [vmem:[#allocation2 + $0x170] sm:$0xff] %v392
    %457 = vst [vmem:[#allocation2 + $0x178] sm:$0xff] %v393
    %458 = vst [vmem:[#allocation2 + $0x180] sm:$0xff] %v394
    %459 = vst [vmem:[#allocation2 + $0x188] sm:$0xff] %v395
    %460 = vst [vmem:[#allocation2 + $0x190] sm:$0xff] %v396
    %461 = vst [vmem:[#allocation2 + $0x198] sm:$0xff] %v397
    %462 = vst [vmem:[#allocation2 + $0x1a0] sm:$0xff] %v398
    %463 = vst [vmem:[#allocation2 + $0x1a8] sm:$0xff] %v399
    %464 = vst [vmem:[#allocation2 + $0x1b0] sm:$0xff] %v400
    %465 = vst [vmem:[#allocation2 + $0x1b8] sm:$0xff] %v401
    %466 = vst [vmem:[#allocation2 + $0x1c0] sm:$0xff] %v402
    %467 = vst [vmem:[#allocation2 + $0x1c8] sm:$0xff] %v403
    %468 = vst [vmem:[#allocation2 + $0x1d0] sm:$0xff] %v404
    %469 = vst [vmem:[#allocation2 + $0x1d8] sm:$0xff] %v405
    %470 = vst [vmem:[#allocation2 + $0x1e0] sm:$0xff] %v406
    %471 = vst [vmem:[#allocation2 + $0x1e8] sm:$0xff] %v407
    %472 = vst [vmem:[#allocation2 + $0x1f0] sm:$0xff] %v408
    %473 = vst [vmem:[#allocation2 + $0x1f8] sm:$0xff] %v409
    // Predicated region
    $region18: #{bottleneck_forward.7} parent=1 // pred_check
      _
    $region19: #{bottleneck_forward.7} parent=1 // pred_check_branch
      %475 = sbr.rel (0) target = $region21
    $region20: #{bottleneck_forward.7} parent=1 // pred_region
      %477 = vsyncadd [#allocation3], 0
      %s478 = sshll.u32 [#allocation2], 4
      %s479 = int_to_ptr.vmem [resolvable:$true] %s478
      %s480 = sshll.u32 %s4, 4
      %s481 = int_to_ptr.hbm [resolvable:$true] %s480
      %486 = dma.vmem_to_hbm [thread:$0]  %s479, 8192, %s481, [#allocation3], 128, 128, 8
    $region21: #{bottleneck_forward.7} parent=1 // pred_fallthru
      _
    // Predicated region
    $region22: #{bottleneck_forward.7} parent=1 // pred_check
      _
    $region23: #{bottleneck_forward.7} parent=1 // pred_check_branch
      %488 = sbr.rel (0) target = $region25
    $region24: #{bottleneck_forward.7} parent=1 // pred_region
      %490 = dma.done [#allocation3], 8192
    $region25: #{bottleneck_forward.7} parent=1 // pred_fallthru
      _
    %491 = vsyncpa [#allocation3], 1

// kernel: bottleneck_forward.6
$region0: #{bottleneck_forward.6}
  #allocation0 [shape = 'u32[]', space=smem, size = 0x4, offset = 0x4, fixed_abs, tag = 'smem constant byte address 0x4 - core index']
  #allocation1 [shape = 'u32[72,128]{1,0:T(1,128)}', space=vmem, size = 0x9000, scoped, tag = 'internal scratch']
  %s0 = inlined_call_operand.vmem [shape: f32[512,32], index: 0, kind: input, shape index: {}]
  %s1 = inlined_call_operand.vmem [shape: f32[1,32], index: 1, kind: input, shape index: {}]
  %s2 = inlined_call_operand.vmem [shape: f32[1,32], index: 2, kind: input, shape index: {}]
  %s3 = inlined_call_operand.vmem [shape: f32[32,128], index: 3, kind: input, shape index: {}]
  %s4 = inlined_call_operand.vmem [shape: f32[512,128], index: 4, kind: output, shape index: {0}]
  %s5 = inlined_call_operand.vmem [shape: f32[1,1,128], index: 5, kind: output, shape index: {1}]
  %s6 = inlined_call_operand.vmem [shape: f32[1,1,128], index: 6, kind: output, shape index: {2}]
  %7 = xla_tuple %s4, %s5, %s6
  %s8 = sld [smem:[#allocation0]]
  $region42: #{bottleneck_forward.6} parent=0
    _
  %s10 = ssub.s32 1, %s8
  %s11 = scalar_select 0, %s10, %s8
  // Predicated region
  $region2: #{bottleneck_forward.6} parent=0 // pred_check
    _
  $region3: #{bottleneck_forward.6} parent=0 // pred_check_branch
    %13 = sbr.rel (0) target = $region5
  $region4: #{bottleneck_forward.6} parent=0 // pred_region
    _
  $region5: #{bottleneck_forward.6} parent=0 // pred_fallthru
    _
  // Predicated region
  $region6: #{bottleneck_forward.6} parent=0 // pred_check
    _
  $region7: #{bottleneck_forward.6} parent=0 // pred_check_branch
    %15 = sbr.rel (0) target = $region9
  $region8: #{bottleneck_forward.6} parent=0 // pred_region
    _
  $region9: #{bottleneck_forward.6} parent=0 // pred_fallthru
    _
  // Predicated region
  $region10: #{bottleneck_forward.6} parent=0 // pred_check
    _
  $region11: #{bottleneck_forward.6} parent=0 // pred_check_branch
    %17 = sbr.rel (0) target = $region13
  $region12: #{bottleneck_forward.6} parent=0 // pred_region
    _
  $region13: #{bottleneck_forward.6} parent=0 // pred_fallthru
    _
  // Predicated region
  $region14: #{bottleneck_forward.6} parent=0 // pred_check
    _
  $region15: #{bottleneck_forward.6} parent=0 // pred_check_branch
    %19 = sbr.rel (0) target = $region17
  $region16: #{bottleneck_forward.6} parent=0 // pred_region
    _
  $region17: #{bottleneck_forward.6} parent=0 // pred_fallthru
    _
  %v20 = vld [vmem:[%s0] sm:$0xff]
  %v21 = vld [vmem:[%s0 + $0x8] sm:$0xff]
  %v22 = vld [vmem:[%s0 + $0x10] sm:$0xff]
  %v23 = vld [vmem:[%s0 + $0x18] sm:$0xff]
  %v24 = vld [vmem:[%s0 + $0x20] sm:$0xff]
  %v25 = vld [vmem:[%s0 + $0x28] sm:$0xff]
  %v26 = vld [vmem:[%s0 + $0x30] sm:$0xff]
  %v27 = vld [vmem:[%s0 + $0x38] sm:$0xff]
  %v28 = vld [vmem:[%s0 + $0x40] sm:$0xff]
  %v29 = vld [vmem:[%s0 + $0x48] sm:$0xff]
  %v30 = vld [vmem:[%s0 + $0x50] sm:$0xff]
  %v31 = vld [vmem:[%s0 + $0x58] sm:$0xff]
  %v32 = vld [vmem:[%s0 + $0x60] sm:$0xff]
  %v33 = vld [vmem:[%s0 + $0x68] sm:$0xff]
  %v34 = vld [vmem:[%s0 + $0x70] sm:$0xff]
  %v35 = vld [vmem:[%s0 + $0x78] sm:$0xff]
  %v36 = vld [vmem:[%s0 + $0x80] sm:$0xff]
  %v37 = vld [vmem:[%s0 + $0x88] sm:$0xff]
  %v38 = vld [vmem:[%s0 + $0x90] sm:$0xff]
  %v39 = vld [vmem:[%s0 + $0x98] sm:$0xff]
  %v40 = vld [vmem:[%s0 + $0xa0] sm:$0xff]
  %v41 = vld [vmem:[%s0 + $0xa8] sm:$0xff]
  %v42 = vld [vmem:[%s0 + $0xb0] sm:$0xff]
  %v43 = vld [vmem:[%s0 + $0xb8] sm:$0xff]
  %v44 = vld [vmem:[%s0 + $0xc0] sm:$0xff]
  %v45 = vld [vmem:[%s0 + $0xc8] sm:$0xff]
  %v46 = vld [vmem:[%s0 + $0xd0] sm:$0xff]
  %v47 = vld [vmem:[%s0 + $0xd8] sm:$0xff]
  %v48 = vld [vmem:[%s0 + $0xe0] sm:$0xff]
  %v49 = vld [vmem:[%s0 + $0xe8] sm:$0xff]
  %v50 = vld [vmem:[%s0 + $0xf0] sm:$0xff]
  %v51 = vld [vmem:[%s0 + $0xf8] sm:$0xff]
  %v52 = vld [vmem:[%s0 + $0x100] sm:$0xff]
  %v53 = vld [vmem:[%s0 + $0x108] sm:$0xff]
  %v54 = vld [vmem:[%s0 + $0x110] sm:$0xff]
  %v55 = vld [vmem:[%s0 + $0x118] sm:$0xff]
  %v56 = vld [vmem:[%s0 + $0x120] sm:$0xff]
  %v57 = vld [vmem:[%s0 + $0x128] sm:$0xff]
  %v58 = vld [vmem:[%s0 + $0x130] sm:$0xff]
  %v59 = vld [vmem:[%s0 + $0x138] sm:$0xff]
  %v60 = vld [vmem:[%s0 + $0x140] sm:$0xff]
  %v61 = vld [vmem:[%s0 + $0x148] sm:$0xff]
  %v62 = vld [vmem:[%s0 + $0x150] sm:$0xff]
  %v63 = vld [vmem:[%s0 + $0x158] sm:$0xff]
  %v64 = vld [vmem:[%s0 + $0x160] sm:$0xff]
  %v65 = vld [vmem:[%s0 + $0x168] sm:$0xff]
  %v66 = vld [vmem:[%s0 + $0x170] sm:$0xff]
  %v67 = vld [vmem:[%s0 + $0x178] sm:$0xff]
  %v68 = vld [vmem:[%s0 + $0x180] sm:$0xff]
  %v69 = vld [vmem:[%s0 + $0x188] sm:$0xff]
  %v70 = vld [vmem:[%s0 + $0x190] sm:$0xff]
  %v71 = vld [vmem:[%s0 + $0x198] sm:$0xff]
  %v72 = vld [vmem:[%s0 + $0x1a0] sm:$0xff]
  %v73 = vld [vmem:[%s0 + $0x1a8] sm:$0xff]
  %v74 = vld [vmem:[%s0 + $0x1b0] sm:$0xff]
  %v75 = vld [vmem:[%s0 + $0x1b8] sm:$0xff]
  %v76 = vld [vmem:[%s0 + $0x1c0] sm:$0xff]
  %v77 = vld [vmem:[%s0 + $0x1c8] sm:$0xff]
  %v78 = vld [vmem:[%s0 + $0x1d0] sm:$0xff]
  %v79 = vld [vmem:[%s0 + $0x1d8] sm:$0xff]
  %v80 = vld [vmem:[%s0 + $0x1e0] sm:$0xff]
  %v81 = vld [vmem:[%s0 + $0x1e8] sm:$0xff]
  %v82 = vld [vmem:[%s0 + $0x1f0] sm:$0xff]
  %v83 = vld [vmem:[%s0 + $0x1f8] sm:$0xff]
  %v84 = vld [vmem:[%s1] sm:$0x1]
  %v86 = vperm.slane %v84, 0
  %v88 = vmul.f32 %v20, %v86
  %v89 = vmul.f32 %v21, %v86
  %v90 = vmul.f32 %v22, %v86
  %v91 = vmul.f32 %v23, %v86
  %v92 = vmul.f32 %v24, %v86
  %v93 = vmul.f32 %v25, %v86
  %v94 = vmul.f32 %v26, %v86
  %v95 = vmul.f32 %v27, %v86
  %v96 = vmul.f32 %v28, %v86
  %v97 = vmul.f32 %v29, %v86
  %v98 = vmul.f32 %v30, %v86
  %v99 = vmul.f32 %v31, %v86
  %v100 = vmul.f32 %v32, %v86
  %v101 = vmul.f32 %v33, %v86
  %v102 = vmul.f32 %v34, %v86
  %v103 = vmul.f32 %v35, %v86
  %v104 = vmul.f32 %v36, %v86
  %v105 = vmul.f32 %v37, %v86
  %v106 = vmul.f32 %v38, %v86
  %v107 = vmul.f32 %v39, %v86
  %v108 = vmul.f32 %v40, %v86
  %v109 = vmul.f32 %v41, %v86
  %v110 = vmul.f32 %v42, %v86
  %v111 = vmul.f32 %v43, %v86
  %v112 = vmul.f32 %v44, %v86
  %v113 = vmul.f32 %v45, %v86
  %v114 = vmul.f32 %v46, %v86
  %v115 = vmul.f32 %v47, %v86
  %v116 = vmul.f32 %v48, %v86
  %v117 = vmul.f32 %v49, %v86
  %v118 = vmul.f32 %v50, %v86
  %v119 = vmul.f32 %v51, %v86
  %v120 = vmul.f32 %v52, %v86
  %v121 = vmul.f32 %v53, %v86
  %v122 = vmul.f32 %v54, %v86
  %v123 = vmul.f32 %v55, %v86
  %v124 = vmul.f32 %v56, %v86
  %v125 = vmul.f32 %v57, %v86
  %v126 = vmul.f32 %v58, %v86
  %v127 = vmul.f32 %v59, %v86
  %v128 = vmul.f32 %v60, %v86
  %v129 = vmul.f32 %v61, %v86
  %v130 = vmul.f32 %v62, %v86
  %v131 = vmul.f32 %v63, %v86
  %v132 = vmul.f32 %v64, %v86
  %v133 = vmul.f32 %v65, %v86
  %v134 = vmul.f32 %v66, %v86
  %v135 = vmul.f32 %v67, %v86
  %v136 = vmul.f32 %v68, %v86
  %v137 = vmul.f32 %v69, %v86
  %v138 = vmul.f32 %v70, %v86
  %v139 = vmul.f32 %v71, %v86
  %v140 = vmul.f32 %v72, %v86
  %v141 = vmul.f32 %v73, %v86
  %v142 = vmul.f32 %v74, %v86
  %v143 = vmul.f32 %v75, %v86
  %v144 = vmul.f32 %v76, %v86
  %v145 = vmul.f32 %v77, %v86
  %v146 = vmul.f32 %v78, %v86
  %v147 = vmul.f32 %v79, %v86
  %v148 = vmul.f32 %v80, %v86
  %v149 = vmul.f32 %v81, %v86
  %v150 = vmul.f32 %v82, %v86
  %v151 = vmul.f32 %v83, %v86
  %v152 = vld [vmem:[%s2] sm:$0x1]
  %v154 = vperm.slane %v152, 0
  %v156 = vadd.f32 %v88, %v154
  %v157 = vadd.f32 %v89, %v154
  %v158 = vadd.f32 %v90, %v154
  %v159 = vadd.f32 %v91, %v154
  %v160 = vadd.f32 %v92, %v154
  %v161 = vadd.f32 %v93, %v154
  %v162 = vadd.f32 %v94, %v154
  %v163 = vadd.f32 %v95, %v154
  %v164 = vadd.f32 %v96, %v154
  %v165 = vadd.f32 %v97, %v154
  %v166 = vadd.f32 %v98, %v154
  %v167 = vadd.f32 %v99, %v154
  %v168 = vadd.f32 %v100, %v154
  %v169 = vadd.f32 %v101, %v154
  %v170 = vadd.f32 %v102, %v154
  %v171 = vadd.f32 %v103, %v154
  %v172 = vadd.f32 %v104, %v154
  %v173 = vadd.f32 %v105, %v154
  %v174 = vadd.f32 %v106, %v154
  %v175 = vadd.f32 %v107, %v154
  %v176 = vadd.f32 %v108, %v154
  %v177 = vadd.f32 %v109, %v154
  %v178 = vadd.f32 %v110, %v154
  %v179 = vadd.f32 %v111, %v154
  %v180 = vadd.f32 %v112, %v154
  %v181 = vadd.f32 %v113, %v154
  %v182 = vadd.f32 %v114, %v154
  %v183 = vadd.f32 %v115, %v154
  %v184 = vadd.f32 %v116, %v154
  %v185 = vadd.f32 %v117, %v154
  %v186 = vadd.f32 %v118, %v154
  %v187 = vadd.f32 %v119, %v154
  %v188 = vadd.f32 %v120, %v154
  %v189 = vadd.f32 %v121, %v154
  %v190 = vadd.f32 %v122, %v154
  %v191 = vadd.f32 %v123, %v154
  %v192 = vadd.f32 %v124, %v154
  %v193 = vadd.f32 %v125, %v154
  %v194 = vadd.f32 %v126, %v154
  %v195 = vadd.f32 %v127, %v154
  %v196 = vadd.f32 %v128, %v154
  %v197 = vadd.f32 %v129, %v154
  %v198 = vadd.f32 %v130, %v154
  %v199 = vadd.f32 %v131, %v154
  %v200 = vadd.f32 %v132, %v154
  %v201 = vadd.f32 %v133, %v154
  %v202 = vadd.f32 %v134, %v154
  %v203 = vadd.f32 %v135, %v154
  %v204 = vadd.f32 %v136, %v154
  %v205 = vadd.f32 %v137, %v154
  %v206 = vadd.f32 %v138, %v154
  %v207 = vadd.f32 %v139, %v154
  %v208 = vadd.f32 %v140, %v154
  %v209 = vadd.f32 %v141, %v154
  %v210 = vadd.f32 %v142, %v154
  %v211 = vadd.f32 %v143, %v154
  %v212 = vadd.f32 %v144, %v154
  %v213 = vadd.f32 %v145, %v154
  %v214 = vadd.f32 %v146, %v154
  %v215 = vadd.f32 %v147, %v154
  %v216 = vadd.f32 %v148, %v154
  %v217 = vadd.f32 %v149, %v154
  %v218 = vadd.f32 %v150, %v154
  %v219 = vadd.f32 %v151, %v154
  %v220 = vmax.f32 %v156, 0.0
  %v221 = vmax.f32 %v157, 0.0
  %v222 = vmax.f32 %v158, 0.0
  %v223 = vmax.f32 %v159, 0.0
  %v224 = vmax.f32 %v160, 0.0
  %v225 = vmax.f32 %v161, 0.0
  %v226 = vmax.f32 %v162, 0.0
  %v227 = vmax.f32 %v163, 0.0
  %v228 = vmax.f32 %v164, 0.0
  %v229 = vmax.f32 %v165, 0.0
  %v230 = vmax.f32 %v166, 0.0
  %v231 = vmax.f32 %v167, 0.0
  %v232 = vmax.f32 %v168, 0.0
  %v233 = vmax.f32 %v169, 0.0
  %v234 = vmax.f32 %v170, 0.0
  %v235 = vmax.f32 %v171, 0.0
  %v236 = vmax.f32 %v172, 0.0
  %v237 = vmax.f32 %v173, 0.0
  %v238 = vmax.f32 %v174, 0.0
  %v239 = vmax.f32 %v175, 0.0
  %v240 = vmax.f32 %v176, 0.0
  %v241 = vmax.f32 %v177, 0.0
  %v242 = vmax.f32 %v178, 0.0
  %v243 = vmax.f32 %v179, 0.0
  %v244 = vmax.f32 %v180, 0.0
  %v245 = vmax.f32 %v181, 0.0
  %v246 = vmax.f32 %v182, 0.0
  %v247 = vmax.f32 %v183, 0.0
  %v248 = vmax.f32 %v184, 0.0
  %v249 = vmax.f32 %v185, 0.0
  %v250 = vmax.f32 %v186, 0.0
  %v251 = vmax.f32 %v187, 0.0
  %v252 = vmax.f32 %v188, 0.0
  %v253 = vmax.f32 %v189, 0.0
  %v254 = vmax.f32 %v190, 0.0
  %v255 = vmax.f32 %v191, 0.0
  %v256 = vmax.f32 %v192, 0.0
  %v257 = vmax.f32 %v193, 0.0
  %v258 = vmax.f32 %v194, 0.0
  %v259 = vmax.f32 %v195, 0.0
  %v260 = vmax.f32 %v196, 0.0
  %v261 = vmax.f32 %v197, 0.0
  %v262 = vmax.f32 %v198, 0.0
  %v263 = vmax.f32 %v199, 0.0
  %v264 = vmax.f32 %v200, 0.0
  %v265 = vmax.f32 %v201, 0.0
  %v266 = vmax.f32 %v202, 0.0
  %v267 = vmax.f32 %v203, 0.0
  %v268 = vmax.f32 %v204, 0.0
  %v269 = vmax.f32 %v205, 0.0
  %v270 = vmax.f32 %v206, 0.0
  %v271 = vmax.f32 %v207, 0.0
  %v272 = vmax.f32 %v208, 0.0
  %v273 = vmax.f32 %v209, 0.0
  %v274 = vmax.f32 %v210, 0.0
  %v275 = vmax.f32 %v211, 0.0
  %v276 = vmax.f32 %v212, 0.0
  %v277 = vmax.f32 %v213, 0.0
  %v278 = vmax.f32 %v214, 0.0
  %v279 = vmax.f32 %v215, 0.0
  %v280 = vmax.f32 %v216, 0.0
  %v281 = vmax.f32 %v217, 0.0
  %v282 = vmax.f32 %v218, 0.0
  %v283 = vmax.f32 %v219, 0.0
  %v284 = vld [vmem:[%s3] sm:$0xff]
  %v285 = vld [vmem:[%s3 + $0x8] sm:$0xff]
  %v286 = vld [vmem:[%s3 + $0x10] sm:$0xff]
  %v287 = vld [vmem:[%s3 + $0x18] sm:$0xff]
  %vm288 = vcmask 261120
  %v290 = vsel %vm288, %v220, 0
  %v293 = vsel %vm288, %v221, 0
  %v296 = vsel %vm288, %v222, 0
  %v299 = vsel %vm288, %v223, 0
  %v302 = vsel %vm288, %v224, 0
  %v305 = vsel %vm288, %v225, 0
  %v308 = vsel %vm288, %v226, 0
  %v311 = vsel %vm288, %v227, 0
  %v314 = vsel %vm288, %v228, 0
  %v317 = vsel %vm288, %v229, 0
  %v320 = vsel %vm288, %v230, 0
  %v323 = vsel %vm288, %v231, 0
  %v326 = vsel %vm288, %v232, 0
  %v329 = vsel %vm288, %v233, 0
  %v332 = vsel %vm288, %v234, 0
  %v335 = vsel %vm288, %v235, 0
  %v338 = vsel %vm288, %v236, 0
  %v341 = vsel %vm288, %v237, 0
  %v344 = vsel %vm288, %v238, 0
  %v347 = vsel %vm288, %v239, 0
  %v350 = vsel %vm288, %v240, 0
  %v353 = vsel %vm288, %v241, 0
  %v356 = vsel %vm288, %v242, 0
  %v359 = vsel %vm288, %v243, 0
  %v362 = vsel %vm288, %v244, 0
  %v365 = vsel %vm288, %v245, 0
  %v368 = vsel %vm288, %v246, 0
  %v371 = vsel %vm288, %v247, 0
  %v374 = vsel %vm288, %v248, 0
  %v377 = vsel %vm288, %v249, 0
  %v380 = vsel %vm288, %v250, 0
  %v383 = vsel %vm288, %v251, 0
  %v386 = vsel %vm288, %v252, 0
  %v389 = vsel %vm288, %v253, 0
  %v392 = vsel %vm288, %v254, 0
  %v395 = vsel %vm288, %v255, 0
  %v398 = vsel %vm288, %v256, 0
  %v401 = vsel %vm288, %v257, 0
  %v404 = vsel %vm288, %v258, 0
  %v407 = vsel %vm288, %v259, 0
  %v410 = vsel %vm288, %v260, 0
  %v413 = vsel %vm288, %v261, 0
  %v416 = vsel %vm288, %v262, 0
  %v419 = vsel %vm288, %v263, 0
  %v422 = vsel %vm288, %v264, 0
  %v425 = vsel %vm288, %v265, 0
  %v428 = vsel %vm288, %v266, 0
  %v431 = vsel %vm288, %v267, 0
  %v434 = vsel %vm288, %v268, 0
  %v437 = vsel %vm288, %v269, 0
  %v440 = vsel %vm288, %v270, 0
  %v443 = vsel %vm288, %v271, 0
  %v446 = vsel %vm288, %v272, 0
  %v449 = vsel %vm288, %v273, 0
  %v452 = vsel %vm288, %v274, 0
  %v455 = vsel %vm288, %v275, 0
  %v458 = vsel %vm288, %v276, 0
  %v461 = vsel %vm288, %v277, 0
  %v464 = vsel %vm288, %v278, 0
  %v467 = vsel %vm288, %v279, 0
  %v470 = vsel %vm288, %v280, 0
  %v473 = vsel %vm288, %v281, 0
  %v476 = vsel %vm288, %v282, 0
  %v479 = vsel %vm288, %v283, 0
  %481 = vmatpush.msra.mxu0 0.0
  %482 = vmatpush.msra.mxu0 0.0
  %483 = vmatpush.msra.mxu0 0.0
  %484 = vmatpush.msra.mxu0 0.0
  %485 = vmatpush.msra.mxu0 0.0
  %486 = vmatpush.msra.mxu0 0.0
  %487 = vmatpush.msra.mxu0 0.0
  %488 = vmatpush.msra.mxu0 0.0
  %489 = vmatpush.msra.mxu0 0.0
  %490 = vmatpush.msra.mxu0 0.0
  %491 = vmatpush.msra.mxu0 0.0
  %492 = vmatpush.msra.mxu0 0.0
  %493 = vmatpush.msra.mxu0 %v287
  %494 = vmatpush.msra.mxu0 %v286
  %495 = vmatpush.msra.mxu0 %v285
  %496 = vmatpush.msra.mxu0 %v284
  %497 = vmatmul.f32.gmra.mxu0 %v290
  %v498 = vpop.f32.mrf.mxu0
  %v499 = vadd.f32 0.0, %v498
  %500 = vmatmul.f32.gmra.mxu0 %v293
  %v501 = vpop.f32.mrf.mxu0
  %v502 = vadd.f32 0.0, %v501
  %503 = vmatmul.f32.gmra.mxu0 %v296
  %v504 = vpop.f32.mrf.mxu0
  %v505 = vadd.f32 0.0, %v504
  %506 = vmatmul.f32.gmra.mxu0 %v299
  %v507 = vpop.f32.mrf.mxu0
  %v508 = vadd.f32 0.0, %v507
  %509 = vmatmul.f32.gmra.mxu0 %v302
  %v510 = vpop.f32.mrf.mxu0
  %v511 = vadd.f32 0.0, %v510
  %512 = vmatmul.f32.gmra.mxu0 %v305
  %v513 = vpop.f32.mrf.mxu0
  %v514 = vadd.f32 0.0, %v513
  %515 = vmatmul.f32.gmra.mxu0 %v308
  %v516 = vpop.f32.mrf.mxu0
  %v517 = vadd.f32 0.0, %v516
  %518 = vmatmul.f32.gmra.mxu0 %v311
  %v519 = vpop.f32.mrf.mxu0
  %v520 = vadd.f32 0.0, %v519
  %521 = vmatmul.f32.gmra.mxu0 %v314
  %v522 = vpop.f32.mrf.mxu0
  %v523 = vadd.f32 0.0, %v522
  %524 = vmatmul.f32.gmra.mxu0 %v317
  %v525 = vpop.f32.mrf.mxu0
  %v526 = vadd.f32 0.0, %v525
  %527 = vmatmul.f32.gmra.mxu0 %v320
  %v528 = vpop.f32.mrf.mxu0
  %v529 = vadd.f32 0.0, %v528
  %530 = vmatmul.f32.gmra.mxu0 %v323
  %v531 = vpop.f32.mrf.mxu0
  %v532 = vadd.f32 0.0, %v531
  %533 = vmatmul.f32.gmra.mxu0 %v326
  %v534 = vpop.f32.mrf.mxu0
  %v535 = vadd.f32 0.0, %v534
  %536 = vmatmul.f32.gmra.mxu0 %v329
  %v537 = vpop.f32.mrf.mxu0
  %v538 = vadd.f32 0.0, %v537
  %539 = vmatmul.f32.gmra.mxu0 %v332
  %v540 = vpop.f32.mrf.mxu0
  %v541 = vadd.f32 0.0, %v540
  %542 = vmatmul.f32.gmra.mxu0 %v335
  %v543 = vpop.f32.mrf.mxu0
  %v544 = vadd.f32 0.0, %v543
  %545 = vmatmul.f32.gmra.mxu0 %v338
  %v546 = vpop.f32.mrf.mxu0
  %v547 = vadd.f32 0.0, %v546
  %548 = vmatmul.f32.gmra.mxu0 %v341
  %v549 = vpop.f32.mrf.mxu0
  %v550 = vadd.f32 0.0, %v549
  %551 = vmatmul.f32.gmra.mxu0 %v344
  %v552 = vpop.f32.mrf.mxu0
  %v553 = vadd.f32 0.0, %v552
  %554 = vmatmul.f32.gmra.mxu0 %v347
  %v555 = vpop.f32.mrf.mxu0
  %v556 = vadd.f32 0.0, %v555
  %557 = vmatmul.f32.gmra.mxu0 %v350
  %v558 = vpop.f32.mrf.mxu0
  %v559 = vadd.f32 0.0, %v558
  %560 = vmatmul.f32.gmra.mxu0 %v353
  %v561 = vpop.f32.mrf.mxu0
  %v562 = vadd.f32 0.0, %v561
  %563 = vmatmul.f32.gmra.mxu0 %v356
  %v564 = vpop.f32.mrf.mxu0
  %v565 = vadd.f32 0.0, %v564
  %566 = vmatmul.f32.gmra.mxu0 %v359
  %v567 = vpop.f32.mrf.mxu0
  %v568 = vadd.f32 0.0, %v567
  %569 = vmatmul.f32.gmra.mxu0 %v362
  %v570 = vpop.f32.mrf.mxu0
  %v571 = vadd.f32 0.0, %v570
  %572 = vmatmul.f32.gmra.mxu0 %v365
  %v573 = vpop.f32.mrf.mxu0
  %v574 = vadd.f32 0.0, %v573
  %575 = vmatmul.f32.gmra.mxu0 %v368
  %v576 = vpop.f32.mrf.mxu0
  %v577 = vadd.f32 0.0, %v576
  %578 = vmatmul.f32.gmra.mxu0 %v371
  %v579 = vpop.f32.mrf.mxu0
  %v580 = vadd.f32 0.0, %v579
  %581 = vmatmul.f32.gmra.mxu0 %v374
  %v582 = vpop.f32.mrf.mxu0
  %v583 = vadd.f32 0.0, %v582
  %584 = vmatmul.f32.gmra.mxu0 %v377
  %v585 = vpop.f32.mrf.mxu0
  %v586 = vadd.f32 0.0, %v585
  %587 = vmatmul.f32.gmra.mxu0 %v380
  %v588 = vpop.f32.mrf.mxu0
  %v589 = vadd.f32 0.0, %v588
  %590 = vmatmul.f32.gmra.mxu0 %v383
  %v591 = vpop.f32.mrf.mxu0
  %v592 = vadd.f32 0.0, %v591
  %593 = vmatmul.f32.gmra.mxu0 %v386
  %v594 = vpop.f32.mrf.mxu0
  %v595 = vadd.f32 0.0, %v594
  %596 = vmatmul.f32.gmra.mxu0 %v389
  %v597 = vpop.f32.mrf.mxu0
  %v598 = vadd.f32 0.0, %v597
  %599 = vmatmul.f32.gmra.mxu0 %v392
  %v600 = vpop.f32.mrf.mxu0
  %v601 = vadd.f32 0.0, %v600
  %602 = vmatmul.f32.gmra.mxu0 %v395
  %v603 = vpop.f32.mrf.mxu0
  %v604 = vadd.f32 0.0, %v603
  %605 = vmatmul.f32.gmra.mxu0 %v398
  %v606 = vpop.f32.mrf.mxu0
  %v607 = vadd.f32 0.0, %v606
  %608 = vmatmul.f32.gmra.mxu0 %v401
  %v609 = vpop.f32.mrf.mxu0
  %v610 = vadd.f32 0.0, %v609
  %611 = vmatmul.f32.gmra.mxu0 %v404
  %v612 = vpop.f32.mrf.mxu0
  %v613 = vadd.f32 0.0, %v612
  %614 = vmatmul.f32.gmra.mxu0 %v407
  %v615 = vpop.f32.mrf.mxu0
  %v616 = vadd.f32 0.0, %v615
  %617 = vmatmul.f32.gmra.mxu0 %v410
  %v618 = vpop.f32.mrf.mxu0
  %v619 = vadd.f32 0.0, %v618
  %620 = vmatmul.f32.gmra.mxu0 %v413
  %v621 = vpop.f32.mrf.mxu0
  %v622 = vadd.f32 0.0, %v621
  %623 = vmatmul.f32.gmra.mxu0 %v416
  %v624 = vpop.f32.mrf.mxu0
  %v625 = vadd.f32 0.0, %v624
  %626 = vmatmul.f32.gmra.mxu0 %v419
  %v627 = vpop.f32.mrf.mxu0
  %v628 = vadd.f32 0.0, %v627
  %629 = vmatmul.f32.gmra.mxu0 %v422
  %v630 = vpop.f32.mrf.mxu0
  %v631 = vadd.f32 0.0, %v630
  %632 = vmatmul.f32.gmra.mxu0 %v425
  %v633 = vpop.f32.mrf.mxu0
  %v634 = vadd.f32 0.0, %v633
  %635 = vmatmul.f32.gmra.mxu0 %v428
  %v636 = vpop.f32.mrf.mxu0
  %v637 = vadd.f32 0.0, %v636
  %638 = vmatmul.f32.gmra.mxu0 %v431
  %v639 = vpop.f32.mrf.mxu0
  %v640 = vadd.f32 0.0, %v639
  %641 = vmatmul.f32.gmra.mxu0 %v434
  %v642 = vpop.f32.mrf.mxu0
  %v643 = vadd.f32 0.0, %v642
  %644 = vmatmul.f32.gmra.mxu0 %v437
  %v645 = vpop.f32.mrf.mxu0
  %v646 = vadd.f32 0.0, %v645
  %647 = vmatmul.f32.gmra.mxu0 %v440
  %v648 = vpop.f32.mrf.mxu0
  %v649 = vadd.f32 0.0, %v648
  %650 = vmatmul.f32.gmra.mxu0 %v443
  %v651 = vpop.f32.mrf.mxu0
  %v652 = vadd.f32 0.0, %v651
  %653 = vmatmul.f32.gmra.mxu0 %v446
  %v654 = vpop.f32.mrf.mxu0
  %v655 = vadd.f32 0.0, %v654
  %656 = vmatmul.f32.gmra.mxu0 %v449
  %v657 = vpop.f32.mrf.mxu0
  %v658 = vadd.f32 0.0, %v657
  %659 = vmatmul.f32.gmra.mxu0 %v452
  %v660 = vpop.f32.mrf.mxu0
  %v661 = vadd.f32 0.0, %v660
  %662 = vmatmul.f32.gmra.mxu0 %v455
  %v663 = vpop.f32.mrf.mxu0
  %v664 = vadd.f32 0.0, %v663
  %665 = vmatmul.f32.gmra.mxu0 %v458
  %v666 = vpop.f32.mrf.mxu0
  %v667 = vadd.f32 0.0, %v666
  %668 = vmatmul.f32.gmra.mxu0 %v461
  %v669 = vpop.f32.mrf.mxu0
  %v670 = vadd.f32 0.0, %v669
  %671 = vmatmul.f32.gmra.mxu0 %v464
  %v672 = vpop.f32.mrf.mxu0
  %v673 = vadd.f32 0.0, %v672
  %674 = vmatmul.f32.gmra.mxu0 %v467
  %v675 = vpop.f32.mrf.mxu0
  %v676 = vadd.f32 0.0, %v675
  %677 = vmatmul.f32.gmra.mxu0 %v470
  %v678 = vpop.f32.mrf.mxu0
  %v679 = vadd.f32 0.0, %v678
  %680 = vmatmul.f32.gmra.mxu0 %v473
  %v681 = vpop.f32.mrf.mxu0
  %v682 = vadd.f32 0.0, %v681
  %683 = vmatmul.f32.gmra.mxu0 %v476
  %v684 = vpop.f32.mrf.mxu0
  %v685 = vadd.f32 0.0, %v684
  %686 = vmatmul.f32.gmra.mxu0 %v479
  %v687 = vpop.f32.mrf.mxu0
  %v688 = vadd.f32 0.0, %v687
  %689 = vdwg.mxu0
  %690 = vst [vmem:[%s4] sm:$0xff] %v499
  %691 = vst [vmem:[%s4 + $0x8] sm:$0xff] %v502
  %692 = vst [vmem:[%s4 + $0x10] sm:$0xff] %v505
  %693 = vst [vmem:[%s4 + $0x18] sm:$0xff] %v508
  %694 = vst [vmem:[%s4 + $0x20] sm:$0xff] %v511
  %695 = vst [vmem:[%s4 + $0x28] sm:$0xff] %v514
  %696 = vst [vmem:[%s4 + $0x30] sm:$0xff] %v517
  %697 = vst [vmem:[%s4 + $0x38] sm:$0xff] %v520
  %698 = vst [vmem:[%s4 + $0x40] sm:$0xff] %v523
  %699 = vst [vmem:[%s4 + $0x48] sm:$0xff] %v526
  %700 = vst [vmem:[%s4 + $0x50] sm:$0xff] %v529
  %701 = vst [vmem:[%s4 + $0x58] sm:$0xff] %v532
  %702 = vst [vmem:[%s4 + $0x60] sm:$0xff] %v535
  %703 = vst [vmem:[%s4 + $0x68] sm:$0xff] %v538
  %704 = vst [vmem:[%s4 + $0x70] sm:$0xff] %v541
  %705 = vst [vmem:[%s4 + $0x78] sm:$0xff] %v544
  %706 = vst [vmem:[%s4 + $0x80] sm:$0xff] %v547
  %707 = vst [vmem:[%s4 + $0x88] sm:$0xff] %v550
  %708 = vst [vmem:[%s4 + $0x90] sm:$0xff] %v553
  %709 = vst [vmem:[%s4 + $0x98] sm:$0xff] %v556
  %710 = vst [vmem:[%s4 + $0xa0] sm:$0xff] %v559
  %711 = vst [vmem:[%s4 + $0xa8] sm:$0xff] %v562
  %712 = vst [vmem:[%s4 + $0xb0] sm:$0xff] %v565
  %713 = vst [vmem:[%s4 + $0xb8] sm:$0xff] %v568
  %714 = vst [vmem:[%s4 + $0xc0] sm:$0xff] %v571
  %715 = vst [vmem:[%s4 + $0xc8] sm:$0xff] %v574
  %716 = vst [vmem:[%s4 + $0xd0] sm:$0xff] %v577
  %717 = vst [vmem:[%s4 + $0xd8] sm:$0xff] %v580
  %718 = vst [vmem:[%s4 + $0xe0] sm:$0xff] %v583
  %719 = vst [vmem:[%s4 + $0xe8] sm:$0xff] %v586
  %720 = vst [vmem:[%s4 + $0xf0] sm:$0xff] %v589
  %721 = vst [vmem:[%s4 + $0xf8] sm:$0xff] %v592
  %722 = vst [vmem:[%s4 + $0x100] sm:$0xff] %v595
  %723 = vst [vmem:[%s4 + $0x108] sm:$0xff] %v598
  %724 = vst [vmem:[%s4 + $0x110] sm:$0xff] %v601
  %725 = vst [vmem:[%s4 + $0x118] sm:$0xff] %v604
  %726 = vst [vmem:[%s4 + $0x120] sm:$0xff] %v607
  %727 = vst [vmem:[%s4 + $0x128] sm:$0xff] %v610
  %728 = vst [vmem:[%s4 + $0x130] sm:$0xff] %v613
  %729 = vst [vmem:[%s4 + $0x138] sm:$0xff] %v616
  %730 = vst [vmem:[%s4 + $0x140] sm:$0xff] %v619
  %731 = vst [vmem:[%s4 + $0x148] sm:$0xff] %v622
  %732 = vst [vmem:[%s4 + $0x150] sm:$0xff] %v625
  %733 = vst [vmem:[%s4 + $0x158] sm:$0xff] %v628
  %734 = vst [vmem:[%s4 + $0x160] sm:$0xff] %v631
  %735 = vst [vmem:[%s4 + $0x168] sm:$0xff] %v634
  %736 = vst [vmem:[%s4 + $0x170] sm:$0xff] %v637
  %737 = vst [vmem:[%s4 + $0x178] sm:$0xff] %v640
  %738 = vst [vmem:[%s4 + $0x180] sm:$0xff] %v643
  %739 = vst [vmem:[%s4 + $0x188] sm:$0xff] %v646
  %740 = vst [vmem:[%s4 + $0x190] sm:$0xff] %v649
  %741 = vst [vmem:[%s4 + $0x198] sm:$0xff] %v652
  %742 = vst [vmem:[%s4 + $0x1a0] sm:$0xff] %v655
  %743 = vst [vmem:[%s4 + $0x1a8] sm:$0xff] %v658
  %744 = vst [vmem:[%s4 + $0x1b0] sm:$0xff] %v661
  %745 = vst [vmem:[%s4 + $0x1b8] sm:$0xff] %v664
  %746 = vst [vmem:[%s4 + $0x1c0] sm:$0xff] %v667
  %747 = vst [vmem:[%s4 + $0x1c8] sm:$0xff] %v670
  %748 = vst [vmem:[%s4 + $0x1d0] sm:$0xff] %v673
  %749 = vst [vmem:[%s4 + $0x1d8] sm:$0xff] %v676
  %750 = vst [vmem:[%s4 + $0x1e0] sm:$0xff] %v679
  %751 = vst [vmem:[%s4 + $0x1e8] sm:$0xff] %v682
  %752 = vst [vmem:[%s4 + $0x1f0] sm:$0xff] %v685
  %753 = vst [vmem:[%s4 + $0x1f8] sm:$0xff] %v688
  %v754 = vadd.f32 %v499, %v502
  %v755 = vadd.f32 %v754, %v505
  %v756 = vadd.f32 %v755, %v508
  %v757 = vadd.f32 %v756, %v511
  %v758 = vadd.f32 %v757, %v514
  %v759 = vadd.f32 %v758, %v517
  %v760 = vadd.f32 %v759, %v520
  %v761 = vadd.f32 %v760, %v523
  %v762 = vadd.f32 %v761, %v526
  %v763 = vadd.f32 %v762, %v529
  %v764 = vadd.f32 %v763, %v532
  %v765 = vadd.f32 %v764, %v535
  %v766 = vadd.f32 %v765, %v538
  %v767 = vadd.f32 %v766, %v541
  %v768 = vadd.f32 %v767, %v544
  %v769 = vadd.f32 %v768, %v547
  %v770 = vadd.f32 %v769, %v550
  %v771 = vadd.f32 %v770, %v553
  %v772 = vadd.f32 %v771, %v556
  %v773 = vadd.f32 %v772, %v559
  %v774 = vadd.f32 %v773, %v562
  %v775 = vadd.f32 %v774, %v565
  %v776 = vadd.f32 %v775, %v568
  %v777 = vadd.f32 %v776, %v571
  %v778 = vadd.f32 %v777, %v574
  %v779 = vadd.f32 %v778, %v577
  %v780 = vadd.f32 %v779, %v580
  %v781 = vadd.f32 %v780, %v583
  %v782 = vadd.f32 %v781, %v586
  %v783 = vadd.f32 %v782, %v589
  %v784 = vadd.f32 %v783, %v592
  %v785 = vadd.f32 %v784, %v595
  %v786 = vadd.f32 %v785, %v598
  %v787 = vadd.f32 %v786, %v601
  %v788 = vadd.f32 %v787, %v604
  %v789 = vadd.f32 %v788, %v607
  %v790 = vadd.f32 %v789, %v610
  %v791 = vadd.f32 %v790, %v613
  %v792 = vadd.f32 %v791, %v616
  %v793 = vadd.f32 %v792, %v619
  %v794 = vadd.f32 %v793, %v622
  %v795 = vadd.f32 %v794, %v625
  %v796 = vadd.f32 %v795, %v628
  %v797 = vadd.f32 %v796, %v631
  %v798 = vadd.f32 %v797, %v634
  %v799 = vadd.f32 %v798, %v637
  %v800 = vadd.f32 %v799, %v640
  %v801 = vadd.f32 %v800, %v643
  %v802 = vadd.f32 %v801, %v646
  %v803 = vadd.f32 %v802, %v649
  %v804 = vadd.f32 %v803, %v652
  %v805 = vadd.f32 %v804, %v655
  %v806 = vadd.f32 %v805, %v658
  %v807 = vadd.f32 %v806, %v661
  %v808 = vadd.f32 %v807, %v664
  %v809 = vadd.f32 %v808, %v667
  %v810 = vadd.f32 %v809, %v670
  %v811 = vadd.f32 %v810, %v673
  %v812 = vadd.f32 %v811, %v676
  %v813 = vadd.f32 %v812, %v679
  %v814 = vadd.f32 %v813, %v682
  %v815 = vadd.f32 %v814, %v685
  %v816 = vadd.f32 %v815, %v688
  %v817 = vrot.slane %v816, 4
  %v818 = vadd.f32 %v816, %v817
  %v819 = vrot.slane %v818, 2
  %v820 = vadd.f32 %v818, %v819
  %v821 = vrot.slane %v820, 1
  %v822 = vadd.f32 %v820, %v821
  %823 = vst [vmem:[%s5] sm:$0x1] %v822
  %v824 = vmul.f32 %v499, %v499
  %v825 = vmul.f32 %v502, %v502
  %v826 = vmul.f32 %v505, %v505
  %v827 = vmul.f32 %v508, %v508
  %v828 = vmul.f32 %v511, %v511
  %v829 = vmul.f32 %v514, %v514
  %v830 = vmul.f32 %v517, %v517
  %v831 = vmul.f32 %v520, %v520
  %v832 = vmul.f32 %v523, %v523
  %v833 = vmul.f32 %v526, %v526
  %v834 = vmul.f32 %v529, %v529
  %v835 = vmul.f32 %v532, %v532
  %v836 = vmul.f32 %v535, %v535
  %v837 = vmul.f32 %v538, %v538
  %v838 = vmul.f32 %v541, %v541
  %v839 = vmul.f32 %v544, %v544
  %v840 = vmul.f32 %v547, %v547
  %v841 = vmul.f32 %v550, %v550
  %v842 = vmul.f32 %v553, %v553
  %v843 = vmul.f32 %v556, %v556
  %v844 = vmul.f32 %v559, %v559
  %v845 = vmul.f32 %v562, %v562
  %v846 = vmul.f32 %v565, %v565
  %v847 = vmul.f32 %v568, %v568
  %v848 = vmul.f32 %v571, %v571
  %v849 = vmul.f32 %v574, %v574
  %v850 = vmul.f32 %v577, %v577
  %v851 = vmul.f32 %v580, %v580
  %v852 = vmul.f32 %v583, %v583
  %v853 = vmul.f32 %v586, %v586
  %v854 = vmul.f32 %v589, %v589
  %v855 = vmul.f32 %v592, %v592
  %v856 = vmul.f32 %v595, %v595
  %v857 = vmul.f32 %v598, %v598
  %v858 = vmul.f32 %v601, %v601
  %v859 = vmul.f32 %v604, %v604
  %v860 = vmul.f32 %v607, %v607
  %v861 = vmul.f32 %v610, %v610
  %v862 = vmul.f32 %v613, %v613
  %v863 = vmul.f32 %v616, %v616
  %v864 = vmul.f32 %v619, %v619
  %v865 = vmul.f32 %v622, %v622
  %v866 = vmul.f32 %v625, %v625
  %v867 = vmul.f32 %v628, %v628
  %v868 = vmul.f32 %v631, %v631
  %v869 = vmul.f32 %v634, %v634
  %v870 = vmul.f32 %v637, %v637
  %v871 = vmul.f32 %v640, %v640
  %v872 = vmul.f32 %v643, %v643
  %v873 = vmul.f32 %v646, %v646
  %v874 = vmul.f32 %v649, %v649
  %v875 = vmul.f32 %v652, %v652
  %v876 = vmul.f32 %v655, %v655
  %v877 = vmul.f32 %v658, %v658
  %v878 = vmul.f32 %v661, %v661
  %v879 = vmul.f32 %v664, %v664
  %v880 = vmul.f32 %v667, %v667
  %v881 = vmul.f32 %v670, %v670
  %v882 = vmul.f32 %v673, %v673
  %v883 = vmul.f32 %v676, %v676
  %v884 = vmul.f32 %v679, %v679
  %v885 = vmul.f32 %v682, %v682
  %v886 = vmul.f32 %v685, %v685
  %v887 = vmul.f32 %v688, %v688
  %v888 = vadd.f32 %v824, %v825
  %v889 = vadd.f32 %v888, %v826
  %v890 = vadd.f32 %v889, %v827
  %v891 = vadd.f32 %v890, %v828
  %v892 = vadd.f32 %v891, %v829
  %v893 = vadd.f32 %v892, %v830
  %v894 = vadd.f32 %v893, %v831
  %v895 = vadd.f32 %v894, %v832
  %v896 = vadd.f32 %v895, %v833
  %v897 = vadd.f32 %v896, %v834
  %v898 = vadd.f32 %v897, %v835
  %v899 = vadd.f32 %v898, %v836
  %v900 = vadd.f32 %v899, %v837
  %v901 = vadd.f32 %v900, %v838
  %v902 = vadd.f32 %v901, %v839
  %v903 = vadd.f32 %v902, %v840
  %v904 = vadd.f32 %v903, %v841
  %v905 = vadd.f32 %v904, %v842
  %v906 = vadd.f32 %v905, %v843
  %v907 = vadd.f32 %v906, %v844
  %v908 = vadd.f32 %v907, %v845
  %v909 = vadd.f32 %v908, %v846
  %v910 = vadd.f32 %v909, %v847
  %v911 = vadd.f32 %v910, %v848
  %v912 = vadd.f32 %v911, %v849
  %v913 = vadd.f32 %v912, %v850
  %v914 = vadd.f32 %v913, %v851
  %v915 = vadd.f32 %v914, %v852
  %v916 = vadd.f32 %v915, %v853
  %v917 = vadd.f32 %v916, %v854
  %v918 = vadd.f32 %v917, %v855
  %v919 = vadd.f32 %v918, %v856
  %v920 = vadd.f32 %v919, %v857
  %v921 = vadd.f32 %v920, %v858
  %v922 = vadd.f32 %v921, %v859
  %v923 = vadd.f32 %v922, %v860
  %v924 = vadd.f32 %v923, %v861
  %v925 = vadd.f32 %v924, %v862
  %v926 = vadd.f32 %v925, %v863
  %v927 = vadd.f32 %v926, %v864
  %v928 = vadd.f32 %v927, %v865
  %v929 = vadd.f32 %v928, %v866
  %v930 = vadd.f32 %v929, %v867
  %v931 = vadd.f32 %v930, %v868
  %v932 = vadd.f32 %v931, %v869
  %v933 = vadd.f32 %v932, %v870
  %v934 = vadd.f32 %v933, %v871
  %v935 = vadd.f32 %v934, %v872
  %v936 = vadd.f32 %v935, %v873
  %v937 = vadd.f32 %v936, %v874
  %v938 = vadd.f32 %v937, %v875
  %v939 = vadd.f32 %v938, %v876
  %v940 = vadd.f32 %v939, %v877
  %v941 = vadd.f32 %v940, %v878
  %v942 = vadd.f32 %v941, %v879
  %v943 = vadd.f32 %v942, %v880
  %v944 = vadd.f32 %v943, %v881
  %v945 = vadd.f32 %v944, %v882
  %v946 = vadd.f32 %v945, %v883
  %v947 = vadd.f32 %v946, %v884
  %v948 = vadd.f32 %v947, %v885
  %v949 = vadd.f32 %v948, %v886
  %v950 = vadd.f32 %v949, %v887
  %v951 = vrot.slane %v950, 4
  %v952 = vadd.f32 %v950, %v951
  %v953 = vrot.slane %v952, 2
  %v954 = vadd.f32 %v952, %v953
  %v955 = vrot.slane %v954, 1
  %v956 = vadd.f32 %v954, %v955
  %957 = vst [vmem:[%s6] sm:$0x1] %v956
  // Predicated region
  $region18: #{bottleneck_forward.6} parent=0 // pred_check
    _
  $region19: #{bottleneck_forward.6} parent=0 // pred_check_branch
    %959 = sbr.rel (0) target = $region21
  $region20: #{bottleneck_forward.6} parent=0 // pred_region
    _
  $region21: #{bottleneck_forward.6} parent=0 // pred_fallthru
    _
  // Predicated region
  $region22: #{bottleneck_forward.6} parent=0 // pred_check
    _
  $region23: #{bottleneck_forward.6} parent=0 // pred_check_branch
    %961 = sbr.rel (0) target = $region25
  $region24: #{bottleneck_forward.6} parent=0 // pred_region
    _
  $region25: #{bottleneck_forward.6} parent=0 // pred_fallthru
    _
  // Predicated region
  $region26: #{bottleneck_forward.6} parent=0 // pred_check
    _
  $region27: #{bottleneck_forward.6} parent=0 // pred_check_branch
    %963 = sbr.rel (0) target = $region29
  $region28: #{bottleneck_forward.6} parent=0 // pred_region
    _
  $region29: #{bottleneck_forward.6} parent=0 // pred_fallthru
    _
  // Predicated region
  $region30: #{bottleneck_forward.6} parent=0 // pred_check
    _
  $region31: #{bottleneck_forward.6} parent=0 // pred_check_branch
    %965 = sbr.rel (0) target = $region33
  $region32: #{bottleneck_forward.6} parent=0 // pred_region
    _
  $region33: #{bottleneck_forward.6} parent=0 // pred_fallthru
    _
  // Predicated region
  $region34: #{bottleneck_forward.6} parent=0 // pred_check
    _
  $region35: #{bottleneck_forward.6} parent=0 // pred_check_branch
    %967 = sbr.rel (0) target = $region37
  $region36: #{bottleneck_forward.6} parent=0 // pred_region
    _
  $region37: #{bottleneck_forward.6} parent=0 // pred_fallthru
    _
  // Predicated region
  $region38: #{bottleneck_forward.6} parent=0 // pred_check
    _
  $region39: #{bottleneck_forward.6} parent=0 // pred_check_branch
    %969 = sbr.rel (0) target = $region41
  $region40: #{bottleneck_forward.6} parent=0 // pred_region
    _
  $region41: #{bottleneck_forward.6} parent=0 // pred_fallthru
    _

// kernel: bottleneck_forward.5
$region0: #{bottleneck_forward.5}
  #allocation0 [shape = 'u32[]', space=smem, size = 0x4, offset = 0x4, fixed_abs, tag = 'smem constant byte address 0x4 - core index']
  #allocation1 [shape = 'u32[72,128]{1,0:T(1,128)}', space=vmem, size = 0x9000, scoped, tag = 'internal scratch']
  #allocation2 [shape = 'f32[304,32]{1,0:T(8,128)}', space=vmem, size = 0x26000, scoped, tag = 'scratch operand']
  %s0 = inlined_call_operand.vmem [shape: f32[512,32], index: 0, kind: input, shape index: {}]
  %s1 = inlined_call_operand.vmem [shape: f32[1,32], index: 1, kind: input, shape index: {}]
  %s2 = inlined_call_operand.vmem [shape: f32[1,32], index: 2, kind: input, shape index: {}]
  %s3 = inlined_call_operand.vmem [shape: f32[256,1], index: 3, kind: input, shape index: {}]
  %s4 = inlined_call_operand.vmem [shape: f32[256,1], index: 4, kind: input, shape index: {}]
  %s5 = inlined_call_operand.vmem [shape: f32[288,32], index: 5, kind: input, shape index: {}]
  %s6 = inlined_call_operand.vmem [shape: f32[512,32], index: 6, kind: output, shape index: {0}]
  %s7 = inlined_call_operand.vmem [shape: f32[2,1,32], index: 7, kind: output, shape index: {1}]
  %s8 = inlined_call_operand.vmem [shape: f32[2,1,32], index: 8, kind: output, shape index: {2}]
  %9 = xla_tuple %s6, %s7, %s8
  %s10 = sld [smem:[#allocation0]]
  $region73: #{bottleneck_forward.5} parent=0
    _
  %s12 = ssub.s32 1, %s10
  %s13 = scalar_select 0, %s12, %s10
  loop: start=0, step=1, limit=4
  $region2: #{bottleneck_forward.5} parent=0 // loop_pre_header
    _
  $region3: #{bottleneck_forward.5} parent=0 // loop_header
    %s15 = sphi 0, %s19
    %p16 = scmp.ge.s32.totalorder %s15, 4
    %s25 = sphi 0, %s27
    %s28 = sphi 0, %s25
    %s29 = sphi 0, %s28
    %s45 = sphi 0, %s29
    %s49 = sphi 0, %s49
    %s51 = sphi 0, %s49
    %s52 = sphi 0, %s51
    %s66 = sphi 0, %s52
    %s70 = sphi 0, %s70
    %s72 = sphi 0, %s70
    %s73 = sphi 0, %s72
    %s87 = sphi 0, %s73
    %s91 = sphi 0, %s91
    %s93 = sphi 0, %s91
    %s94 = sphi 0, %s93
    %s108 = sphi 0, %s94
    %s112 = sphi 0, %s112
    %s114 = sphi 0, %s112
    %s115 = sphi 0, %s114
    %s129 = sphi 0, %s115
    %s133 = sphi 0, %s133
    %s135 = sphi 0, %s133
    %s136 = sphi 0, %s135
    %s150 = sphi 0, %s136
    %s156 = sphi 0, %s158
    %s159 = sphi 0, %s156
    %s160 = sphi 0, %s159
    %s176 = sphi 0, %s160
    %s182 = sphi 0, %s184
    %s185 = sphi 0, %s182
    %s186 = sphi 0, %s185
    %s202 = sphi 0, %s186
    %s208 = sphi 0, %s210
    %s211 = sphi 0, %s208
    %s212 = sphi 0, %s211
    %s228 = sphi 0, %s212
  $region4: #{bottleneck_forward.5} parent=0 // loop_header_branch
    %18 = sbr.rel (%p16) target = $region8
  $region5: #{bottleneck_forward.5} parent=0 // loop_body
    %s20 = ssub.s32 %s15, 1
    %s21 = ssub.s32 %s15, 2
    %s22 = sadd.s32 %s15, 1
    %s23 = ssub.s32 %s15, %s22
    %p24 = scmp.eq.s32.totalorder %s23, 0
    %s26 = sadd.s32 %s25, 1
    %s27 = scalar_select %p24, %s25, %s26
    %p30 = pneg %p24
    %p31 = scmp.eq.s32.totalorder %s15, 1
    %p32 = por %p30, %p31
    %p33 = scmp.ne.s32.totalorder %s25, %s28
    %p34 = scmp.eq.s32.totalorder %s15, 0
    %p35 = por %p33, %p34
    %p36 = scmp.ne.s32.totalorder %s25, %s28
    %p37 = scmp.eq.s32.totalorder %s20, 1
    %p38 = por %p36, %p37
    %p39 = scmp.ne.s32.totalorder %s28, %s29
    %p40 = scmp.eq.s32.totalorder %s20, 0
    %p41 = por %p39, %p40
    %p42 = scmp.ne.s32.totalorder %s28, %s29
    %p43 = scmp.eq.s32.totalorder %s21, 1
    %p44 = por %p42, %p43
    %p46 = scmp.ne.s32.totalorder %s29, %s45
    %p47 = scmp.eq.s32.totalorder %s21, 0
    %p48 = por %p46, %p47
    %s50 = sadd.s32 %s49, 1
    %p53 = scmp.eq.s32.totalorder %s15, 1
    %p54 = scmp.ne.s32.totalorder %s49, %s51
    %p55 = scmp.eq.s32.totalorder %s15, 0
    %p56 = por %p54, %p55
    %p57 = scmp.ne.s32.totalorder %s49, %s51
    %p58 = scmp.eq.s32.totalorder %s20, 1
    %p59 = por %p57, %p58
    %p60 = scmp.ne.s32.totalorder %s51, %s52
    %p61 = scmp.eq.s32.totalorder %s20, 0
    %p62 = por %p60, %p61
    %p63 = scmp.ne.s32.totalorder %s51, %s52
    %p64 = scmp.eq.s32.totalorder %s21, 1
    %p65 = por %p63, %p64
    %p67 = scmp.ne.s32.totalorder %s52, %s66
    %p68 = scmp.eq.s32.totalorder %s21, 0
    %p69 = por %p67, %p68
    %s71 = sadd.s32 %s70, 1
    %p74 = scmp.eq.s32.totalorder %s15, 1
    %p75 = scmp.ne.s32.totalorder %s70, %s72
    %p76 = scmp.eq.s32.totalorder %s15, 0
    %p77 = por %p75, %p76
    %p78 = scmp.ne.s32.totalorder %s70, %s72
    %p79 = scmp.eq.s32.totalorder %s20, 1
    %p80 = por %p78, %p79
    %p81 = scmp.ne.s32.totalorder %s72, %s73
    %p82 = scmp.eq.s32.totalorder %s20, 0
    %p83 = por %p81, %p82
    %p84 = scmp.ne.s32.totalorder %s72, %s73
    %p85 = scmp.eq.s32.totalorder %s21, 1
    %p86 = por %p84, %p85
    %p88 = scmp.ne.s32.totalorder %s73, %s87
    %p89 = scmp.eq.s32.totalorder %s21, 0
    %p90 = por %p88, %p89
    %s92 = sadd.s32 %s91, 1
    %p95 = scmp.eq.s32.totalorder %s15, 1
    %p96 = scmp.ne.s32.totalorder %s91, %s93
    %p97 = scmp.eq.s32.totalorder %s15, 0
    %p98 = por %p96, %p97
    %p99 = scmp.ne.s32.totalorder %s91, %s93
    %p100 = scmp.eq.s32.totalorder %s20, 1
    %p101 = por %p99, %p100
    %p102 = scmp.ne.s32.totalorder %s93, %s94
    %p103 = scmp.eq.s32.totalorder %s20, 0
    %p104 = por %p102, %p103
    %p105 = scmp.ne.s32.totalorder %s93, %s94
    %p106 = scmp.eq.s32.totalorder %s21, 1
    %p107 = por %p105, %p106
    %p109 = scmp.ne.s32.totalorder %s94, %s108
    %p110 = scmp.eq.s32.totalorder %s21, 0
    %p111 = por %p109, %p110
    %s113 = sadd.s32 %s112, 1
    %p116 = scmp.eq.s32.totalorder %s15, 1
    %p117 = scmp.ne.s32.totalorder %s112, %s114
    %p118 = scmp.eq.s32.totalorder %s15, 0
    %p119 = por %p117, %p118
    %p120 = scmp.ne.s32.totalorder %s112, %s114
    %p121 = scmp.eq.s32.totalorder %s20, 1
    %p122 = por %p120, %p121
    %p123 = scmp.ne.s32.totalorder %s114, %s115
    %p124 = scmp.eq.s32.totalorder %s20, 0
    %p125 = por %p123, %p124
    %p126 = scmp.ne.s32.totalorder %s114, %s115
    %p127 = scmp.eq.s32.totalorder %s21, 1
    %p128 = por %p126, %p127
    %p130 = scmp.ne.s32.totalorder %s115, %s129
    %p131 = scmp.eq.s32.totalorder %s21, 0
    %p132 = por %p130, %p131
    %s134 = sadd.s32 %s133, 1
    %p137 = scmp.eq.s32.totalorder %s15, 1
    %p138 = scmp.ne.s32.totalorder %s133, %s135
    %p139 = scmp.eq.s32.totalorder %s15, 0
    %p140 = por %p138, %p139
    %p141 = scmp.ne.s32.totalorder %s133, %s135
    %p142 = scmp.eq.s32.totalorder %s20, 1
    %p143 = por %p141, %p142
    %p144 = scmp.ne.s32.totalorder %s135, %s136
    %p145 = scmp.eq.s32.totalorder %s20, 0
    %p146 = por %p144, %p145
    %p147 = scmp.ne.s32.totalorder %s135, %s136
    %p148 = scmp.eq.s32.totalorder %s21, 1
    %p149 = por %p147, %p148
    %p151 = scmp.ne.s32.totalorder %s136, %s150
    %p152 = scmp.eq.s32.totalorder %s21, 0
    %p153 = por %p151, %p152
    %s154 = ssub.s32 %s15, %s22
    %p155 = scmp.eq.s32.totalorder %s154, 0
    %s157 = sadd.s32 %s156, 1
    %s158 = scalar_select %p155, %s156, %s157
    %p161 = pneg %p155
    %p162 = scmp.eq.s32.totalorder %s15, 1
    %p163 = por %p161, %p162
    %p164 = scmp.ne.s32.totalorder %s156, %s159
    %p165 = scmp.eq.s32.totalorder %s15, 0
    %p166 = por %p164, %p165
    %p167 = scmp.ne.s32.totalorder %s156, %s159
    %p168 = scmp.eq.s32.totalorder %s20, 1
    %p169 = por %p167, %p168
    %p170 = scmp.ne.s32.totalorder %s159, %s160
    %p171 = scmp.eq.s32.totalorder %s20, 0
    %p172 = por %p170, %p171
    %p173 = scmp.ne.s32.totalorder %s159, %s160
    %p174 = scmp.eq.s32.totalorder %s21, 1
    %p175 = por %p173, %p174
    %p177 = scmp.ne.s32.totalorder %s160, %s176
    %p178 = scmp.eq.s32.totalorder %s21, 0
    %p179 = por %p177, %p178
    %s180 = ssub.s32 %s15, %s22
    %p181 = scmp.eq.s32.totalorder %s180, 0
    %s183 = sadd.s32 %s182, 1
    %s184 = scalar_select %p181, %s182, %s183
    %p187 = pneg %p181
    %p188 = scmp.eq.s32.totalorder %s15, 1
    %p189 = por %p187, %p188
    %p190 = scmp.ne.s32.totalorder %s182, %s185
    %p191 = scmp.eq.s32.totalorder %s15, 0
    %p192 = por %p190, %p191
    %p193 = scmp.ne.s32.totalorder %s182, %s185
    %p194 = scmp.eq.s32.totalorder %s20, 1
    %p195 = por %p193, %p194
    %p196 = scmp.ne.s32.totalorder %s185, %s186
    %p197 = scmp.eq.s32.totalorder %s20, 0
    %p198 = por %p196, %p197
    %p199 = scmp.ne.s32.totalorder %s185, %s186
    %p200 = scmp.eq.s32.totalorder %s21, 1
    %p201 = por %p199, %p200
    %p203 = scmp.ne.s32.totalorder %s186, %s202
    %p204 = scmp.eq.s32.totalorder %s21, 0
    %p205 = por %p203, %p204
    %s206 = ssub.s32 %s15, %s22
    %p207 = scmp.eq.s32.totalorder %s206, 0
    %s209 = sadd.s32 %s208, 1
    %s210 = scalar_select %p207, %s208, %s209
    %p213 = pneg %p207
    %p214 = scmp.eq.s32.totalorder %s15, 1
    %p215 = por %p213, %p214
    %p216 = scmp.ne.s32.totalorder %s208, %s211
    %p217 = scmp.eq.s32.totalorder %s15, 0
    %p218 = por %p216, %p217
    %p219 = scmp.ne.s32.totalorder %s208, %s211
    %p220 = scmp.eq.s32.totalorder %s20, 1
    %p221 = por %p219, %p220
    %p222 = scmp.ne.s32.totalorder %s211, %s212
    %p223 = scmp.eq.s32.totalorder %s20, 0
    %p224 = por %p222, %p223
    %p225 = scmp.ne.s32.totalorder %s211, %s212
    %p226 = scmp.eq.s32.totalorder %s21, 1
    %p227 = por %p225, %p226
    %p229 = scmp.ne.s32.totalorder %s212, %s228
    %p230 = scmp.eq.s32.totalorder %s21, 0
    %p231 = por %p229, %p230
    %p232 = scmp.le.s32.totalorder 1, %s15
    %p233 = scmp.lt.s32.totalorder %s15, 3
    %p234 = pnand %p232, %p233
    %p235 = pneg %p234
    // Predicated region
    $region9: #{bottleneck_forward.5} parent=5 // pred_check
      _
    $region10: #{bottleneck_forward.5} parent=5 // pred_check_branch
      %237 = sbr.rel (%p234) target = $region12
    $region11: #{bottleneck_forward.5} parent=5 // pred_region
      %s238 = ssub.s32 %s15, 1
      // Predicated region
      $region13: #{bottleneck_forward.5} parent=11 // pred_check
        %p239 = pneg %p62
      $region14: #{bottleneck_forward.5} parent=11 // pred_check_branch
        %241 = sbr.rel (%p239) target = $region16
      $region15: #{bottleneck_forward.5} parent=11 // pred_region
        _
      $region16: #{bottleneck_forward.5} parent=11 // pred_fallthru
        _
      // Predicated region
      $region17: #{bottleneck_forward.5} parent=11 // pred_check
        %p242 = pneg %p83
      $region18: #{bottleneck_forward.5} parent=11 // pred_check_branch
        %244 = sbr.rel (%p242) target = $region20
      $region19: #{bottleneck_forward.5} parent=11 // pred_region
        _
      $region20: #{bottleneck_forward.5} parent=11 // pred_fallthru
        _
      // Predicated region
      $region21: #{bottleneck_forward.5} parent=11 // pred_check
        %p245 = pneg %p104
      $region22: #{bottleneck_forward.5} parent=11 // pred_check_branch
        %247 = sbr.rel (%p245) target = $region24
      $region23: #{bottleneck_forward.5} parent=11 // pred_region
        _
      $region24: #{bottleneck_forward.5} parent=11 // pred_fallthru
        _
      // Predicated region
      $region25: #{bottleneck_forward.5} parent=11 // pred_check
        %p248 = pneg %p125
      $region26: #{bottleneck_forward.5} parent=11 // pred_check_branch
        %250 = sbr.rel (%p248) target = $region28
      $region27: #{bottleneck_forward.5} parent=11 // pred_region
        _
      $region28: #{bottleneck_forward.5} parent=11 // pred_fallthru
        _
      // Predicated region
      $region29: #{bottleneck_forward.5} parent=11 // pred_check
        %p251 = pneg %p146
      $region30: #{bottleneck_forward.5} parent=11 // pred_check_branch
        %253 = sbr.rel (%p251) target = $region32
      $region31: #{bottleneck_forward.5} parent=11 // pred_region
        _
      $region32: #{bottleneck_forward.5} parent=11 // pred_fallthru
        _
    $region12: #{bottleneck_forward.5} parent=5 // pred_fallthru
      _
    %p254 = scmp.lt.s32.totalorder %s15, 2
    // Predicated region
    $region33: #{bottleneck_forward.5} parent=5 // pred_check
      %p255 = pneg %p254
    $region34: #{bottleneck_forward.5} parent=5 // pred_check_branch
      %257 = sbr.rel (%p255) target = $region36
    $region35: #{bottleneck_forward.5} parent=5 // pred_region
      // Predicated region
      $region37: #{bottleneck_forward.5} parent=35 // pred_check
        %p258 = pneg %p35
      $region38: #{bottleneck_forward.5} parent=35 // pred_check_branch
        %260 = sbr.rel (%p258) target = $region40
      $region39: #{bottleneck_forward.5} parent=35 // pred_region
        %s261 = smul.u32 32, %s15
        %p262 = scmp.lt.s32.totalorder %s261, 63
        %s263 = scalar_select %p262, %s261, 63
        %s264 = smul.addr %s263, 8
        %s265 = scalar_lea.vmem %s0, %s264
        %s266 = smul.u32 32, %s15
      $region40: #{bottleneck_forward.5} parent=35 // pred_fallthru
        _
    $region36: #{bottleneck_forward.5} parent=5 // pred_fallthru
      _
    %p267 = scmp.le.s32.totalorder 1, %s15
    %p268 = scmp.lt.s32.totalorder %s15, 3
    %p269 = pnand %p267, %p268
    %p270 = pneg %p269
    // Predicated region
    $region41: #{bottleneck_forward.5} parent=5 // pred_check
      _
    $region42: #{bottleneck_forward.5} parent=5 // pred_check_branch
      %272 = sbr.rel (%p269) target = $region44
    $region43: #{bottleneck_forward.5} parent=5 // pred_region
      %s273 = ssub.s32 %s15, 1
      %s274 = smul.u32 32, %s20
      %p275 = scmp.lt.s32.totalorder %s274, 63
      %s276 = scalar_select %p275, %s274, 63
      %s277 = smul.addr %s276, 8
      %s278 = scalar_lea.vmem %s0, %s277
      %p279 = pneg %p41
      %p280 = pneg %p38
      %p281 = pneg %p62
      %p282 = pneg %p59
      %p283 = pneg %p83
      %p284 = pneg %p80
      %p285 = pneg %p104
      %p286 = pneg %p101
      %p287 = pneg %p125
      %p288 = pneg %p122
      %p289 = pneg %p146
      %p290 = pneg %p143
      %p291 = pneg %p172
      %p292 = pneg %p169
      %s293 = smul.u32 32, %s20
      %p294 = scmp.lt.s32.totalorder %s293, 63
      %s295 = scalar_select %p294, %s293, 63
      %s296 = smul.addr %s295, 8
      %s297 = scalar_lea.vmem %s6, %s296
      %p298 = pneg %p198
      %p299 = pneg %p195
      %p300 = scmp.lt.s32.totalorder %s20, 1
      %s301 = scalar_select %p300, %s20, 1
      %s302 = scalar_lea.vmem %s7, %s301
      %p303 = pneg %p224
      %p304 = pneg %p221
      %p305 = scmp.lt.s32.totalorder %s20, 1
      %s306 = scalar_select %p305, %s20, 1
      %s307 = scalar_lea.vmem %s8, %s306
      %s308 = smul.u32 32, %s20
      %p309 = scmp.lt.s32.totalorder %s308, 63
      %s310 = scalar_select %p309, %s308, 63
      %s311 = smul.addr %s310, 8
      %s312 = scalar_lea.vmem %s0, %s311
      %s313 = smul.u32 32, %s20
      %s314 = smul.u32 32, %s20
      %p315 = scmp.lt.s32.totalorder %s314, 63
      %s316 = scalar_select %p315, %s314, 63
      %s317 = smul.addr %s316, 8
      %s318 = scalar_lea.vmem %s6, %s317
      %s319 = smul.u32 32, %s20
      %p320 = scmp.lt.s32.totalorder %s20, 1
      %s321 = scalar_select %p320, %s20, 1
      %s322 = scalar_lea.vmem %s7, %s321
      %p323 = scmp.lt.s32.totalorder %s20, 1
      %s324 = scalar_select %p323, %s20, 1
      %s325 = scalar_lea.vmem %s8, %s324
      %v326 = vld [vmem:[%s312] sm:$0xff]
      %v327 = vld [vmem:[%s312 + $0x8] sm:$0xff]
      %v328 = vld [vmem:[%s312 + $0x10] sm:$0xff]
      %v329 = vld [vmem:[%s312 + $0x18] sm:$0xff]
      %v330 = vld [vmem:[%s312 + $0x20] sm:$0xff]
      %v331 = vld [vmem:[%s312 + $0x28] sm:$0xff]
      %v332 = vld [vmem:[%s312 + $0x30] sm:$0xff]
      %v333 = vld [vmem:[%s312 + $0x38] sm:$0xff]
      %v334 = vld [vmem:[%s312 + $0x40] sm:$0xff]
      %v335 = vld [vmem:[%s312 + $0x48] sm:$0xff]
      %v336 = vld [vmem:[%s312 + $0x50] sm:$0xff]
      %v337 = vld [vmem:[%s312 + $0x58] sm:$0xff]
      %v338 = vld [vmem:[%s312 + $0x60] sm:$0xff]
      %v339 = vld [vmem:[%s312 + $0x68] sm:$0xff]
      %v340 = vld [vmem:[%s312 + $0x70] sm:$0xff]
      %v341 = vld [vmem:[%s312 + $0x78] sm:$0xff]
      %v342 = vld [vmem:[%s312 + $0x80] sm:$0xff]
      %v343 = vld [vmem:[%s312 + $0x88] sm:$0xff]
      %v344 = vld [vmem:[%s312 + $0x90] sm:$0xff]
      %v345 = vld [vmem:[%s312 + $0x98] sm:$0xff]
      %v346 = vld [vmem:[%s312 + $0xa0] sm:$0xff]
      %v347 = vld [vmem:[%s312 + $0xa8] sm:$0xff]
      %v348 = vld [vmem:[%s312 + $0xb0] sm:$0xff]
      %v349 = vld [vmem:[%s312 + $0xb8] sm:$0xff]
      %v350 = vld [vmem:[%s312 + $0xc0] sm:$0xff]
      %v351 = vld [vmem:[%s312 + $0xc8] sm:$0xff]
      %v352 = vld [vmem:[%s312 + $0xd0] sm:$0xff]
      %v353 = vld [vmem:[%s312 + $0xd8] sm:$0xff]
      %v354 = vld [vmem:[%s312 + $0xe0] sm:$0xff]
      %v355 = vld [vmem:[%s312 + $0xe8] sm:$0xff]
      %v356 = vld [vmem:[%s312 + $0xf0] sm:$0xff]
      %v357 = vld [vmem:[%s312 + $0xf8] sm:$0xff]
      %v358 = vld [vmem:[%s1] sm:$0x1]
      %v360 = vperm.slane %v358, 0
      %v362 = vmul.f32 %v326, %v360
      %v363 = vmul.f32 %v327, %v360
      %v364 = vmul.f32 %v328, %v360
      %v365 = vmul.f32 %v329, %v360
      %v366 = vmul.f32 %v330, %v360
      %v367 = vmul.f32 %v331, %v360
      %v368 = vmul.f32 %v332, %v360
      %v369 = vmul.f32 %v333, %v360
      %v370 = vmul.f32 %v334, %v360
      %v371 = vmul.f32 %v335, %v360
      %v372 = vmul.f32 %v336, %v360
      %v373 = vmul.f32 %v337, %v360
      %v374 = vmul.f32 %v338, %v360
      %v375 = vmul.f32 %v339, %v360
      %v376 = vmul.f32 %v340, %v360
      %v377 = vmul.f32 %v341, %v360
      %v378 = vmul.f32 %v342, %v360
      %v379 = vmul.f32 %v343, %v360
      %v380 = vmul.f32 %v344, %v360
      %v381 = vmul.f32 %v345, %v360
      %v382 = vmul.f32 %v346, %v360
      %v383 = vmul.f32 %v347, %v360
      %v384 = vmul.f32 %v348, %v360
      %v385 = vmul.f32 %v349, %v360
      %v386 = vmul.f32 %v350, %v360
      %v387 = vmul.f32 %v351, %v360
      %v388 = vmul.f32 %v352, %v360
      %v389 = vmul.f32 %v353, %v360
      %v390 = vmul.f32 %v354, %v360
      %v391 = vmul.f32 %v355, %v360
      %v392 = vmul.f32 %v356, %v360
      %v393 = vmul.f32 %v357, %v360
      %v394 = vld [vmem:[%s2] sm:$0x1]
      %v396 = vperm.slane %v394, 0
      %v398 = vadd.f32 %v362, %v396
      %v399 = vadd.f32 %v363, %v396
      %v400 = vadd.f32 %v364, %v396
      %v401 = vadd.f32 %v365, %v396
      %v402 = vadd.f32 %v366, %v396
      %v403 = vadd.f32 %v367, %v396
      %v404 = vadd.f32 %v368, %v396
      %v405 = vadd.f32 %v369, %v396
      %v406 = vadd.f32 %v370, %v396
      %v407 = vadd.f32 %v371, %v396
      %v408 = vadd.f32 %v372, %v396
      %v409 = vadd.f32 %v373, %v396
      %v410 = vadd.f32 %v374, %v396
      %v411 = vadd.f32 %v375, %v396
      %v412 = vadd.f32 %v376, %v396
      %v413 = vadd.f32 %v377, %v396
      %v414 = vadd.f32 %v378, %v396
      %v415 = vadd.f32 %v379, %v396
      %v416 = vadd.f32 %v380, %v396
      %v417 = vadd.f32 %v381, %v396
      %v418 = vadd.f32 %v382, %v396
      %v419 = vadd.f32 %v383, %v396
      %v420 = vadd.f32 %v384, %v396
      %v421 = vadd.f32 %v385, %v396
      %v422 = vadd.f32 %v386, %v396
      %v423 = vadd.f32 %v387, %v396
      %v424 = vadd.f32 %v388, %v396
      %v425 = vadd.f32 %v389, %v396
      %v426 = vadd.f32 %v390, %v396
      %v427 = vadd.f32 %v391, %v396
      %v428 = vadd.f32 %v392, %v396
      %v429 = vadd.f32 %v393, %v396
      %v430 = vmax.f32 %v398, 0.0
      %v431 = vmax.f32 %v399, 0.0
      %v432 = vmax.f32 %v400, 0.0
      %v433 = vmax.f32 %v401, 0.0
      %v434 = vmax.f32 %v402, 0.0
      %v435 = vmax.f32 %v403, 0.0
      %v436 = vmax.f32 %v404, 0.0
      %v437 = vmax.f32 %v405, 0.0
      %v438 = vmax.f32 %v406, 0.0
      %v439 = vmax.f32 %v407, 0.0
      %v440 = vmax.f32 %v408, 0.0
      %v441 = vmax.f32 %v409, 0.0
      %v442 = vmax.f32 %v410, 0.0
      %v443 = vmax.f32 %v411, 0.0
      %v444 = vmax.f32 %v412, 0.0
      %v445 = vmax.f32 %v413, 0.0
      %v446 = vmax.f32 %v414, 0.0
      %v447 = vmax.f32 %v415, 0.0
      %v448 = vmax.f32 %v416, 0.0
      %v449 = vmax.f32 %v417, 0.0
      %v450 = vmax.f32 %v418, 0.0
      %v451 = vmax.f32 %v419, 0.0
      %v452 = vmax.f32 %v420, 0.0
      %v453 = vmax.f32 %v421, 0.0
      %v454 = vmax.f32 %v422, 0.0
      %v455 = vmax.f32 %v423, 0.0
      %v456 = vmax.f32 %v424, 0.0
      %v457 = vmax.f32 %v425, 0.0
      %v458 = vmax.f32 %v426, 0.0
      %v459 = vmax.f32 %v427, 0.0
      %v460 = vmax.f32 %v428, 0.0
      %v461 = vmax.f32 %v429, 0.0
      %vm462 = vcmask 261120
      %463 = vst.msk [vmem:[#allocation2] sm:$0xff] %vm462, 0.0
      %464 = vst.msk [vmem:[#allocation2 + $0x8] sm:$0xff] %vm462, 0.0
      %465 = vst.msk [vmem:[#allocation2 + $0x10] sm:$0xff] %vm462, 0.0
      %466 = vst.msk [vmem:[#allocation2 + $0x118] sm:$0xff] %vm462, 0.0
      %467 = vst.msk [vmem:[#allocation2 + $0x120] sm:$0xff] %vm462, 0.0
      %468 = vst.msk [vmem:[#allocation2 + $0x128] sm:$0xff] %vm462, 0.0
      %469 = vst.msk [vmem:[#allocation2 + $0x18] sm:$0xff] %vm462, %v430
      %470 = vst.msk [vmem:[#allocation2 + $0x20] sm:$0xff] %vm462, %v431
      %471 = vst.msk [vmem:[#allocation2 + $0x28] sm:$0xff] %vm462, %v432
      %472 = vst.msk [vmem:[#allocation2 + $0x30] sm:$0xff] %vm462, %v433
      %473 = vst.msk [vmem:[#allocation2 + $0x38] sm:$0xff] %vm462, %v434
      %474 = vst.msk [vmem:[#allocation2 + $0x40] sm:$0xff] %vm462, %v435
      %475 = vst.msk [vmem:[#allocation2 + $0x48] sm:$0xff] %vm462, %v436
      %476 = vst.msk [vmem:[#allocation2 + $0x50] sm:$0xff] %vm462, %v437
      %477 = vst.msk [vmem:[#allocation2 + $0x58] sm:$0xff] %vm462, %v438
      %478 = vst.msk [vmem:[#allocation2 + $0x60] sm:$0xff] %vm462, %v439
      %479 = vst.msk [vmem:[#allocation2 + $0x68] sm:$0xff] %vm462, %v440
      %480 = vst.msk [vmem:[#allocation2 + $0x70] sm:$0xff] %vm462, %v441
      %481 = vst.msk [vmem:[#allocation2 + $0x78] sm:$0xff] %vm462, %v442
      %482 = vst.msk [vmem:[#allocation2 + $0x80] sm:$0xff] %vm462, %v443
      %483 = vst.msk [vmem:[#allocation2 + $0x88] sm:$0xff] %vm462, %v444
      %484 = vst.msk [vmem:[#allocation2 + $0x90] sm:$0xff] %vm462, %v445
      %485 = vst.msk [vmem:[#allocation2 + $0x98] sm:$0xff] %vm462, %v446
      %486 = vst.msk [vmem:[#allocation2 + $0xa0] sm:$0xff] %vm462, %v447
      %487 = vst.msk [vmem:[#allocation2 + $0xa8] sm:$0xff] %vm462, %v448
      %488 = vst.msk [vmem:[#allocation2 + $0xb0] sm:$0xff] %vm462, %v449
      %489 = vst.msk [vmem:[#allocation2 + $0xb8] sm:$0xff] %vm462, %v450
      %490 = vst.msk [vmem:[#allocation2 + $0xc0] sm:$0xff] %vm462, %v451
      %491 = vst.msk [vmem:[#allocation2 + $0xc8] sm:$0xff] %vm462, %v452
      %492 = vst.msk [vmem:[#allocation2 + $0xd0] sm:$0xff] %vm462, %v453
      %493 = vst.msk [vmem:[#allocation2 + $0xd8] sm:$0xff] %vm462, %v454
      %494 = vst.msk [vmem:[#allocation2 + $0xe0] sm:$0xff] %vm462, %v455
      %495 = vst.msk [vmem:[#allocation2 + $0xe8] sm:$0xff] %vm462, %v456
      %496 = vst.msk [vmem:[#allocation2 + $0xf0] sm:$0xff] %vm462, %v457
      %497 = vst.msk [vmem:[#allocation2 + $0xf8] sm:$0xff] %vm462, %v458
      %498 = vst.msk [vmem:[#allocation2 + $0x100] sm:$0xff] %vm462, %v459
      %499 = vst.msk [vmem:[#allocation2 + $0x108] sm:$0xff] %vm462, %v460
      %500 = vst.msk [vmem:[#allocation2 + $0x110] sm:$0xff] %vm462, %v461
      %v501 = vld [vmem:[%s3] sm:$0xff]
      %v502 = vld [vmem:[%s3 + $0x8] sm:$0xff]
      %v503 = vld [vmem:[%s3 + $0x10] sm:$0xff]
      %v504 = vld [vmem:[%s3 + $0x18] sm:$0xff]
      %v505 = vld [vmem:[%s3 + $0x20] sm:$0xff]
      %v506 = vld [vmem:[%s3 + $0x28] sm:$0xff]
      %v507 = vld [vmem:[%s3 + $0x30] sm:$0xff]
      %v508 = vld [vmem:[%s3 + $0x38] sm:$0xff]
      %v509 = vld [vmem:[%s3 + $0x40] sm:$0xff]
      %v510 = vld [vmem:[%s3 + $0x48] sm:$0xff]
      %v511 = vld [vmem:[%s3 + $0x50] sm:$0xff]
      %v512 = vld [vmem:[%s3 + $0x58] sm:$0xff]
      %v513 = vld [vmem:[%s3 + $0x60] sm:$0xff]
      %v514 = vld [vmem:[%s3 + $0x68] sm:$0xff]
      %v515 = vld [vmem:[%s3 + $0x70] sm:$0xff]
      %v516 = vld [vmem:[%s3 + $0x78] sm:$0xff]
      %v517 = vld [vmem:[%s3 + $0x80] sm:$0xff]
      %v518 = vld [vmem:[%s3 + $0x88] sm:$0xff]
      %v519 = vld [vmem:[%s3 + $0x90] sm:$0xff]
      %v520 = vld [vmem:[%s3 + $0x98] sm:$0xff]
      %v521 = vld [vmem:[%s3 + $0xa0] sm:$0xff]
      %v522 = vld [vmem:[%s3 + $0xa8] sm:$0xff]
      %v523 = vld [vmem:[%s3 + $0xb0] sm:$0xff]
      %v524 = vld [vmem:[%s3 + $0xb8] sm:$0xff]
      %v525 = vld [vmem:[%s3 + $0xc0] sm:$0xff]
      %v526 = vld [vmem:[%s3 + $0xc8] sm:$0xff]
      %v527 = vld [vmem:[%s3 + $0xd0] sm:$0xff]
      %v528 = vld [vmem:[%s3 + $0xd8] sm:$0xff]
      %v529 = vld [vmem:[%s3 + $0xe0] sm:$0xff]
      %v530 = vld [vmem:[%s3 + $0xe8] sm:$0xff]
      %v531 = vld [vmem:[%s3 + $0xf0] sm:$0xff]
      %v532 = vld [vmem:[%s3 + $0xf8] sm:$0xff]
      %v533 = vld [vmem:[%s4] sm:$0xff]
      %v534 = vld [vmem:[%s4 + $0x8] sm:$0xff]
      %v535 = vld [vmem:[%s4 + $0x10] sm:$0xff]
      %v536 = vld [vmem:[%s4 + $0x18] sm:$0xff]
      %v537 = vld [vmem:[%s4 + $0x20] sm:$0xff]
      %v538 = vld [vmem:[%s4 + $0x28] sm:$0xff]
      %v539 = vld [vmem:[%s4 + $0x30] sm:$0xff]
      %v540 = vld [vmem:[%s4 + $0x38] sm:$0xff]
      %v541 = vld [vmem:[%s4 + $0x40] sm:$0xff]
      %v542 = vld [vmem:[%s4 + $0x48] sm:$0xff]
      %v543 = vld [vmem:[%s4 + $0x50] sm:$0xff]
      %v544 = vld [vmem:[%s4 + $0x58] sm:$0xff]
      %v545 = vld [vmem:[%s4 + $0x60] sm:$0xff]
      %v546 = vld [vmem:[%s4 + $0x68] sm:$0xff]
      %v547 = vld [vmem:[%s4 + $0x70] sm:$0xff]
      %v548 = vld [vmem:[%s4 + $0x78] sm:$0xff]
      %v549 = vld [vmem:[%s4 + $0x80] sm:$0xff]
      %v550 = vld [vmem:[%s4 + $0x88] sm:$0xff]
      %v551 = vld [vmem:[%s4 + $0x90] sm:$0xff]
      %v552 = vld [vmem:[%s4 + $0x98] sm:$0xff]
      %v553 = vld [vmem:[%s4 + $0xa0] sm:$0xff]
      %v554 = vld [vmem:[%s4 + $0xa8] sm:$0xff]
      %v555 = vld [vmem:[%s4 + $0xb0] sm:$0xff]
      %v556 = vld [vmem:[%s4 + $0xb8] sm:$0xff]
      %v557 = vld [vmem:[%s4 + $0xc0] sm:$0xff]
      %v558 = vld [vmem:[%s4 + $0xc8] sm:$0xff]
      %v559 = vld [vmem:[%s4 + $0xd0] sm:$0xff]
      %v560 = vld [vmem:[%s4 + $0xd8] sm:$0xff]
      %v561 = vld [vmem:[%s4 + $0xe0] sm:$0xff]
      %v562 = vld [vmem:[%s4 + $0xe8] sm:$0xff]
      %v563 = vld [vmem:[%s4 + $0xf0] sm:$0xff]
      %v564 = vld [vmem:[%s4 + $0xf8] sm:$0xff]
      %v565 = vld [vmem:[#allocation2 + $0x7] sm:$0xff]
      %v566 = vld [vmem:[#allocation2 + $0xf] sm:$0xff]
      %v567 = vld [vmem:[#allocation2 + $0x17] sm:$0xff]
      %v568 = vld [vmem:[#allocation2 + $0x1f] sm:$0xff]
      %v569 = vld [vmem:[#allocation2 + $0x27] sm:$0xff]
      %v570 = vld [vmem:[#allocation2 + $0x2f] sm:$0xff]
      %v571 = vld [vmem:[#allocation2 + $0x37] sm:$0xff]
      %v572 = vld [vmem:[#allocation2 + $0x3f] sm:$0xff]
      %v573 = vld [vmem:[#allocation2 + $0x47] sm:$0xff]
      %v574 = vld [vmem:[#allocation2 + $0x4f] sm:$0xff]
      %v575 = vld [vmem:[#allocation2 + $0x57] sm:$0xff]
      %v576 = vld [vmem:[#allocation2 + $0x5f] sm:$0xff]
      %v577 = vld [vmem:[#allocation2 + $0x67] sm:$0xff]
      %v578 = vld [vmem:[#allocation2 + $0x6f] sm:$0xff]
      %v579 = vld [vmem:[#allocation2 + $0x77] sm:$0xff]
      %v580 = vld [vmem:[#allocation2 + $0x7f] sm:$0xff]
      %v581 = vld [vmem:[#allocation2 + $0x87] sm:$0xff]
      %v582 = vld [vmem:[#allocation2 + $0x8f] sm:$0xff]
      %v583 = vld [vmem:[#allocation2 + $0x97] sm:$0xff]
      %v584 = vld [vmem:[#allocation2 + $0x9f] sm:$0xff]
      %v585 = vld [vmem:[#allocation2 + $0xa7] sm:$0xff]
      %v586 = vld [vmem:[#allocation2 + $0xaf] sm:$0xff]
      %v587 = vld [vmem:[#allocation2 + $0xb7] sm:$0xff]
      %v588 = vld [vmem:[#allocation2 + $0xbf] sm:$0xff]
      %v589 = vld [vmem:[#allocation2 + $0xc7] sm:$0xff]
      %v590 = vld [vmem:[#allocation2 + $0xcf] sm:$0xff]
      %v591 = vld [vmem:[#allocation2 + $0xd7] sm:$0xff]
      %v592 = vld [vmem:[#allocation2 + $0xdf] sm:$0xff]
      %v593 = vld [vmem:[#allocation2 + $0xe7] sm:$0xff]
      %v594 = vld [vmem:[#allocation2 + $0xef] sm:$0xff]
      %v595 = vld [vmem:[#allocation2 + $0xf7] sm:$0xff]
      %v596 = vld [vmem:[#allocation2 + $0xff] sm:$0xff]
      %598 = vset.pattern.permute.xlu0 0
      %599 = vperm.xlu0 %598, %v501
      %v600 = vpop.permute.xlu0 %599
      %603 = vset.pattern.permute.xlu0 0
      %604 = vperm.xlu0 %603, %v502
      %v605 = vpop.permute.xlu0 %604
      %608 = vset.pattern.permute.xlu0 0
      %609 = vperm.xlu0 %608, %v503
      %v610 = vpop.permute.xlu0 %609
      %613 = vset.pattern.permute.xlu0 0
      %614 = vperm.xlu0 %613, %v504
      %v615 = vpop.permute.xlu0 %614
      %618 = vset.pattern.permute.xlu0 0
      %619 = vperm.xlu0 %618, %v505
      %v620 = vpop.permute.xlu0 %619
      %623 = vset.pattern.permute.xlu0 0
      %624 = vperm.xlu0 %623, %v506
      %v625 = vpop.permute.xlu0 %624
      %628 = vset.pattern.permute.xlu0 0
      %629 = vperm.xlu0 %628, %v507
      %v630 = vpop.permute.xlu0 %629
      %633 = vset.pattern.permute.xlu0 0
      %634 = vperm.xlu0 %633, %v508
      %v635 = vpop.permute.xlu0 %634
      %638 = vset.pattern.permute.xlu0 0
      %639 = vperm.xlu0 %638, %v509
      %v640 = vpop.permute.xlu0 %639
      %643 = vset.pattern.permute.xlu0 0
      %644 = vperm.xlu0 %643, %v510
      %v645 = vpop.permute.xlu0 %644
      %648 = vset.pattern.permute.xlu0 0
      %649 = vperm.xlu0 %648, %v511
      %v650 = vpop.permute.xlu0 %649
      %653 = vset.pattern.permute.xlu0 0
      %654 = vperm.xlu0 %653, %v512
      %v655 = vpop.permute.xlu0 %654
      %658 = vset.pattern.permute.xlu0 0
      %659 = vperm.xlu0 %658, %v513
      %v660 = vpop.permute.xlu0 %659
      %663 = vset.pattern.permute.xlu0 0
      %664 = vperm.xlu0 %663, %v514
      %v665 = vpop.permute.xlu0 %664
      %668 = vset.pattern.permute.xlu0 0
      %669 = vperm.xlu0 %668, %v515
      %v670 = vpop.permute.xlu0 %669
      %673 = vset.pattern.permute.xlu0 0
      %674 = vperm.xlu0 %673, %v516
      %v675 = vpop.permute.xlu0 %674
      %678 = vset.pattern.permute.xlu0 0
      %679 = vperm.xlu0 %678, %v517
      %v680 = vpop.permute.xlu0 %679
      %683 = vset.pattern.permute.xlu0 0
      %684 = vperm.xlu0 %683, %v518
      %v685 = vpop.permute.xlu0 %684
      %688 = vset.pattern.permute.xlu0 0
      %689 = vperm.xlu0 %688, %v519
      %v690 = vpop.permute.xlu0 %689
      %693 = vset.pattern.permute.xlu0 0
      %694 = vperm.xlu0 %693, %v520
      %v695 = vpop.permute.xlu0 %694
      %698 = vset.pattern.permute.xlu0 0
      %699 = vperm.xlu0 %698, %v521
      %v700 = vpop.permute.xlu0 %699
      %703 = vset.pattern.permute.xlu0 0
      %704 = vperm.xlu0 %703, %v522
      %v705 = vpop.permute.xlu0 %704
      %708 = vset.pattern.permute.xlu0 0
      %709 = vperm.xlu0 %708, %v523
      %v710 = vpop.permute.xlu0 %709
      %713 = vset.pattern.permute.xlu0 0
      %714 = vperm.xlu0 %713, %v524
      %v715 = vpop.permute.xlu0 %714
      %718 = vset.pattern.permute.xlu0 0
      %719 = vperm.xlu0 %718, %v525
      %v720 = vpop.permute.xlu0 %719
      %723 = vset.pattern.permute.xlu0 0
      %724 = vperm.xlu0 %723, %v526
      %v725 = vpop.permute.xlu0 %724
      %728 = vset.pattern.permute.xlu0 0
      %729 = vperm.xlu0 %728, %v527
      %v730 = vpop.permute.xlu0 %729
      %733 = vset.pattern.permute.xlu0 0
      %734 = vperm.xlu0 %733, %v528
      %v735 = vpop.permute.xlu0 %734
      %738 = vset.pattern.permute.xlu0 0
      %739 = vperm.xlu0 %738, %v529
      %v740 = vpop.permute.xlu0 %739
      %743 = vset.pattern.permute.xlu0 0
      %744 = vperm.xlu0 %743, %v530
      %v745 = vpop.permute.xlu0 %744
      %748 = vset.pattern.permute.xlu0 0
      %749 = vperm.xlu0 %748, %v531
      %v750 = vpop.permute.xlu0 %749
      %753 = vset.pattern.permute.xlu0 0
      %754 = vperm.xlu0 %753, %v532
      %v755 = vpop.permute.xlu0 %754
      %v757 = vmul.f32 %v565, %v600
      %v758 = vmul.f32 %v566, %v605
      %v759 = vmul.f32 %v567, %v610
      %v760 = vmul.f32 %v568, %v615
      %v761 = vmul.f32 %v569, %v620
      %v762 = vmul.f32 %v570, %v625
      %v763 = vmul.f32 %v571, %v630
      %v764 = vmul.f32 %v572, %v635
      %v765 = vmul.f32 %v573, %v640
      %v766 = vmul.f32 %v574, %v645
      %v767 = vmul.f32 %v575, %v650
      %v768 = vmul.f32 %v576, %v655
      %v769 = vmul.f32 %v577, %v660
      %v770 = vmul.f32 %v578, %v665
      %v771 = vmul.f32 %v579, %v670
      %v772 = vmul.f32 %v580, %v675
      %v773 = vmul.f32 %v581, %v680
      %v774 = vmul.f32 %v582, %v685
      %v775 = vmul.f32 %v583, %v690
      %v776 = vmul.f32 %v584, %v695
      %v777 = vmul.f32 %v585, %v700
      %v778 = vmul.f32 %v586, %v705
      %v779 = vmul.f32 %v587, %v710
      %v780 = vmul.f32 %v588, %v715
      %v781 = vmul.f32 %v589, %v720
      %v782 = vmul.f32 %v590, %v725
      %v783 = vmul.f32 %v591, %v730
      %v784 = vmul.f32 %v592, %v735
      %v785 = vmul.f32 %v593, %v740
      %v786 = vmul.f32 %v594, %v745
      %v787 = vmul.f32 %v595, %v750
      %v788 = vmul.f32 %v596, %v755
      %v789 = vld [vmem:[#allocation2 + $0x8] sm:$0xff]
      %v790 = vld [vmem:[#allocation2 + $0x10] sm:$0xff]
      %v791 = vld [vmem:[#allocation2 + $0x18] sm:$0xff]
      %v792 = vld [vmem:[#allocation2 + $0x20] sm:$0xff]
      %v793 = vld [vmem:[#allocation2 + $0x28] sm:$0xff]
      %v794 = vld [vmem:[#allocation2 + $0x30] sm:$0xff]
      %v795 = vld [vmem:[#allocation2 + $0x38] sm:$0xff]
      %v796 = vld [vmem:[#allocation2 + $0x40] sm:$0xff]
      %v797 = vld [vmem:[#allocation2 + $0x48] sm:$0xff]
      %v798 = vld [vmem:[#allocation2 + $0x50] sm:$0xff]
      %v799 = vld [vmem:[#allocation2 + $0x58] sm:$0xff]
      %v800 = vld [vmem:[#allocation2 + $0x60] sm:$0xff]
      %v801 = vld [vmem:[#allocation2 + $0x68] sm:$0xff]
      %v802 = vld [vmem:[#allocation2 + $0x70] sm:$0xff]
      %v803 = vld [vmem:[#allocation2 + $0x78] sm:$0xff]
      %v804 = vld [vmem:[#allocation2 + $0x80] sm:$0xff]
      %v805 = vld [vmem:[#allocation2 + $0x88] sm:$0xff]
      %v806 = vld [vmem:[#allocation2 + $0x90] sm:$0xff]
      %v807 = vld [vmem:[#allocation2 + $0x98] sm:$0xff]
      %v808 = vld [vmem:[#allocation2 + $0xa0] sm:$0xff]
      %v809 = vld [vmem:[#allocation2 + $0xa8] sm:$0xff]
      %v810 = vld [vmem:[#allocation2 + $0xb0] sm:$0xff]
      %v811 = vld [vmem:[#allocation2 + $0xb8] sm:$0xff]
      %v812 = vld [vmem:[#allocation2 + $0xc0] sm:$0xff]
      %v813 = vld [vmem:[#allocation2 + $0xc8] sm:$0xff]
      %v814 = vld [vmem:[#allocation2 + $0xd0] sm:$0xff]
      %v815 = vld [vmem:[#allocation2 + $0xd8] sm:$0xff]
      %v816 = vld [vmem:[#allocation2 + $0xe0] sm:$0xff]
      %v817 = vld [vmem:[#allocation2 + $0xe8] sm:$0xff]
      %v818 = vld [vmem:[#allocation2 + $0xf0] sm:$0xff]
      %v819 = vld [vmem:[#allocation2 + $0xf8] sm:$0xff]
      %v820 = vld [vmem:[#allocation2 + $0x100] sm:$0xff]
      %v821 = vld [vmem:[#allocation2 + $0x9] sm:$0xff]
      %v822 = vld [vmem:[#allocation2 + $0x11] sm:$0xff]
      %v823 = vld [vmem:[#allocation2 + $0x19] sm:$0xff]
      %v824 = vld [vmem:[#allocation2 + $0x21] sm:$0xff]
      %v825 = vld [vmem:[#allocation2 + $0x29] sm:$0xff]
      %v826 = vld [vmem:[#allocation2 + $0x31] sm:$0xff]
      %v827 = vld [vmem:[#allocation2 + $0x39] sm:$0xff]
      %v828 = vld [vmem:[#allocation2 + $0x41] sm:$0xff]
      %v829 = vld [vmem:[#allocation2 + $0x49] sm:$0xff]
      %v830 = vld [vmem:[#allocation2 + $0x51] sm:$0xff]
      %v831 = vld [vmem:[#allocation2 + $0x59] sm:$0xff]
      %v832 = vld [vmem:[#allocation2 + $0x61] sm:$0xff]
      %v833 = vld [vmem:[#allocation2 + $0x69] sm:$0xff]
      %v834 = vld [vmem:[#allocation2 + $0x71] sm:$0xff]
      %v835 = vld [vmem:[#allocation2 + $0x79] sm:$0xff]
      %v836 = vld [vmem:[#allocation2 + $0x81] sm:$0xff]
      %v837 = vld [vmem:[#allocation2 + $0x89] sm:$0xff]
      %v838 = vld [vmem:[#allocation2 + $0x91] sm:$0xff]
      %v839 = vld [vmem:[#allocation2 + $0x99] sm:$0xff]
      %v840 = vld [vmem:[#allocation2 + $0xa1] sm:$0xff]
      %v841 = vld [vmem:[#allocation2 + $0xa9] sm:$0xff]
      %v842 = vld [vmem:[#allocation2 + $0xb1] sm:$0xff]
      %v843 = vld [vmem:[#allocation2 + $0xb9] sm:$0xff]
      %v844 = vld [vmem:[#allocation2 + $0xc1] sm:$0xff]
      %v845 = vld [vmem:[#allocation2 + $0xc9] sm:$0xff]
      %v846 = vld [vmem:[#allocation2 + $0xd1] sm:$0xff]
      %v847 = vld [vmem:[#allocation2 + $0xd9] sm:$0xff]
      %v848 = vld [vmem:[#allocation2 + $0xe1] sm:$0xff]
      %v849 = vld [vmem:[#allocation2 + $0xe9] sm:$0xff]
      %v850 = vld [vmem:[#allocation2 + $0xf1] sm:$0xff]
      %v851 = vld [vmem:[#allocation2 + $0xf9] sm:$0xff]
      %v852 = vld [vmem:[#allocation2 + $0x101] sm:$0xff]
      %854 = vset.pattern.permute.xlu0 0
      %855 = vperm.xlu0 %854, %v533
      %v856 = vpop.permute.xlu0 %855
      %859 = vset.pattern.permute.xlu0 0
      %860 = vperm.xlu0 %859, %v534
      %v861 = vpop.permute.xlu0 %860
      %864 = vset.pattern.permute.xlu0 0
      %865 = vperm.xlu0 %864, %v535
      %v866 = vpop.permute.xlu0 %865
      %869 = vset.pattern.permute.xlu0 0
      %870 = vperm.xlu0 %869, %v536
      %v871 = vpop.permute.xlu0 %870
      %874 = vset.pattern.permute.xlu0 0
      %875 = vperm.xlu0 %874, %v537
      %v876 = vpop.permute.xlu0 %875
      %879 = vset.pattern.permute.xlu0 0
      %880 = vperm.xlu0 %879, %v538
      %v881 = vpop.permute.xlu0 %880
      %884 = vset.pattern.permute.xlu0 0
      %885 = vperm.xlu0 %884, %v539
      %v886 = vpop.permute.xlu0 %885
      %889 = vset.pattern.permute.xlu0 0
      %890 = vperm.xlu0 %889, %v540
      %v891 = vpop.permute.xlu0 %890
      %894 = vset.pattern.permute.xlu0 0
      %895 = vperm.xlu0 %894, %v541
      %v896 = vpop.permute.xlu0 %895
      %899 = vset.pattern.permute.xlu0 0
      %900 = vperm.xlu0 %899, %v542
      %v901 = vpop.permute.xlu0 %900
      %904 = vset.pattern.permute.xlu0 0
      %905 = vperm.xlu0 %904, %v543
      %v906 = vpop.permute.xlu0 %905
      %909 = vset.pattern.permute.xlu0 0
      %910 = vperm.xlu0 %909, %v544
      %v911 = vpop.permute.xlu0 %910
      %914 = vset.pattern.permute.xlu0 0
      %915 = vperm.xlu0 %914, %v545
      %v916 = vpop.permute.xlu0 %915
      %919 = vset.pattern.permute.xlu0 0
      %920 = vperm.xlu0 %919, %v546
      %v921 = vpop.permute.xlu0 %920
      %924 = vset.pattern.permute.xlu0 0
      %925 = vperm.xlu0 %924, %v547
      %v926 = vpop.permute.xlu0 %925
      %929 = vset.pattern.permute.xlu0 0
      %930 = vperm.xlu0 %929, %v548
      %v931 = vpop.permute.xlu0 %930
      %934 = vset.pattern.permute.xlu0 0
      %935 = vperm.xlu0 %934, %v549
      %v936 = vpop.permute.xlu0 %935
      %939 = vset.pattern.permute.xlu0 0
      %940 = vperm.xlu0 %939, %v550
      %v941 = vpop.permute.xlu0 %940
      %944 = vset.pattern.permute.xlu0 0
      %945 = vperm.xlu0 %944, %v551
      %v946 = vpop.permute.xlu0 %945
      %949 = vset.pattern.permute.xlu0 0
      %950 = vperm.xlu0 %949, %v552
      %v951 = vpop.permute.xlu0 %950
      %954 = vset.pattern.permute.xlu0 0
      %955 = vperm.xlu0 %954, %v553
      %v956 = vpop.permute.xlu0 %955
      %959 = vset.pattern.permute.xlu0 0
      %960 = vperm.xlu0 %959, %v554
      %v961 = vpop.permute.xlu0 %960
      %964 = vset.pattern.permute.xlu0 0
      %965 = vperm.xlu0 %964, %v555
      %v966 = vpop.permute.xlu0 %965
      %969 = vset.pattern.permute.xlu0 0
      %970 = vperm.xlu0 %969, %v556
      %v971 = vpop.permute.xlu0 %970
      %974 = vset.pattern.permute.xlu0 0
      %975 = vperm.xlu0 %974, %v557
      %v976 = vpop.permute.xlu0 %975
      %979 = vset.pattern.permute.xlu0 0
      %980 = vperm.xlu0 %979, %v558
      %v981 = vpop.permute.xlu0 %980
      %984 = vset.pattern.permute.xlu0 0
      %985 = vperm.xlu0 %984, %v559
      %v986 = vpop.permute.xlu0 %985
      %989 = vset.pattern.permute.xlu0 0
      %990 = vperm.xlu0 %989, %v560
      %v991 = vpop.permute.xlu0 %990
      %994 = vset.pattern.permute.xlu0 0
      %995 = vperm.xlu0 %994, %v561
      %v996 = vpop.permute.xlu0 %995
      %999 = vset.pattern.permute.xlu0 0
      %1000 = vperm.xlu0 %999, %v562
      %v1001 = vpop.permute.xlu0 %1000
      %1004 = vset.pattern.permute.xlu0 0
      %1005 = vperm.xlu0 %1004, %v563
      %v1006 = vpop.permute.xlu0 %1005
      %1009 = vset.pattern.permute.xlu0 0
      %1010 = vperm.xlu0 %1009, %v564
      %v1011 = vpop.permute.xlu0 %1010
      %v1013 = vmul.f32 %v821, %v856
      %v1014 = vmul.f32 %v822, %v861
      %v1015 = vmul.f32 %v823, %v866
      %v1016 = vmul.f32 %v824, %v871
      %v1017 = vmul.f32 %v825, %v876
      %v1018 = vmul.f32 %v826, %v881
      %v1019 = vmul.f32 %v827, %v886
      %v1020 = vmul.f32 %v828, %v891
      %v1021 = vmul.f32 %v829, %v896
      %v1022 = vmul.f32 %v830, %v901
      %v1023 = vmul.f32 %v831, %v906
      %v1024 = vmul.f32 %v832, %v911
      %v1025 = vmul.f32 %v833, %v916
      %v1026 = vmul.f32 %v834, %v921
      %v1027 = vmul.f32 %v835, %v926
      %v1028 = vmul.f32 %v836, %v931
      %v1029 = vmul.f32 %v837, %v936
      %v1030 = vmul.f32 %v838, %v941
      %v1031 = vmul.f32 %v839, %v946
      %v1032 = vmul.f32 %v840, %v951
      %v1033 = vmul.f32 %v841, %v956
      %v1034 = vmul.f32 %v842, %v961
      %v1035 = vmul.f32 %v843, %v966
      %v1036 = vmul.f32 %v844, %v971
      %v1037 = vmul.f32 %v845, %v976
      %v1038 = vmul.f32 %v846, %v981
      %v1039 = vmul.f32 %v847, %v986
      %v1040 = vmul.f32 %v848, %v991
      %v1041 = vmul.f32 %v849, %v996
      %v1042 = vmul.f32 %v850, %v1001
      %v1043 = vmul.f32 %v851, %v1006
      %v1044 = vmul.f32 %v852, %v1011
      %v1045 = vld [vmem:[#allocation2 + $0x17] sm:$0xff]
      %v1046 = vld [vmem:[#allocation2 + $0x1f] sm:$0xff]
      %v1047 = vld [vmem:[#allocation2 + $0x27] sm:$0xff]
      %v1048 = vld [vmem:[#allocation2 + $0x2f] sm:$0xff]
      %v1049 = vld [vmem:[#allocation2 + $0x37] sm:$0xff]
      %v1050 = vld [vmem:[#allocation2 + $0x3f] sm:$0xff]
      %v1051 = vld [vmem:[#allocation2 + $0x47] sm:$0xff]
      %v1052 = vld [vmem:[#allocation2 + $0x4f] sm:$0xff]
      %v1053 = vld [vmem:[#allocation2 + $0x57] sm:$0xff]
      %v1054 = vld [vmem:[#allocation2 + $0x5f] sm:$0xff]
      %v1055 = vld [vmem:[#allocation2 + $0x67] sm:$0xff]
      %v1056 = vld [vmem:[#allocation2 + $0x6f] sm:$0xff]
      %v1057 = vld [vmem:[#allocation2 + $0x77] sm:$0xff]
      %v1058 = vld [vmem:[#allocation2 + $0x7f] sm:$0xff]
      %v1059 = vld [vmem:[#allocation2 + $0x87] sm:$0xff]
      %v1060 = vld [vmem:[#allocation2 + $0x8f] sm:$0xff]
      %v1061 = vld [vmem:[#allocation2 + $0x97] sm:$0xff]
      %v1062 = vld [vmem:[#allocation2 + $0x9f] sm:$0xff]
      %v1063 = vld [vmem:[#allocation2 + $0xa7] sm:$0xff]
      %v1064 = vld [vmem:[#allocation2 + $0xaf] sm:$0xff]
      %v1065 = vld [vmem:[#allocation2 + $0xb7] sm:$0xff]
      %v1066 = vld [vmem:[#allocation2 + $0xbf] sm:$0xff]
      %v1067 = vld [vmem:[#allocation2 + $0xc7] sm:$0xff]
      %v1068 = vld [vmem:[#allocation2 + $0xcf] sm:$0xff]
      %v1069 = vld [vmem:[#allocation2 + $0xd7] sm:$0xff]
      %v1070 = vld [vmem:[#allocation2 + $0xdf] sm:$0xff]
      %v1071 = vld [vmem:[#allocation2 + $0xe7] sm:$0xff]
      %v1072 = vld [vmem:[#allocation2 + $0xef] sm:$0xff]
      %v1073 = vld [vmem:[#allocation2 + $0xf7] sm:$0xff]
      %v1074 = vld [vmem:[#allocation2 + $0xff] sm:$0xff]
      %v1075 = vld [vmem:[#allocation2 + $0x107] sm:$0xff]
      %v1076 = vld [vmem:[#allocation2 + $0x10f] sm:$0xff]
      %v1077 = vmul.f32 %v1045, %v600
      %v1078 = vmul.f32 %v1046, %v605
      %v1079 = vmul.f32 %v1047, %v610
      %v1080 = vmul.f32 %v1048, %v615
      %v1081 = vmul.f32 %v1049, %v620
      %v1082 = vmul.f32 %v1050, %v625
      %v1083 = vmul.f32 %v1051, %v630
      %v1084 = vmul.f32 %v1052, %v635
      %v1085 = vmul.f32 %v1053, %v640
      %v1086 = vmul.f32 %v1054, %v645
      %v1087 = vmul.f32 %v1055, %v650
      %v1088 = vmul.f32 %v1056, %v655
      %v1089 = vmul.f32 %v1057, %v660
      %v1090 = vmul.f32 %v1058, %v665
      %v1091 = vmul.f32 %v1059, %v670
      %v1092 = vmul.f32 %v1060, %v675
      %v1093 = vmul.f32 %v1061, %v680
      %v1094 = vmul.f32 %v1062, %v685
      %v1095 = vmul.f32 %v1063, %v690
      %v1096 = vmul.f32 %v1064, %v695
      %v1097 = vmul.f32 %v1065, %v700
      %v1098 = vmul.f32 %v1066, %v705
      %v1099 = vmul.f32 %v1067, %v710
      %v1100 = vmul.f32 %v1068, %v715
      %v1101 = vmul.f32 %v1069, %v720
      %v1102 = vmul.f32 %v1070, %v725
      %v1103 = vmul.f32 %v1071, %v730
      %v1104 = vmul.f32 %v1072, %v735
      %v1105 = vmul.f32 %v1073, %v740
      %v1106 = vmul.f32 %v1074, %v745
      %v1107 = vmul.f32 %v1075, %v750
      %v1108 = vmul.f32 %v1076, %v755
      %v1109 = vld [vmem:[#allocation2 + $0x18] sm:$0xff]
      %v1110 = vld [vmem:[#allocation2 + $0x20] sm:$0xff]
      %v1111 = vld [vmem:[#allocation2 + $0x28] sm:$0xff]
      %v1112 = vld [vmem:[#allocation2 + $0x30] sm:$0xff]
      %v1113 = vld [vmem:[#allocation2 + $0x38] sm:$0xff]
      %v1114 = vld [vmem:[#allocation2 + $0x40] sm:$0xff]
      %v1115 = vld [vmem:[#allocation2 + $0x48] sm:$0xff]
      %v1116 = vld [vmem:[#allocation2 + $0x50] sm:$0xff]
      %v1117 = vld [vmem:[#allocation2 + $0x58] sm:$0xff]
      %v1118 = vld [vmem:[#allocation2 + $0x60] sm:$0xff]
      %v1119 = vld [vmem:[#allocation2 + $0x68] sm:$0xff]
      %v1120 = vld [vmem:[#allocation2 + $0x70] sm:$0xff]
      %v1121 = vld [vmem:[#allocation2 + $0x78] sm:$0xff]
      %v1122 = vld [vmem:[#allocation2 + $0x80] sm:$0xff]
      %v1123 = vld [vmem:[#allocation2 + $0x88] sm:$0xff]
      %v1124 = vld [vmem:[#allocation2 + $0x90] sm:$0xff]
      %v1125 = vld [vmem:[#allocation2 + $0x98] sm:$0xff]
      %v1126 = vld [vmem:[#allocation2 + $0xa0] sm:$0xff]
      %v1127 = vld [vmem:[#allocation2 + $0xa8] sm:$0xff]
      %v1128 = vld [vmem:[#allocation2 + $0xb0] sm:$0xff]
      %v1129 = vld [vmem:[#allocation2 + $0xb8] sm:$0xff]
      %v1130 = vld [vmem:[#allocation2 + $0xc0] sm:$0xff]
      %v1131 = vld [vmem:[#allocation2 + $0xc8] sm:$0xff]
      %v1132 = vld [vmem:[#allocation2 + $0xd0] sm:$0xff]
      %v1133 = vld [vmem:[#allocation2 + $0xd8] sm:$0xff]
      %v1134 = vld [vmem:[#allocation2 + $0xe0] sm:$0xff]
      %v1135 = vld [vmem:[#allocation2 + $0xe8] sm:$0xff]
      %v1136 = vld [vmem:[#allocation2 + $0xf0] sm:$0xff]
      %v1137 = vld [vmem:[#allocation2 + $0xf8] sm:$0xff]
      %v1138 = vld [vmem:[#allocation2 + $0x100] sm:$0xff]
      %v1139 = vld [vmem:[#allocation2 + $0x108] sm:$0xff]
      %v1140 = vld [vmem:[#allocation2 + $0x110] sm:$0xff]
      %v1141 = vld [vmem:[#allocation2 + $0x19] sm:$0xff]
      %v1142 = vld [vmem:[#allocation2 + $0x21] sm:$0xff]
      %v1143 = vld [vmem:[#allocation2 + $0x29] sm:$0xff]
      %v1144 = vld [vmem:[#allocation2 + $0x31] sm:$0xff]
      %v1145 = vld [vmem:[#allocation2 + $0x39] sm:$0xff]
      %v1146 = vld [vmem:[#allocation2 + $0x41] sm:$0xff]
      %v1147 = vld [vmem:[#allocation2 + $0x49] sm:$0xff]
      %v1148 = vld [vmem:[#allocation2 + $0x51] sm:$0xff]
      %v1149 = vld [vmem:[#allocation2 + $0x59] sm:$0xff]
      %v1150 = vld [vmem:[#allocation2 + $0x61] sm:$0xff]
      %v1151 = vld [vmem:[#allocation2 + $0x69] sm:$0xff]
      %v1152 = vld [vmem:[#allocation2 + $0x71] sm:$0xff]
      %v1153 = vld [vmem:[#allocation2 + $0x79] sm:$0xff]
      %v1154 = vld [vmem:[#allocation2 + $0x81] sm:$0xff]
      %v1155 = vld [vmem:[#allocation2 + $0x89] sm:$0xff]
      %v1156 = vld [vmem:[#allocation2 + $0x91] sm:$0xff]
      %v1157 = vld [vmem:[#allocation2 + $0x99] sm:$0xff]
      %v1158 = vld [vmem:[#allocation2 + $0xa1] sm:$0xff]
      %v1159 = vld [vmem:[#allocation2 + $0xa9] sm:$0xff]
      %v1160 = vld [vmem:[#allocation2 + $0xb1] sm:$0xff]
      %v1161 = vld [vmem:[#allocation2 + $0xb9] sm:$0xff]
      %v1162 = vld [vmem:[#allocation2 + $0xc1] sm:$0xff]
      %v1163 = vld [vmem:[#allocation2 + $0xc9] sm:$0xff]
      %v1164 = vld [vmem:[#allocation2 + $0xd1] sm:$0xff]
      %v1165 = vld [vmem:[#allocation2 + $0xd9] sm:$0xff]
      %v1166 = vld [vmem:[#allocation2 + $0xe1] sm:$0xff]
      %v1167 = vld [vmem:[#allocation2 + $0xe9] sm:$0xff]
      %v1168 = vld [vmem:[#allocation2 + $0xf1] sm:$0xff]
      %v1169 = vld [vmem:[#allocation2 + $0xf9] sm:$0xff]
      %v1170 = vld [vmem:[#allocation2 + $0x101] sm:$0xff]
      %v1171 = vld [vmem:[#allocation2 + $0x109] sm:$0xff]
      %v1172 = vld [vmem:[#allocation2 + $0x111] sm:$0xff]
      %v1173 = vmul.f32 %v1141, %v856
      %v1174 = vmul.f32 %v1142, %v861
      %v1175 = vmul.f32 %v1143, %v866
      %v1176 = vmul.f32 %v1144, %v871
      %v1177 = vmul.f32 %v1145, %v876
      %v1178 = vmul.f32 %v1146, %v881
      %v1179 = vmul.f32 %v1147, %v886
      %v1180 = vmul.f32 %v1148, %v891
      %v1181 = vmul.f32 %v1149, %v896
      %v1182 = vmul.f32 %v1150, %v901
      %v1183 = vmul.f32 %v1151, %v906
      %v1184 = vmul.f32 %v1152, %v911
      %v1185 = vmul.f32 %v1153, %v916
      %v1186 = vmul.f32 %v1154, %v921
      %v1187 = vmul.f32 %v1155, %v926
      %v1188 = vmul.f32 %v1156, %v931
      %v1189 = vmul.f32 %v1157, %v936
      %v1190 = vmul.f32 %v1158, %v941
      %v1191 = vmul.f32 %v1159, %v946
      %v1192 = vmul.f32 %v1160, %v951
      %v1193 = vmul.f32 %v1161, %v956
      %v1194 = vmul.f32 %v1162, %v961
      %v1195 = vmul.f32 %v1163, %v966
      %v1196 = vmul.f32 %v1164, %v971
      %v1197 = vmul.f32 %v1165, %v976
      %v1198 = vmul.f32 %v1166, %v981
      %v1199 = vmul.f32 %v1167, %v986
      %v1200 = vmul.f32 %v1168, %v991
      %v1201 = vmul.f32 %v1169, %v996
      %v1202 = vmul.f32 %v1170, %v1001
      %v1203 = vmul.f32 %v1171, %v1006
      %v1204 = vmul.f32 %v1172, %v1011
      %v1205 = vld [vmem:[#allocation2 + $0x117] sm:$0xff]
      %v1206 = vld [vmem:[#allocation2 + $0x11f] sm:$0xff]
      %v1207 = vmul.f32 %v1047, %v600
      %v1208 = vmul.f32 %v1048, %v605
      %v1209 = vmul.f32 %v1049, %v610
      %v1210 = vmul.f32 %v1050, %v615
      %v1211 = vmul.f32 %v1051, %v620
      %v1212 = vmul.f32 %v1052, %v625
      %v1213 = vmul.f32 %v1053, %v630
      %v1214 = vmul.f32 %v1054, %v635
      %v1215 = vmul.f32 %v1055, %v640
      %v1216 = vmul.f32 %v1056, %v645
      %v1217 = vmul.f32 %v1057, %v650
      %v1218 = vmul.f32 %v1058, %v655
      %v1219 = vmul.f32 %v1059, %v660
      %v1220 = vmul.f32 %v1060, %v665
      %v1221 = vmul.f32 %v1061, %v670
      %v1222 = vmul.f32 %v1062, %v675
      %v1223 = vmul.f32 %v1063, %v680
      %v1224 = vmul.f32 %v1064, %v685
      %v1225 = vmul.f32 %v1065, %v690
      %v1226 = vmul.f32 %v1066, %v695
      %v1227 = vmul.f32 %v1067, %v700
      %v1228 = vmul.f32 %v1068, %v705
      %v1229 = vmul.f32 %v1069, %v710
      %v1230 = vmul.f32 %v1070, %v715
      %v1231 = vmul.f32 %v1071, %v720
      %v1232 = vmul.f32 %v1072, %v725
      %v1233 = vmul.f32 %v1073, %v730
      %v1234 = vmul.f32 %v1074, %v735
      %v1235 = vmul.f32 %v1075, %v740
      %v1236 = vmul.f32 %v1076, %v745
      %v1237 = vmul.f32 %v1205, %v750
      %v1238 = vmul.f32 %v1206, %v755
      %v1239 = vld [vmem:[#allocation2 + $0x118] sm:$0xff]
      %v1240 = vld [vmem:[#allocation2 + $0x120] sm:$0xff]
      %v1241 = vld [vmem:[#allocation2 + $0x119] sm:$0xff]
      %v1242 = vld [vmem:[#allocation2 + $0x121] sm:$0xff]
      %v1243 = vmul.f32 %v1143, %v856
      %v1244 = vmul.f32 %v1144, %v861
      %v1245 = vmul.f32 %v1145, %v866
      %v1246 = vmul.f32 %v1146, %v871
      %v1247 = vmul.f32 %v1147, %v876
      %v1248 = vmul.f32 %v1148, %v881
      %v1249 = vmul.f32 %v1149, %v886
      %v1250 = vmul.f32 %v1150, %v891
      %v1251 = vmul.f32 %v1151, %v896
      %v1252 = vmul.f32 %v1152, %v901
      %v1253 = vmul.f32 %v1153, %v906
      %v1254 = vmul.f32 %v1154, %v911
      %v1255 = vmul.f32 %v1155, %v916
      %v1256 = vmul.f32 %v1156, %v921
      %v1257 = vmul.f32 %v1157, %v926
      %v1258 = vmul.f32 %v1158, %v931
      %v1259 = vmul.f32 %v1159, %v936
      %v1260 = vmul.f32 %v1160, %v941
      %v1261 = vmul.f32 %v1161, %v946
      %v1262 = vmul.f32 %v1162, %v951
      %v1263 = vmul.f32 %v1163, %v956
      %v1264 = vmul.f32 %v1164, %v961
      %v1265 = vmul.f32 %v1165, %v966
      %v1266 = vmul.f32 %v1166, %v971
      %v1267 = vmul.f32 %v1167, %v976
      %v1268 = vmul.f32 %v1168, %v981
      %v1269 = vmul.f32 %v1169, %v986
      %v1270 = vmul.f32 %v1170, %v991
      %v1271 = vmul.f32 %v1171, %v996
      %v1272 = vmul.f32 %v1172, %v1001
      %v1273 = vmul.f32 %v1241, %v1006
      %v1274 = vmul.f32 %v1242, %v1011
      %1307 = vrot.lane.b32.xlu0 %v789, 32
      %v1308 = vpop.permute.xlu0 %1307
      %1309 = vrot.lane.b32.xlu0 %v790, 32
      %v1310 = vpop.permute.xlu0 %1309
      %1311 = vrot.lane.b32.xlu0 %v791, 32
      %v1312 = vpop.permute.xlu0 %1311
      %1313 = vrot.lane.b32.xlu0 %v792, 32
      %v1314 = vpop.permute.xlu0 %1313
      %1315 = vrot.lane.b32.xlu0 %v793, 32
      %v1316 = vpop.permute.xlu0 %1315
      %1317 = vrot.lane.b32.xlu0 %v794, 32
      %v1318 = vpop.permute.xlu0 %1317
      %1319 = vrot.lane.b32.xlu0 %v795, 32
      %v1320 = vpop.permute.xlu0 %1319
      %1321 = vrot.lane.b32.xlu0 %v796, 32
      %v1322 = vpop.permute.xlu0 %1321
      %1323 = vrot.lane.b32.xlu0 %v797, 32
      %v1324 = vpop.permute.xlu0 %1323
      %1325 = vrot.lane.b32.xlu0 %v798, 32
      %v1326 = vpop.permute.xlu0 %1325
      %1327 = vrot.lane.b32.xlu0 %v799, 32
      %v1328 = vpop.permute.xlu0 %1327
      %1329 = vrot.lane.b32.xlu0 %v800, 32
      %v1330 = vpop.permute.xlu0 %1329
      %1331 = vrot.lane.b32.xlu0 %v801, 32
      %v1332 = vpop.permute.xlu0 %1331
      %1333 = vrot.lane.b32.xlu0 %v802, 32
      %v1334 = vpop.permute.xlu0 %1333
      %1335 = vrot.lane.b32.xlu0 %v803, 32
      %v1336 = vpop.permute.xlu0 %1335
      %1337 = vrot.lane.b32.xlu0 %v804, 32
      %v1338 = vpop.permute.xlu0 %1337
      %1339 = vrot.lane.b32.xlu0 %v805, 32
      %v1340 = vpop.permute.xlu0 %1339
      %1341 = vrot.lane.b32.xlu0 %v806, 32
      %v1342 = vpop.permute.xlu0 %1341
      %1343 = vrot.lane.b32.xlu0 %v807, 32
      %v1344 = vpop.permute.xlu0 %1343
      %1345 = vrot.lane.b32.xlu0 %v808, 32
      %v1346 = vpop.permute.xlu0 %1345
      %1347 = vrot.lane.b32.xlu0 %v809, 32
      %v1348 = vpop.permute.xlu0 %1347
      %1349 = vrot.lane.b32.xlu0 %v810, 32
      %v1350 = vpop.permute.xlu0 %1349
      %1351 = vrot.lane.b32.xlu0 %v811, 32
      %v1352 = vpop.permute.xlu0 %1351
      %1353 = vrot.lane.b32.xlu0 %v812, 32
      %v1354 = vpop.permute.xlu0 %1353
      %1355 = vrot.lane.b32.xlu0 %v813, 32
      %v1356 = vpop.permute.xlu0 %1355
      %1357 = vrot.lane.b32.xlu0 %v814, 32
      %v1358 = vpop.permute.xlu0 %1357
      %1359 = vrot.lane.b32.xlu0 %v815, 32
      %v1360 = vpop.permute.xlu0 %1359
      %1361 = vrot.lane.b32.xlu0 %v816, 32
      %v1362 = vpop.permute.xlu0 %1361
      %1363 = vrot.lane.b32.xlu0 %v817, 32
      %v1364 = vpop.permute.xlu0 %1363
      %1365 = vrot.lane.b32.xlu0 %v818, 32
      %v1366 = vpop.permute.xlu0 %1365
      %1367 = vrot.lane.b32.xlu0 %v819, 32
      %v1368 = vpop.permute.xlu0 %1367
      %1369 = vrot.lane.b32.xlu0 %v820, 32
      %v1370 = vpop.permute.xlu0 %1369
      %1435 = vrot.lane.b32.xlu0 %v1013, 64
      %v1436 = vpop.permute.xlu0 %1435
      %1437 = vrot.lane.b32.xlu0 %v1014, 64
      %v1438 = vpop.permute.xlu0 %1437
      %1439 = vrot.lane.b32.xlu0 %v1015, 64
      %v1440 = vpop.permute.xlu0 %1439
      %1441 = vrot.lane.b32.xlu0 %v1016, 64
      %v1442 = vpop.permute.xlu0 %1441
      %1443 = vrot.lane.b32.xlu0 %v1017, 64
      %v1444 = vpop.permute.xlu0 %1443
      %1445 = vrot.lane.b32.xlu0 %v1018, 64
      %v1446 = vpop.permute.xlu0 %1445
      %1447 = vrot.lane.b32.xlu0 %v1019, 64
      %v1448 = vpop.permute.xlu0 %1447
      %1449 = vrot.lane.b32.xlu0 %v1020, 64
      %v1450 = vpop.permute.xlu0 %1449
      %1451 = vrot.lane.b32.xlu0 %v1021, 64
      %v1452 = vpop.permute.xlu0 %1451
      %1453 = vrot.lane.b32.xlu0 %v1022, 64
      %v1454 = vpop.permute.xlu0 %1453
      %1455 = vrot.lane.b32.xlu0 %v1023, 64
      %v1456 = vpop.permute.xlu0 %1455
      %1457 = vrot.lane.b32.xlu0 %v1024, 64
      %v1458 = vpop.permute.xlu0 %1457
      %1459 = vrot.lane.b32.xlu0 %v1025, 64
      %v1460 = vpop.permute.xlu0 %1459
      %1461 = vrot.lane.b32.xlu0 %v1026, 64
      %v1462 = vpop.permute.xlu0 %1461
      %1463 = vrot.lane.b32.xlu0 %v1027, 64
      %v1464 = vpop.permute.xlu0 %1463
      %1465 = vrot.lane.b32.xlu0 %v1028, 64
      %v1466 = vpop.permute.xlu0 %1465
      %1467 = vrot.lane.b32.xlu0 %v1029, 64
      %v1468 = vpop.permute.xlu0 %1467
      %1469 = vrot.lane.b32.xlu0 %v1030, 64
      %v1470 = vpop.permute.xlu0 %1469
      %1471 = vrot.lane.b32.xlu0 %v1031, 64
      %v1472 = vpop.permute.xlu0 %1471
      %1473 = vrot.lane.b32.xlu0 %v1032, 64
      %v1474 = vpop.permute.xlu0 %1473
      %1475 = vrot.lane.b32.xlu0 %v1033, 64
      %v1476 = vpop.permute.xlu0 %1475
      %1477 = vrot.lane.b32.xlu0 %v1034, 64
      %v1478 = vpop.permute.xlu0 %1477
      %1479 = vrot.lane.b32.xlu0 %v1035, 64
      %v1480 = vpop.permute.xlu0 %1479
      %1481 = vrot.lane.b32.xlu0 %v1036, 64
      %v1482 = vpop.permute.xlu0 %1481
      %1483 = vrot.lane.b32.xlu0 %v1037, 64
      %v1484 = vpop.permute.xlu0 %1483
      %1485 = vrot.lane.b32.xlu0 %v1038, 64
      %v1486 = vpop.permute.xlu0 %1485
      %1487 = vrot.lane.b32.xlu0 %v1039, 64
      %v1488 = vpop.permute.xlu0 %1487
      %1489 = vrot.lane.b32.xlu0 %v1040, 64
      %v1490 = vpop.permute.xlu0 %1489
      %1491 = vrot.lane.b32.xlu0 %v1041, 64
      %v1492 = vpop.permute.xlu0 %1491
      %1493 = vrot.lane.b32.xlu0 %v1042, 64
      %v1494 = vpop.permute.xlu0 %1493
      %1495 = vrot.lane.b32.xlu0 %v1043, 64
      %v1496 = vpop.permute.xlu0 %1495
      %1497 = vrot.lane.b32.xlu0 %v1044, 64
      %v1498 = vpop.permute.xlu0 %1497
      %1563 = vrot.lane.b32.xlu0 %v1077, 96
      %v1564 = vpop.permute.xlu0 %1563
      %1565 = vrot.lane.b32.xlu0 %v1078, 96
      %v1566 = vpop.permute.xlu0 %1565
      %1567 = vrot.lane.b32.xlu0 %v1079, 96
      %v1568 = vpop.permute.xlu0 %1567
      %1569 = vrot.lane.b32.xlu0 %v1080, 96
      %v1570 = vpop.permute.xlu0 %1569
      %1571 = vrot.lane.b32.xlu0 %v1081, 96
      %v1572 = vpop.permute.xlu0 %1571
      %1573 = vrot.lane.b32.xlu0 %v1082, 96
      %v1574 = vpop.permute.xlu0 %1573
      %1575 = vrot.lane.b32.xlu0 %v1083, 96
      %v1576 = vpop.permute.xlu0 %1575
      %1577 = vrot.lane.b32.xlu0 %v1084, 96
      %v1578 = vpop.permute.xlu0 %1577
      %1579 = vrot.lane.b32.xlu0 %v1085, 96
      %v1580 = vpop.permute.xlu0 %1579
      %1581 = vrot.lane.b32.xlu0 %v1086, 96
      %v1582 = vpop.permute.xlu0 %1581
      %1583 = vrot.lane.b32.xlu0 %v1087, 96
      %v1584 = vpop.permute.xlu0 %1583
      %1585 = vrot.lane.b32.xlu0 %v1088, 96
      %v1586 = vpop.permute.xlu0 %1585
      %1587 = vrot.lane.b32.xlu0 %v1089, 96
      %v1588 = vpop.permute.xlu0 %1587
      %1589 = vrot.lane.b32.xlu0 %v1090, 96
      %v1590 = vpop.permute.xlu0 %1589
      %1591 = vrot.lane.b32.xlu0 %v1091, 96
      %v1592 = vpop.permute.xlu0 %1591
      %1593 = vrot.lane.b32.xlu0 %v1092, 96
      %v1594 = vpop.permute.xlu0 %1593
      %1595 = vrot.lane.b32.xlu0 %v1093, 96
      %v1596 = vpop.permute.xlu0 %1595
      %1597 = vrot.lane.b32.xlu0 %v1094, 96
      %v1598 = vpop.permute.xlu0 %1597
      %1599 = vrot.lane.b32.xlu0 %v1095, 96
      %v1600 = vpop.permute.xlu0 %1599
      %1601 = vrot.lane.b32.xlu0 %v1096, 96
      %v1602 = vpop.permute.xlu0 %1601
      %1603 = vrot.lane.b32.xlu0 %v1097, 96
      %v1604 = vpop.permute.xlu0 %1603
      %1605 = vrot.lane.b32.xlu0 %v1098, 96
      %v1606 = vpop.permute.xlu0 %1605
      %1607 = vrot.lane.b32.xlu0 %v1099, 96
      %v1608 = vpop.permute.xlu0 %1607
      %1609 = vrot.lane.b32.xlu0 %v1100, 96
      %v1610 = vpop.permute.xlu0 %1609
      %1611 = vrot.lane.b32.xlu0 %v1101, 96
      %v1612 = vpop.permute.xlu0 %1611
      %1613 = vrot.lane.b32.xlu0 %v1102, 96
      %v1614 = vpop.permute.xlu0 %1613
      %1615 = vrot.lane.b32.xlu0 %v1103, 96
      %v1616 = vpop.permute.xlu0 %1615
      %1617 = vrot.lane.b32.xlu0 %v1104, 96
      %v1618 = vpop.permute.xlu0 %1617
      %1619 = vrot.lane.b32.xlu0 %v1105, 96
      %v1620 = vpop.permute.xlu0 %1619
      %1621 = vrot.lane.b32.xlu0 %v1106, 96
      %v1622 = vpop.permute.xlu0 %1621
      %1623 = vrot.lane.b32.xlu0 %v1107, 96
      %v1624 = vpop.permute.xlu0 %1623
      %1625 = vrot.lane.b32.xlu0 %v1108, 96
      %v1626 = vpop.permute.xlu0 %1625
      %1691 = vrot.lane.b32.xlu0 %v1173, 32
      %v1692 = vpop.permute.xlu0 %1691
      %1693 = vrot.lane.b32.xlu0 %v1174, 32
      %v1694 = vpop.permute.xlu0 %1693
      %1695 = vrot.lane.b32.xlu0 %v1175, 32
      %v1696 = vpop.permute.xlu0 %1695
      %1697 = vrot.lane.b32.xlu0 %v1176, 32
      %v1698 = vpop.permute.xlu0 %1697
      %1699 = vrot.lane.b32.xlu0 %v1177, 32
      %v1700 = vpop.permute.xlu0 %1699
      %1701 = vrot.lane.b32.xlu0 %v1178, 32
      %v1702 = vpop.permute.xlu0 %1701
      %1703 = vrot.lane.b32.xlu0 %v1179, 32
      %v1704 = vpop.permute.xlu0 %1703
      %1705 = vrot.lane.b32.xlu0 %v1180, 32
      %v1706 = vpop.permute.xlu0 %1705
      %1707 = vrot.lane.b32.xlu0 %v1181, 32
      %v1708 = vpop.permute.xlu0 %1707
      %1709 = vrot.lane.b32.xlu0 %v1182, 32
      %v1710 = vpop.permute.xlu0 %1709
      %1711 = vrot.lane.b32.xlu0 %v1183, 32
      %v1712 = vpop.permute.xlu0 %1711
      %1713 = vrot.lane.b32.xlu0 %v1184, 32
      %v1714 = vpop.permute.xlu0 %1713
      %1715 = vrot.lane.b32.xlu0 %v1185, 32
      %v1716 = vpop.permute.xlu0 %1715
      %1717 = vrot.lane.b32.xlu0 %v1186, 32
      %v1718 = vpop.permute.xlu0 %1717
      %1719 = vrot.lane.b32.xlu0 %v1187, 32
      %v1720 = vpop.permute.xlu0 %1719
      %1721 = vrot.lane.b32.xlu0 %v1188, 32
      %v1722 = vpop.permute.xlu0 %1721
      %1723 = vrot.lane.b32.xlu0 %v1189, 32
      %v1724 = vpop.permute.xlu0 %1723
      %1725 = vrot.lane.b32.xlu0 %v1190, 32
      %v1726 = vpop.permute.xlu0 %1725
      %1727 = vrot.lane.b32.xlu0 %v1191, 32
      %v1728 = vpop.permute.xlu0 %1727
      %1729 = vrot.lane.b32.xlu0 %v1192, 32
      %v1730 = vpop.permute.xlu0 %1729
      %1731 = vrot.lane.b32.xlu0 %v1193, 32
      %v1732 = vpop.permute.xlu0 %1731
      %1733 = vrot.lane.b32.xlu0 %v1194, 32
      %v1734 = vpop.permute.xlu0 %1733
      %1735 = vrot.lane.b32.xlu0 %v1195, 32
      %v1736 = vpop.permute.xlu0 %1735
      %1737 = vrot.lane.b32.xlu0 %v1196, 32
      %v1738 = vpop.permute.xlu0 %1737
      %1739 = vrot.lane.b32.xlu0 %v1197, 32
      %v1740 = vpop.permute.xlu0 %1739
      %1741 = vrot.lane.b32.xlu0 %v1198, 32
      %v1742 = vpop.permute.xlu0 %1741
      %1743 = vrot.lane.b32.xlu0 %v1199, 32
      %v1744 = vpop.permute.xlu0 %1743
      %1745 = vrot.lane.b32.xlu0 %v1200, 32
      %v1746 = vpop.permute.xlu0 %1745
      %1747 = vrot.lane.b32.xlu0 %v1201, 32
      %v1748 = vpop.permute.xlu0 %1747
      %1749 = vrot.lane.b32.xlu0 %v1202, 32
      %v1750 = vpop.permute.xlu0 %1749
      %1751 = vrot.lane.b32.xlu0 %v1203, 32
      %v1752 = vpop.permute.xlu0 %1751
      %1753 = vrot.lane.b32.xlu0 %v1204, 32
      %v1754 = vpop.permute.xlu0 %1753
      %1819 = vrot.lane.b32.xlu0 %v1207, 64
      %v1820 = vpop.permute.xlu0 %1819
      %1821 = vrot.lane.b32.xlu0 %v1208, 64
      %v1822 = vpop.permute.xlu0 %1821
      %1823 = vrot.lane.b32.xlu0 %v1209, 64
      %v1824 = vpop.permute.xlu0 %1823
      %1825 = vrot.lane.b32.xlu0 %v1210, 64
      %v1826 = vpop.permute.xlu0 %1825
      %1827 = vrot.lane.b32.xlu0 %v1211, 64
      %v1828 = vpop.permute.xlu0 %1827
      %1829 = vrot.lane.b32.xlu0 %v1212, 64
      %v1830 = vpop.permute.xlu0 %1829
      %1831 = vrot.lane.b32.xlu0 %v1213, 64
      %v1832 = vpop.permute.xlu0 %1831
      %1833 = vrot.lane.b32.xlu0 %v1214, 64
      %v1834 = vpop.permute.xlu0 %1833
      %1835 = vrot.lane.b32.xlu0 %v1215, 64
      %v1836 = vpop.permute.xlu0 %1835
      %1837 = vrot.lane.b32.xlu0 %v1216, 64
      %v1838 = vpop.permute.xlu0 %1837
      %1839 = vrot.lane.b32.xlu0 %v1217, 64
      %v1840 = vpop.permute.xlu0 %1839
      %1841 = vrot.lane.b32.xlu0 %v1218, 64
      %v1842 = vpop.permute.xlu0 %1841
      %1843 = vrot.lane.b32.xlu0 %v1219, 64
      %v1844 = vpop.permute.xlu0 %1843
      %1845 = vrot.lane.b32.xlu0 %v1220, 64
      %v1846 = vpop.permute.xlu0 %1845
      %1847 = vrot.lane.b32.xlu0 %v1221, 64
      %v1848 = vpop.permute.xlu0 %1847
      %1849 = vrot.lane.b32.xlu0 %v1222, 64
      %v1850 = vpop.permute.xlu0 %1849
      %1851 = vrot.lane.b32.xlu0 %v1223, 64
      %v1852 = vpop.permute.xlu0 %1851
      %1853 = vrot.lane.b32.xlu0 %v1224, 64
      %v1854 = vpop.permute.xlu0 %1853
      %1855 = vrot.lane.b32.xlu0 %v1225, 64
      %v1856 = vpop.permute.xlu0 %1855
      %1857 = vrot.lane.b32.xlu0 %v1226, 64
      %v1858 = vpop.permute.xlu0 %1857
      %1859 = vrot.lane.b32.xlu0 %v1227, 64
      %v1860 = vpop.permute.xlu0 %1859
      %1861 = vrot.lane.b32.xlu0 %v1228, 64
      %v1862 = vpop.permute.xlu0 %1861
      %1863 = vrot.lane.b32.xlu0 %v1229, 64
      %v1864 = vpop.permute.xlu0 %1863
      %1865 = vrot.lane.b32.xlu0 %v1230, 64
      %v1866 = vpop.permute.xlu0 %1865
      %1867 = vrot.lane.b32.xlu0 %v1231, 64
      %v1868 = vpop.permute.xlu0 %1867
      %1869 = vrot.lane.b32.xlu0 %v1232, 64
      %v1870 = vpop.permute.xlu0 %1869
      %1871 = vrot.lane.b32.xlu0 %v1233, 64
      %v1872 = vpop.permute.xlu0 %1871
      %1873 = vrot.lane.b32.xlu0 %v1234, 64
      %v1874 = vpop.permute.xlu0 %1873
      %1875 = vrot.lane.b32.xlu0 %v1235, 64
      %v1876 = vpop.permute.xlu0 %1875
      %1877 = vrot.lane.b32.xlu0 %v1236, 64
      %v1878 = vpop.permute.xlu0 %1877
      %1879 = vrot.lane.b32.xlu0 %v1237, 64
      %v1880 = vpop.permute.xlu0 %1879
      %1881 = vrot.lane.b32.xlu0 %v1238, 64
      %v1882 = vpop.permute.xlu0 %1881
      %1947 = vrot.lane.b32.xlu0 %v1111, 96
      %v1948 = vpop.permute.xlu0 %1947
      %1949 = vrot.lane.b32.xlu0 %v1112, 96
      %v1950 = vpop.permute.xlu0 %1949
      %1951 = vrot.lane.b32.xlu0 %v1113, 96
      %v1952 = vpop.permute.xlu0 %1951
      %1953 = vrot.lane.b32.xlu0 %v1114, 96
      %v1954 = vpop.permute.xlu0 %1953
      %1955 = vrot.lane.b32.xlu0 %v1115, 96
      %v1956 = vpop.permute.xlu0 %1955
      %1957 = vrot.lane.b32.xlu0 %v1116, 96
      %v1958 = vpop.permute.xlu0 %1957
      %1959 = vrot.lane.b32.xlu0 %v1117, 96
      %v1960 = vpop.permute.xlu0 %1959
      %1961 = vrot.lane.b32.xlu0 %v1118, 96
      %v1962 = vpop.permute.xlu0 %1961
      %1963 = vrot.lane.b32.xlu0 %v1119, 96
      %v1964 = vpop.permute.xlu0 %1963
      %1965 = vrot.lane.b32.xlu0 %v1120, 96
      %v1966 = vpop.permute.xlu0 %1965
      %1967 = vrot.lane.b32.xlu0 %v1121, 96
      %v1968 = vpop.permute.xlu0 %1967
      %1969 = vrot.lane.b32.xlu0 %v1122, 96
      %v1970 = vpop.permute.xlu0 %1969
      %1971 = vrot.lane.b32.xlu0 %v1123, 96
      %v1972 = vpop.permute.xlu0 %1971
      %1973 = vrot.lane.b32.xlu0 %v1124, 96
      %v1974 = vpop.permute.xlu0 %1973
      %1975 = vrot.lane.b32.xlu0 %v1125, 96
      %v1976 = vpop.permute.xlu0 %1975
      %1977 = vrot.lane.b32.xlu0 %v1126, 96
      %v1978 = vpop.permute.xlu0 %1977
      %1979 = vrot.lane.b32.xlu0 %v1127, 96
      %v1980 = vpop.permute.xlu0 %1979
      %1981 = vrot.lane.b32.xlu0 %v1128, 96
      %v1982 = vpop.permute.xlu0 %1981
      %1983 = vrot.lane.b32.xlu0 %v1129, 96
      %v1984 = vpop.permute.xlu0 %1983
      %1985 = vrot.lane.b32.xlu0 %v1130, 96
      %v1986 = vpop.permute.xlu0 %1985
      %1987 = vrot.lane.b32.xlu0 %v1131, 96
      %v1988 = vpop.permute.xlu0 %1987
      %1989 = vrot.lane.b32.xlu0 %v1132, 96
      %v1990 = vpop.permute.xlu0 %1989
      %1991 = vrot.lane.b32.xlu0 %v1133, 96
      %v1992 = vpop.permute.xlu0 %1991
      %1993 = vrot.lane.b32.xlu0 %v1134, 96
      %v1994 = vpop.permute.xlu0 %1993
      %1995 = vrot.lane.b32.xlu0 %v1135, 96
      %v1996 = vpop.permute.xlu0 %1995
      %1997 = vrot.lane.b32.xlu0 %v1136, 96
      %v1998 = vpop.permute.xlu0 %1997
      %1999 = vrot.lane.b32.xlu0 %v1137, 96
      %v2000 = vpop.permute.xlu0 %1999
      %2001 = vrot.lane.b32.xlu0 %v1138, 96
      %v2002 = vpop.permute.xlu0 %2001
      %2003 = vrot.lane.b32.xlu0 %v1139, 96
      %v2004 = vpop.permute.xlu0 %2003
      %2005 = vrot.lane.b32.xlu0 %v1140, 96
      %v2006 = vpop.permute.xlu0 %2005
      %2007 = vrot.lane.b32.xlu0 %v1239, 96
      %v2008 = vpop.permute.xlu0 %2007
      %2009 = vrot.lane.b32.xlu0 %v1240, 96
      %v2010 = vpop.permute.xlu0 %2009
      %v2043 = vsel %vm462, %v757, %v1308
      %v2044 = vsel %vm462, %v758, %v1310
      %v2045 = vsel %vm462, %v759, %v1312
      %v2046 = vsel %vm462, %v760, %v1314
      %v2047 = vsel %vm462, %v761, %v1316
      %v2048 = vsel %vm462, %v762, %v1318
      %v2049 = vsel %vm462, %v763, %v1320
      %v2050 = vsel %vm462, %v764, %v1322
      %v2051 = vsel %vm462, %v765, %v1324
      %v2052 = vsel %vm462, %v766, %v1326
      %v2053 = vsel %vm462, %v767, %v1328
      %v2054 = vsel %vm462, %v768, %v1330
      %v2055 = vsel %vm462, %v769, %v1332
      %v2056 = vsel %vm462, %v770, %v1334
      %v2057 = vsel %vm462, %v771, %v1336
      %v2058 = vsel %vm462, %v772, %v1338
      %v2059 = vsel %vm462, %v773, %v1340
      %v2060 = vsel %vm462, %v774, %v1342
      %v2061 = vsel %vm462, %v775, %v1344
      %v2062 = vsel %vm462, %v776, %v1346
      %v2063 = vsel %vm462, %v777, %v1348
      %v2064 = vsel %vm462, %v778, %v1350
      %v2065 = vsel %vm462, %v779, %v1352
      %v2066 = vsel %vm462, %v780, %v1354
      %v2067 = vsel %vm462, %v781, %v1356
      %v2068 = vsel %vm462, %v782, %v1358
      %v2069 = vsel %vm462, %v783, %v1360
      %v2070 = vsel %vm462, %v784, %v1362
      %v2071 = vsel %vm462, %v785, %v1364
      %v2072 = vsel %vm462, %v786, %v1366
      %v2073 = vsel %vm462, %v787, %v1368
      %v2074 = vsel %vm462, %v788, %v1370
      %vm2075 = vcmask 523264
      %v2076 = vsel %vm2075, %v2043, %v1436
      %v2077 = vsel %vm2075, %v2044, %v1438
      %v2078 = vsel %vm2075, %v2045, %v1440
      %v2079 = vsel %vm2075, %v2046, %v1442
      %v2080 = vsel %vm2075, %v2047, %v1444
      %v2081 = vsel %vm2075, %v2048, %v1446
      %v2082 = vsel %vm2075, %v2049, %v1448
      %v2083 = vsel %vm2075, %v2050, %v1450
      %v2084 = vsel %vm2075, %v2051, %v1452
      %v2085 = vsel %vm2075, %v2052, %v1454
      %v2086 = vsel %vm2075, %v2053, %v1456
      %v2087 = vsel %vm2075, %v2054, %v1458
      %v2088 = vsel %vm2075, %v2055, %v1460
      %v2089 = vsel %vm2075, %v2056, %v1462
      %v2090 = vsel %vm2075, %v2057, %v1464
      %v2091 = vsel %vm2075, %v2058, %v1466
      %v2092 = vsel %vm2075, %v2059, %v1468
      %v2093 = vsel %vm2075, %v2060, %v1470
      %v2094 = vsel %vm2075, %v2061, %v1472
      %v2095 = vsel %vm2075, %v2062, %v1474
      %v2096 = vsel %vm2075, %v2063, %v1476
      %v2097 = vsel %vm2075, %v2064, %v1478
      %v2098 = vsel %vm2075, %v2065, %v1480
      %v2099 = vsel %vm2075, %v2066, %v1482
      %v2100 = vsel %vm2075, %v2067, %v1484
      %v2101 = vsel %vm2075, %v2068, %v1486
      %v2102 = vsel %vm2075, %v2069, %v1488
      %v2103 = vsel %vm2075, %v2070, %v1490
      %v2104 = vsel %vm2075, %v2071, %v1492
      %v2105 = vsel %vm2075, %v2072, %v1494
      %v2106 = vsel %vm2075, %v2073, %v1496
      %v2107 = vsel %vm2075, %v2074, %v1498
      %vm2108 = vcmask 785408
      %v2109 = vsel %vm2108, %v2076, %v1564
      %v2110 = vsel %vm2108, %v2077, %v1566
      %v2111 = vsel %vm2108, %v2078, %v1568
      %v2112 = vsel %vm2108, %v2079, %v1570
      %v2113 = vsel %vm2108, %v2080, %v1572
      %v2114 = vsel %vm2108, %v2081, %v1574
      %v2115 = vsel %vm2108, %v2082, %v1576
      %v2116 = vsel %vm2108, %v2083, %v1578
      %v2117 = vsel %vm2108, %v2084, %v1580
      %v2118 = vsel %vm2108, %v2085, %v1582
      %v2119 = vsel %vm2108, %v2086, %v1584
      %v2120 = vsel %vm2108, %v2087, %v1586
      %v2121 = vsel %vm2108, %v2088, %v1588
      %v2122 = vsel %vm2108, %v2089, %v1590
      %v2123 = vsel %vm2108, %v2090, %v1592
      %v2124 = vsel %vm2108, %v2091, %v1594
      %v2125 = vsel %vm2108, %v2092, %v1596
      %v2126 = vsel %vm2108, %v2093, %v1598
      %v2127 = vsel %vm2108, %v2094, %v1600
      %v2128 = vsel %vm2108, %v2095, %v1602
      %v2129 = vsel %vm2108, %v2096, %v1604
      %v2130 = vsel %vm2108, %v2097, %v1606
      %v2131 = vsel %vm2108, %v2098, %v1608
      %v2132 = vsel %vm2108, %v2099, %v1610
      %v2133 = vsel %vm2108, %v2100, %v1612
      %v2134 = vsel %vm2108, %v2101, %v1614
      %v2135 = vsel %vm2108, %v2102, %v1616
      %v2136 = vsel %vm2108, %v2103, %v1618
      %v2137 = vsel %vm2108, %v2104, %v1620
      %v2138 = vsel %vm2108, %v2105, %v1622
      %v2139 = vsel %vm2108, %v2106, %v1624
      %v2140 = vsel %vm2108, %v2107, %v1626
      %v2141 = vsel %vm462, %v1109, %v1692
      %v2142 = vsel %vm462, %v1110, %v1694
      %v2143 = vsel %vm462, %v1111, %v1696
      %v2144 = vsel %vm462, %v1112, %v1698
      %v2145 = vsel %vm462, %v1113, %v1700
      %v2146 = vsel %vm462, %v1114, %v1702
      %v2147 = vsel %vm462, %v1115, %v1704
      %v2148 = vsel %vm462, %v1116, %v1706
      %v2149 = vsel %vm462, %v1117, %v1708
      %v2150 = vsel %vm462, %v1118, %v1710
      %v2151 = vsel %vm462, %v1119, %v1712
      %v2152 = vsel %vm462, %v1120, %v1714
      %v2153 = vsel %vm462, %v1121, %v1716
      %v2154 = vsel %vm462, %v1122, %v1718
      %v2155 = vsel %vm462, %v1123, %v1720
      %v2156 = vsel %vm462, %v1124, %v1722
      %v2157 = vsel %vm462, %v1125, %v1724
      %v2158 = vsel %vm462, %v1126, %v1726
      %v2159 = vsel %vm462, %v1127, %v1728
      %v2160 = vsel %vm462, %v1128, %v1730
      %v2161 = vsel %vm462, %v1129, %v1732
      %v2162 = vsel %vm462, %v1130, %v1734
      %v2163 = vsel %vm462, %v1131, %v1736
      %v2164 = vsel %vm462, %v1132, %v1738
      %v2165 = vsel %vm462, %v1133, %v1740
      %v2166 = vsel %vm462, %v1134, %v1742
      %v2167 = vsel %vm462, %v1135, %v1744
      %v2168 = vsel %vm462, %v1136, %v1746
      %v2169 = vsel %vm462, %v1137, %v1748
      %v2170 = vsel %vm462, %v1138, %v1750
      %v2171 = vsel %vm462, %v1139, %v1752
      %v2172 = vsel %vm462, %v1140, %v1754
      %v2173 = vsel %vm2075, %v2141, %v1820
      %v2174 = vsel %vm2075, %v2142, %v1822
      %v2175 = vsel %vm2075, %v2143, %v1824
      %v2176 = vsel %vm2075, %v2144, %v1826
      %v2177 = vsel %vm2075, %v2145, %v1828
      %v2178 = vsel %vm2075, %v2146, %v1830
      %v2179 = vsel %vm2075, %v2147, %v1832
      %v2180 = vsel %vm2075, %v2148, %v1834
      %v2181 = vsel %vm2075, %v2149, %v1836
      %v2182 = vsel %vm2075, %v2150, %v1838
      %v2183 = vsel %vm2075, %v2151, %v1840
      %v2184 = vsel %vm2075, %v2152, %v1842
      %v2185 = vsel %vm2075, %v2153, %v1844
      %v2186 = vsel %vm2075, %v2154, %v1846
      %v2187 = vsel %vm2075, %v2155, %v1848
      %v2188 = vsel %vm2075, %v2156, %v1850
      %v2189 = vsel %vm2075, %v2157, %v1852
      %v2190 = vsel %vm2075, %v2158, %v1854
      %v2191 = vsel %vm2075, %v2159, %v1856
      %v2192 = vsel %vm2075, %v2160, %v1858
      %v2193 = vsel %vm2075, %v2161, %v1860
      %v2194 = vsel %vm2075, %v2162, %v1862
      %v2195 = vsel %vm2075, %v2163, %v1864
      %v2196 = vsel %vm2075, %v2164, %v1866
      %v2197 = vsel %vm2075, %v2165, %v1868
      %v2198 = vsel %vm2075, %v2166, %v1870
      %v2199 = vsel %vm2075, %v2167, %v1872
      %v2200 = vsel %vm2075, %v2168, %v1874
      %v2201 = vsel %vm2075, %v2169, %v1876
      %v2202 = vsel %vm2075, %v2170, %v1878
      %v2203 = vsel %vm2075, %v2171, %v1880
      %v2204 = vsel %vm2075, %v2172, %v1882
      %v2205 = vsel %vm2108, %v2173, %v1948
      %v2206 = vsel %vm2108, %v2174, %v1950
      %v2207 = vsel %vm2108, %v2175, %v1952
      %v2208 = vsel %vm2108, %v2176, %v1954
      %v2209 = vsel %vm2108, %v2177, %v1956
      %v2210 = vsel %vm2108, %v2178, %v1958
      %v2211 = vsel %vm2108, %v2179, %v1960
      %v2212 = vsel %vm2108, %v2180, %v1962
      %v2213 = vsel %vm2108, %v2181, %v1964
      %v2214 = vsel %vm2108, %v2182, %v1966
      %v2215 = vsel %vm2108, %v2183, %v1968
      %v2216 = vsel %vm2108, %v2184, %v1970
      %v2217 = vsel %vm2108, %v2185, %v1972
      %v2218 = vsel %vm2108, %v2186, %v1974
      %v2219 = vsel %vm2108, %v2187, %v1976
      %v2220 = vsel %vm2108, %v2188, %v1978
      %v2221 = vsel %vm2108, %v2189, %v1980
      %v2222 = vsel %vm2108, %v2190, %v1982
      %v2223 = vsel %vm2108, %v2191, %v1984
      %v2224 = vsel %vm2108, %v2192, %v1986
      %v2225 = vsel %vm2108, %v2193, %v1988
      %v2226 = vsel %vm2108, %v2194, %v1990
      %v2227 = vsel %vm2108, %v2195, %v1992
      %v2228 = vsel %vm2108, %v2196, %v1994
      %v2229 = vsel %vm2108, %v2197, %v1996
      %v2230 = vsel %vm2108, %v2198, %v1998
      %v2231 = vsel %vm2108, %v2199, %v2000
      %v2232 = vsel %vm2108, %v2200, %v2002
      %v2233 = vsel %vm2108, %v2201, %v2004
      %v2234 = vsel %vm2108, %v2202, %v2006
      %v2235 = vsel %vm2108, %v2203, %v2008
      %v2236 = vsel %vm2108, %v2204, %v2010
      %v2237 = vld [vmem:[%s5] sm:$0xff]
      %v2238 = vld [vmem:[%s5 + $0x8] sm:$0xff]
      %v2239 = vld [vmem:[%s5 + $0x10] sm:$0xff]
      %v2240 = vld [vmem:[%s5 + $0x18] sm:$0xff]
      %v2241 = vld [vmem:[%s5 + $0x20] sm:$0xff]
      %v2242 = vld [vmem:[%s5 + $0x28] sm:$0xff]
      %v2243 = vld [vmem:[%s5 + $0x30] sm:$0xff]
      %v2244 = vld [vmem:[%s5 + $0x38] sm:$0xff]
      %v2245 = vld [vmem:[%s5 + $0x40] sm:$0xff]
      %v2246 = vld [vmem:[%s5 + $0x48] sm:$0xff]
      %v2247 = vld [vmem:[%s5 + $0x50] sm:$0xff]
      %v2248 = vld [vmem:[%s5 + $0x58] sm:$0xff]
      %v2249 = vld [vmem:[%s5 + $0x60] sm:$0xff]
      %v2250 = vld [vmem:[%s5 + $0x68] sm:$0xff]
      %v2251 = vld [vmem:[%s5 + $0x70] sm:$0xff]
      %v2252 = vld [vmem:[%s5 + $0x78] sm:$0xff]
      %v2253 = vld [vmem:[%s5 + $0x80] sm:$0xff]
      %v2254 = vld [vmem:[%s5 + $0x88] sm:$0xff]
      %v2255 = vld [vmem:[%s5 + $0x90] sm:$0xff]
      %v2256 = vld [vmem:[%s5 + $0x98] sm:$0xff]
      %v2257 = vld [vmem:[%s5 + $0xa0] sm:$0xff]
      %v2258 = vld [vmem:[%s5 + $0xa8] sm:$0xff]
      %v2259 = vld [vmem:[%s5 + $0xb0] sm:$0xff]
      %v2260 = vld [vmem:[%s5 + $0xb8] sm:$0xff]
      %v2261 = vld [vmem:[%s5 + $0xc0] sm:$0xff]
      %v2262 = vld [vmem:[%s5 + $0xc8] sm:$0xff]
      %v2263 = vld [vmem:[%s5 + $0xd0] sm:$0xff]
      %v2264 = vld [vmem:[%s5 + $0xd8] sm:$0xff]
      %v2265 = vld [vmem:[%s5 + $0xe0] sm:$0xff]
      %v2266 = vld [vmem:[%s5 + $0xe8] sm:$0xff]
      %v2267 = vld [vmem:[%s5 + $0xf0] sm:$0xff]
      %v2268 = vld [vmem:[%s5 + $0xf8] sm:$0xff]
      %v2269 = vld [vmem:[%s5 + $0x100] sm:$0xff]
      %v2270 = vld [vmem:[%s5 + $0x108] sm:$0xff]
      %v2271 = vld [vmem:[%s5 + $0x110] sm:$0xff]
      %v2272 = vld [vmem:[%s5 + $0x118] sm:$0xff]
      %v2274 = vsel %vm462, %v1243, 0
      %v2277 = vsel %vm462, %v1244, 0
      %v2280 = vsel %vm462, %v1245, 0
      %v2283 = vsel %vm462, %v1246, 0
      %v2286 = vsel %vm462, %v1247, 0
      %v2289 = vsel %vm462, %v1248, 0
      %v2292 = vsel %vm462, %v1249, 0
      %v2295 = vsel %vm462, %v1250, 0
      %v2298 = vsel %vm462, %v1251, 0
      %v2301 = vsel %vm462, %v1252, 0
      %v2304 = vsel %vm462, %v1253, 0
      %v2307 = vsel %vm462, %v1254, 0
      %v2310 = vsel %vm462, %v1255, 0
      %v2313 = vsel %vm462, %v1256, 0
      %v2316 = vsel %vm462, %v1257, 0
      %v2319 = vsel %vm462, %v1258, 0
      %v2322 = vsel %vm462, %v1259, 0
      %v2325 = vsel %vm462, %v1260, 0
      %v2328 = vsel %vm462, %v1261, 0
      %v2331 = vsel %vm462, %v1262, 0
      %v2334 = vsel %vm462, %v1263, 0
      %v2337 = vsel %vm462, %v1264, 0
      %v2340 = vsel %vm462, %v1265, 0
      %v2343 = vsel %vm462, %v1266, 0
      %v2346 = vsel %vm462, %v1267, 0
      %v2349 = vsel %vm462, %v1268, 0
      %v2352 = vsel %vm462, %v1269, 0
      %v2355 = vsel %vm462, %v1270, 0
      %v2358 = vsel %vm462, %v1271, 0
      %v2361 = vsel %vm462, %v1272, 0
      %v2364 = vsel %vm462, %v1273, 0
      %v2367 = vsel %vm462, %v1274, 0
      %2369 = vmatpush.msra.mxu0 %v2252
      %2370 = vmatpush.msra.mxu0 %v2251
      %2371 = vmatpush.msra.mxu0 %v2250
      %2372 = vmatpush.msra.mxu0 %v2249
      %2373 = vmatpush.msra.mxu0 %v2248
      %2374 = vmatpush.msra.mxu0 %v2247
      %2375 = vmatpush.msra.mxu0 %v2246
      %2376 = vmatpush.msra.mxu0 %v2245
      %2377 = vmatpush.msra.mxu0 %v2244
      %2378 = vmatpush.msra.mxu0 %v2243
      %2379 = vmatpush.msra.mxu0 %v2242
      %2380 = vmatpush.msra.mxu0 %v2241
      %2381 = vmatpush.msra.mxu0 %v2240
      %2382 = vmatpush.msra.mxu0 %v2239
      %2383 = vmatpush.msra.mxu0 %v2238
      %2384 = vmatpush.msra.mxu0 %v2237
      %2385 = vmatmul.f32.gmra.mxu0 %v2109
      %v2386 = vpop.f32.mrf.mxu0
      %v2387 = vadd.f32 0.0, %v2386
      %2388 = vmatmul.f32.gmra.mxu0 %v2110
      %v2389 = vpop.f32.mrf.mxu0
      %v2390 = vadd.f32 0.0, %v2389
      %2391 = vmatmul.f32.gmra.mxu0 %v2111
      %v2392 = vpop.f32.mrf.mxu0
      %v2393 = vadd.f32 0.0, %v2392
      %2394 = vmatmul.f32.gmra.mxu0 %v2112
      %v2395 = vpop.f32.mrf.mxu0
      %v2396 = vadd.f32 0.0, %v2395
      %2397 = vmatmul.f32.gmra.mxu0 %v2113
      %v2398 = vpop.f32.mrf.mxu0
      %v2399 = vadd.f32 0.0, %v2398
      %2400 = vmatmul.f32.gmra.mxu0 %v2114
      %v2401 = vpop.f32.mrf.mxu0
      %v2402 = vadd.f32 0.0, %v2401
      %2403 = vmatmul.f32.gmra.mxu0 %v2115
      %v2404 = vpop.f32.mrf.mxu0
      %v2405 = vadd.f32 0.0, %v2404
      %2406 = vmatmul.f32.gmra.mxu0 %v2116
      %v2407 = vpop.f32.mrf.mxu0
      %v2408 = vadd.f32 0.0, %v2407
      %2409 = vmatmul.f32.gmra.mxu0 %v2117
      %v2410 = vpop.f32.mrf.mxu0
      %v2411 = vadd.f32 0.0, %v2410
      %2412 = vmatmul.f32.gmra.mxu0 %v2118
      %v2413 = vpop.f32.mrf.mxu0
      %v2414 = vadd.f32 0.0, %v2413
      %2415 = vmatmul.f32.gmra.mxu0 %v2119
      %v2416 = vpop.f32.mrf.mxu0
      %v2417 = vadd.f32 0.0, %v2416
      %2418 = vmatmul.f32.gmra.mxu0 %v2120
      %v2419 = vpop.f32.mrf.mxu0
      %v2420 = vadd.f32 0.0, %v2419
      %2421 = vmatmul.f32.gmra.mxu0 %v2121
      %v2422 = vpop.f32.mrf.mxu0
      %v2423 = vadd.f32 0.0, %v2422
      %2424 = vmatmul.f32.gmra.mxu0 %v2122
      %v2425 = vpop.f32.mrf.mxu0
      %v2426 = vadd.f32 0.0, %v2425
      %2427 = vmatmul.f32.gmra.mxu0 %v2123
      %v2428 = vpop.f32.mrf.mxu0
      %v2429 = vadd.f32 0.0, %v2428
      %2430 = vmatmul.f32.gmra.mxu0 %v2124
      %v2431 = vpop.f32.mrf.mxu0
      %v2432 = vadd.f32 0.0, %v2431
      %2433 = vmatmul.f32.gmra.mxu0 %v2125
      %v2434 = vpop.f32.mrf.mxu0
      %v2435 = vadd.f32 0.0, %v2434
      %2436 = vmatmul.f32.gmra.mxu0 %v2126
      %v2437 = vpop.f32.mrf.mxu0
      %v2438 = vadd.f32 0.0, %v2437
      %2439 = vmatmul.f32.gmra.mxu0 %v2127
      %v2440 = vpop.f32.mrf.mxu0
      %v2441 = vadd.f32 0.0, %v2440
      %2442 = vmatmul.f32.gmra.mxu0 %v2128
      %v2443 = vpop.f32.mrf.mxu0
      %v2444 = vadd.f32 0.0, %v2443
      %2445 = vmatmul.f32.gmra.mxu0 %v2129
      %v2446 = vpop.f32.mrf.mxu0
      %v2447 = vadd.f32 0.0, %v2446
      %2448 = vmatmul.f32.gmra.mxu0 %v2130
      %v2449 = vpop.f32.mrf.mxu0
      %v2450 = vadd.f32 0.0, %v2449
      %2451 = vmatmul.f32.gmra.mxu0 %v2131
      %v2452 = vpop.f32.mrf.mxu0
      %v2453 = vadd.f32 0.0, %v2452
      %2454 = vmatmul.f32.gmra.mxu0 %v2132
      %v2455 = vpop.f32.mrf.mxu0
      %v2456 = vadd.f32 0.0, %v2455
      %2457 = vmatmul.f32.gmra.mxu0 %v2133
      %v2458 = vpop.f32.mrf.mxu0
      %v2459 = vadd.f32 0.0, %v2458
      %2460 = vmatmul.f32.gmra.mxu0 %v2134
      %v2461 = vpop.f32.mrf.mxu0
      %v2462 = vadd.f32 0.0, %v2461
      %2463 = vmatmul.f32.gmra.mxu0 %v2135
      %v2464 = vpop.f32.mrf.mxu0
      %v2465 = vadd.f32 0.0, %v2464
      %2466 = vmatmul.f32.gmra.mxu0 %v2136
      %v2467 = vpop.f32.mrf.mxu0
      %v2468 = vadd.f32 0.0, %v2467
      %2469 = vmatmul.f32.gmra.mxu0 %v2137
      %v2470 = vpop.f32.mrf.mxu0
      %v2471 = vadd.f32 0.0, %v2470
      %2472 = vmatmul.f32.gmra.mxu0 %v2138
      %v2473 = vpop.f32.mrf.mxu0
      %v2474 = vadd.f32 0.0, %v2473
      %2475 = vmatmul.f32.gmra.mxu0 %v2139
      %v2476 = vpop.f32.mrf.mxu0
      %v2477 = vadd.f32 0.0, %v2476
      %2478 = vmatmul.f32.gmra.mxu0 %v2140
      %v2479 = vpop.f32.mrf.mxu0
      %v2480 = vadd.f32 0.0, %v2479
      %2481 = vdwg.mxu0
      %2482 = vmatpush.msra.mxu0 %v2268
      %2483 = vmatpush.msra.mxu0 %v2267
      %2484 = vmatpush.msra.mxu0 %v2266
      %2485 = vmatpush.msra.mxu0 %v2265
      %2486 = vmatpush.msra.mxu0 %v2264
      %2487 = vmatpush.msra.mxu0 %v2263
      %2488 = vmatpush.msra.mxu0 %v2262
      %2489 = vmatpush.msra.mxu0 %v2261
      %2490 = vmatpush.msra.mxu0 %v2260
      %2491 = vmatpush.msra.mxu0 %v2259
      %2492 = vmatpush.msra.mxu0 %v2258
      %2493 = vmatpush.msra.mxu0 %v2257
      %2494 = vmatpush.msra.mxu0 %v2256
      %2495 = vmatpush.msra.mxu0 %v2255
      %2496 = vmatpush.msra.mxu0 %v2254
      %2497 = vmatpush.msra.mxu0 %v2253
      %2498 = vmatmul.f32.gmra.mxu0 %v2205
      %v2499 = vpop.f32.mrf.mxu0
      %v2500 = vadd.f32 %v2387, %v2499
      %2501 = vmatmul.f32.gmra.mxu0 %v2206
      %v2502 = vpop.f32.mrf.mxu0
      %v2503 = vadd.f32 %v2390, %v2502
      %2504 = vmatmul.f32.gmra.mxu0 %v2207
      %v2505 = vpop.f32.mrf.mxu0
      %v2506 = vadd.f32 %v2393, %v2505
      %2507 = vmatmul.f32.gmra.mxu0 %v2208
      %v2508 = vpop.f32.mrf.mxu0
      %v2509 = vadd.f32 %v2396, %v2508
      %2510 = vmatmul.f32.gmra.mxu0 %v2209
      %v2511 = vpop.f32.mrf.mxu0
      %v2512 = vadd.f32 %v2399, %v2511
      %2513 = vmatmul.f32.gmra.mxu0 %v2210
      %v2514 = vpop.f32.mrf.mxu0
      %v2515 = vadd.f32 %v2402, %v2514
      %2516 = vmatmul.f32.gmra.mxu0 %v2211
      %v2517 = vpop.f32.mrf.mxu0
      %v2518 = vadd.f32 %v2405, %v2517
      %2519 = vmatmul.f32.gmra.mxu0 %v2212
      %v2520 = vpop.f32.mrf.mxu0
      %v2521 = vadd.f32 %v2408, %v2520
      %2522 = vmatmul.f32.gmra.mxu0 %v2213
      %v2523 = vpop.f32.mrf.mxu0
      %v2524 = vadd.f32 %v2411, %v2523
      %2525 = vmatmul.f32.gmra.mxu0 %v2214
      %v2526 = vpop.f32.mrf.mxu0
      %v2527 = vadd.f32 %v2414, %v2526
      %2528 = vmatmul.f32.gmra.mxu0 %v2215
      %v2529 = vpop.f32.mrf.mxu0
      %v2530 = vadd.f32 %v2417, %v2529
      %2531 = vmatmul.f32.gmra.mxu0 %v2216
      %v2532 = vpop.f32.mrf.mxu0
      %v2533 = vadd.f32 %v2420, %v2532
      %2534 = vmatmul.f32.gmra.mxu0 %v2217
      %v2535 = vpop.f32.mrf.mxu0
      %v2536 = vadd.f32 %v2423, %v2535
      %2537 = vmatmul.f32.gmra.mxu0 %v2218
      %v2538 = vpop.f32.mrf.mxu0
      %v2539 = vadd.f32 %v2426, %v2538
      %2540 = vmatmul.f32.gmra.mxu0 %v2219
      %v2541 = vpop.f32.mrf.mxu0
      %v2542 = vadd.f32 %v2429, %v2541
      %2543 = vmatmul.f32.gmra.mxu0 %v2220
      %v2544 = vpop.f32.mrf.mxu0
      %v2545 = vadd.f32 %v2432, %v2544
      %2546 = vmatmul.f32.gmra.mxu0 %v2221
      %v2547 = vpop.f32.mrf.mxu0
      %v2548 = vadd.f32 %v2435, %v2547
      %2549 = vmatmul.f32.gmra.mxu0 %v2222
      %v2550 = vpop.f32.mrf.mxu0
      %v2551 = vadd.f32 %v2438, %v2550
      %2552 = vmatmul.f32.gmra.mxu0 %v2223
      %v2553 = vpop.f32.mrf.mxu0
      %v2554 = vadd.f32 %v2441, %v2553
      %2555 = vmatmul.f32.gmra.mxu0 %v2224
      %v2556 = vpop.f32.mrf.mxu0
      %v2557 = vadd.f32 %v2444, %v2556
      %2558 = vmatmul.f32.gmra.mxu0 %v2225
      %v2559 = vpop.f32.mrf.mxu0
      %v2560 = vadd.f32 %v2447, %v2559
      %2561 = vmatmul.f32.gmra.mxu0 %v2226
      %v2562 = vpop.f32.mrf.mxu0
      %v2563 = vadd.f32 %v2450, %v2562
      %2564 = vmatmul.f32.gmra.mxu0 %v2227
      %v2565 = vpop.f32.mrf.mxu0
      %v2566 = vadd.f32 %v2453, %v2565
      %2567 = vmatmul.f32.gmra.mxu0 %v2228
      %v2568 = vpop.f32.mrf.mxu0
      %v2569 = vadd.f32 %v2456, %v2568
      %2570 = vmatmul.f32.gmra.mxu0 %v2229
      %v2571 = vpop.f32.mrf.mxu0
      %v2572 = vadd.f32 %v2459, %v2571
      %2573 = vmatmul.f32.gmra.mxu0 %v2230
      %v2574 = vpop.f32.mrf.mxu0
      %v2575 = vadd.f32 %v2462, %v2574
      %2576 = vmatmul.f32.gmra.mxu0 %v2231
      %v2577 = vpop.f32.mrf.mxu0
      %v2578 = vadd.f32 %v2465, %v2577
      %2579 = vmatmul.f32.gmra.mxu0 %v2232
      %v2580 = vpop.f32.mrf.mxu0
      %v2581 = vadd.f32 %v2468, %v2580
      %2582 = vmatmul.f32.gmra.mxu0 %v2233
      %v2583 = vpop.f32.mrf.mxu0
      %v2584 = vadd.f32 %v2471, %v2583
      %2585 = vmatmul.f32.gmra.mxu0 %v2234
      %v2586 = vpop.f32.mrf.mxu0
      %v2587 = vadd.f32 %v2474, %v2586
      %2588 = vmatmul.f32.gmra.mxu0 %v2235
      %v2589 = vpop.f32.mrf.mxu0
      %v2590 = vadd.f32 %v2477, %v2589
      %2591 = vmatmul.f32.gmra.mxu0 %v2236
      %v2592 = vpop.f32.mrf.mxu0
      %v2593 = vadd.f32 %v2480, %v2592
      %2594 = vdwg.mxu0
      %2595 = vmatpush.msra.mxu0 0.0
      %2596 = vmatpush.msra.mxu0 0.0
      %2597 = vmatpush.msra.mxu0 0.0
      %2598 = vmatpush.msra.mxu0 0.0
      %2599 = vmatpush.msra.mxu0 0.0
      %2600 = vmatpush.msra.mxu0 0.0
      %2601 = vmatpush.msra.mxu0 0.0
      %2602 = vmatpush.msra.mxu0 0.0
      %2603 = vmatpush.msra.mxu0 0.0
      %2604 = vmatpush.msra.mxu0 0.0
      %2605 = vmatpush.msra.mxu0 0.0
      %2606 = vmatpush.msra.mxu0 0.0
      %2607 = vmatpush.msra.mxu0 %v2272
      %2608 = vmatpush.msra.mxu0 %v2271
      %2609 = vmatpush.msra.mxu0 %v2270
      %2610 = vmatpush.msra.mxu0 %v2269
      %2611 = vmatmul.f32.gmra.mxu0 %v2274
      %v2612 = vpop.f32.mrf.mxu0
      %v2613 = vadd.f32 %v2500, %v2612
      %2614 = vmatmul.f32.gmra.mxu0 %v2277
      %v2615 = vpop.f32.mrf.mxu0
      %v2616 = vadd.f32 %v2503, %v2615
      %2617 = vmatmul.f32.gmra.mxu0 %v2280
      %v2618 = vpop.f32.mrf.mxu0
      %v2619 = vadd.f32 %v2506, %v2618
      %2620 = vmatmul.f32.gmra.mxu0 %v2283
      %v2621 = vpop.f32.mrf.mxu0
      %v2622 = vadd.f32 %v2509, %v2621
      %2623 = vmatmul.f32.gmra.mxu0 %v2286
      %v2624 = vpop.f32.mrf.mxu0
      %v2625 = vadd.f32 %v2512, %v2624
      %2626 = vmatmul.f32.gmra.mxu0 %v2289
      %v2627 = vpop.f32.mrf.mxu0
      %v2628 = vadd.f32 %v2515, %v2627
      %2629 = vmatmul.f32.gmra.mxu0 %v2292
      %v2630 = vpop.f32.mrf.mxu0
      %v2631 = vadd.f32 %v2518, %v2630
      %2632 = vmatmul.f32.gmra.mxu0 %v2295
      %v2633 = vpop.f32.mrf.mxu0
      %v2634 = vadd.f32 %v2521, %v2633
      %2635 = vmatmul.f32.gmra.mxu0 %v2298
      %v2636 = vpop.f32.mrf.mxu0
      %v2637 = vadd.f32 %v2524, %v2636
      %2638 = vmatmul.f32.gmra.mxu0 %v2301
      %v2639 = vpop.f32.mrf.mxu0
      %v2640 = vadd.f32 %v2527, %v2639
      %2641 = vmatmul.f32.gmra.mxu0 %v2304
      %v2642 = vpop.f32.mrf.mxu0
      %v2643 = vadd.f32 %v2530, %v2642
      %2644 = vmatmul.f32.gmra.mxu0 %v2307
      %v2645 = vpop.f32.mrf.mxu0
      %v2646 = vadd.f32 %v2533, %v2645
      %2647 = vmatmul.f32.gmra.mxu0 %v2310
      %v2648 = vpop.f32.mrf.mxu0
      %v2649 = vadd.f32 %v2536, %v2648
      %2650 = vmatmul.f32.gmra.mxu0 %v2313
      %v2651 = vpop.f32.mrf.mxu0
      %v2652 = vadd.f32 %v2539, %v2651
      %2653 = vmatmul.f32.gmra.mxu0 %v2316
      %v2654 = vpop.f32.mrf.mxu0
      %v2655 = vadd.f32 %v2542, %v2654
      %2656 = vmatmul.f32.gmra.mxu0 %v2319
      %v2657 = vpop.f32.mrf.mxu0
      %v2658 = vadd.f32 %v2545, %v2657
      %2659 = vmatmul.f32.gmra.mxu0 %v2322
      %v2660 = vpop.f32.mrf.mxu0
      %v2661 = vadd.f32 %v2548, %v2660
      %2662 = vmatmul.f32.gmra.mxu0 %v2325
      %v2663 = vpop.f32.mrf.mxu0
      %v2664 = vadd.f32 %v2551, %v2663
      %2665 = vmatmul.f32.gmra.mxu0 %v2328
      %v2666 = vpop.f32.mrf.mxu0
      %v2667 = vadd.f32 %v2554, %v2666
      %2668 = vmatmul.f32.gmra.mxu0 %v2331
      %v2669 = vpop.f32.mrf.mxu0
      %v2670 = vadd.f32 %v2557, %v2669
      %2671 = vmatmul.f32.gmra.mxu0 %v2334
      %v2672 = vpop.f32.mrf.mxu0
      %v2673 = vadd.f32 %v2560, %v2672
      %2674 = vmatmul.f32.gmra.mxu0 %v2337
      %v2675 = vpop.f32.mrf.mxu0
      %v2676 = vadd.f32 %v2563, %v2675
      %2677 = vmatmul.f32.gmra.mxu0 %v2340
      %v2678 = vpop.f32.mrf.mxu0
      %v2679 = vadd.f32 %v2566, %v2678
      %2680 = vmatmul.f32.gmra.mxu0 %v2343
      %v2681 = vpop.f32.mrf.mxu0
      %v2682 = vadd.f32 %v2569, %v2681
      %2683 = vmatmul.f32.gmra.mxu0 %v2346
      %v2684 = vpop.f32.mrf.mxu0
      %v2685 = vadd.f32 %v2572, %v2684
      %2686 = vmatmul.f32.gmra.mxu0 %v2349
      %v2687 = vpop.f32.mrf.mxu0
      %v2688 = vadd.f32 %v2575, %v2687
      %2689 = vmatmul.f32.gmra.mxu0 %v2352
      %v2690 = vpop.f32.mrf.mxu0
      %v2691 = vadd.f32 %v2578, %v2690
      %2692 = vmatmul.f32.gmra.mxu0 %v2355
      %v2693 = vpop.f32.mrf.mxu0
      %v2694 = vadd.f32 %v2581, %v2693
      %2695 = vmatmul.f32.gmra.mxu0 %v2358
      %v2696 = vpop.f32.mrf.mxu0
      %v2697 = vadd.f32 %v2584, %v2696
      %2698 = vmatmul.f32.gmra.mxu0 %v2361
      %v2699 = vpop.f32.mrf.mxu0
      %v2700 = vadd.f32 %v2587, %v2699
      %2701 = vmatmul.f32.gmra.mxu0 %v2364
      %v2702 = vpop.f32.mrf.mxu0
      %v2703 = vadd.f32 %v2590, %v2702
      %2704 = vmatmul.f32.gmra.mxu0 %v2367
      %v2705 = vpop.f32.mrf.mxu0
      %v2706 = vadd.f32 %v2593, %v2705
      %2707 = vdwg.mxu0
      %2708 = vst.msk [vmem:[%s318] sm:$0xff] %vm462, %v2613
      %2709 = vst.msk [vmem:[%s318 + $0x8] sm:$0xff] %vm462, %v2616
      %2710 = vst.msk [vmem:[%s318 + $0x10] sm:$0xff] %vm462, %v2619
      %2711 = vst.msk [vmem:[%s318 + $0x18] sm:$0xff] %vm462, %v2622
      %2712 = vst.msk [vmem:[%s318 + $0x20] sm:$0xff] %vm462, %v2625
      %2713 = vst.msk [vmem:[%s318 + $0x28] sm:$0xff] %vm462, %v2628
      %2714 = vst.msk [vmem:[%s318 + $0x30] sm:$0xff] %vm462, %v2631
      %2715 = vst.msk [vmem:[%s318 + $0x38] sm:$0xff] %vm462, %v2634
      %2716 = vst.msk [vmem:[%s318 + $0x40] sm:$0xff] %vm462, %v2637
      %2717 = vst.msk [vmem:[%s318 + $0x48] sm:$0xff] %vm462, %v2640
      %2718 = vst.msk [vmem:[%s318 + $0x50] sm:$0xff] %vm462, %v2643
      %2719 = vst.msk [vmem:[%s318 + $0x58] sm:$0xff] %vm462, %v2646
      %2720 = vst.msk [vmem:[%s318 + $0x60] sm:$0xff] %vm462, %v2649
      %2721 = vst.msk [vmem:[%s318 + $0x68] sm:$0xff] %vm462, %v2652
      %2722 = vst.msk [vmem:[%s318 + $0x70] sm:$0xff] %vm462, %v2655
      %2723 = vst.msk [vmem:[%s318 + $0x78] sm:$0xff] %vm462, %v2658
      %2724 = vst.msk [vmem:[%s318 + $0x80] sm:$0xff] %vm462, %v2661
      %2725 = vst.msk [vmem:[%s318 + $0x88] sm:$0xff] %vm462, %v2664
      %2726 = vst.msk [vmem:[%s318 + $0x90] sm:$0xff] %vm462, %v2667
      %2727 = vst.msk [vmem:[%s318 + $0x98] sm:$0xff] %vm462, %v2670
      %2728 = vst.msk [vmem:[%s318 + $0xa0] sm:$0xff] %vm462, %v2673
      %2729 = vst.msk [vmem:[%s318 + $0xa8] sm:$0xff] %vm462, %v2676
      %2730 = vst.msk [vmem:[%s318 + $0xb0] sm:$0xff] %vm462, %v2679
      %2731 = vst.msk [vmem:[%s318 + $0xb8] sm:$0xff] %vm462, %v2682
      %2732 = vst.msk [vmem:[%s318 + $0xc0] sm:$0xff] %vm462, %v2685
      %2733 = vst.msk [vmem:[%s318 + $0xc8] sm:$0xff] %vm462, %v2688
      %2734 = vst.msk [vmem:[%s318 + $0xd0] sm:$0xff] %vm462, %v2691
      %2735 = vst.msk [vmem:[%s318 + $0xd8] sm:$0xff] %vm462, %v2694
      %2736 = vst.msk [vmem:[%s318 + $0xe0] sm:$0xff] %vm462, %v2697
      %2737 = vst.msk [vmem:[%s318 + $0xe8] sm:$0xff] %vm462, %v2700
      %2738 = vst.msk [vmem:[%s318 + $0xf0] sm:$0xff] %vm462, %v2703
      %2739 = vst.msk [vmem:[%s318 + $0xf8] sm:$0xff] %vm462, %v2706
      %v2740 = vsel %vm462, %v2613, 0.0
      %v2741 = vsel %vm462, %v2616, 0.0
      %v2742 = vadd.f32 %v2740, %v2741
      %v2743 = vsel %vm462, %v2619, 0.0
      %v2744 = vadd.f32 %v2742, %v2743
      %v2745 = vsel %vm462, %v2622, 0.0
      %v2746 = vadd.f32 %v2744, %v2745
      %v2747 = vsel %vm462, %v2625, 0.0
      %v2748 = vadd.f32 %v2746, %v2747
      %v2749 = vsel %vm462, %v2628, 0.0
      %v2750 = vadd.f32 %v2748, %v2749
      %v2751 = vsel %vm462, %v2631, 0.0
      %v2752 = vadd.f32 %v2750, %v2751
      %v2753 = vsel %vm462, %v2634, 0.0
      %v2754 = vadd.f32 %v2752, %v2753
      %v2755 = vsel %vm462, %v2637, 0.0
      %v2756 = vadd.f32 %v2754, %v2755
      %v2757 = vsel %vm462, %v2640, 0.0
      %v2758 = vadd.f32 %v2756, %v2757
      %v2759 = vsel %vm462, %v2643, 0.0
      %v2760 = vadd.f32 %v2758, %v2759
      %v2761 = vsel %vm462, %v2646, 0.0
      %v2762 = vadd.f32 %v2760, %v2761
      %v2763 = vsel %vm462, %v2649, 0.0
      %v2764 = vadd.f32 %v2762, %v2763
      %v2765 = vsel %vm462, %v2652, 0.0
      %v2766 = vadd.f32 %v2764, %v2765
      %v2767 = vsel %vm462, %v2655, 0.0
      %v2768 = vadd.f32 %v2766, %v2767
      %v2769 = vsel %vm462, %v2658, 0.0
      %v2770 = vadd.f32 %v2768, %v2769
      %v2771 = vsel %vm462, %v2661, 0.0
      %v2772 = vadd.f32 %v2770, %v2771
      %v2773 = vsel %vm462, %v2664, 0.0
      %v2774 = vadd.f32 %v2772, %v2773
      %v2775 = vsel %vm462, %v2667, 0.0
      %v2776 = vadd.f32 %v2774, %v2775
      %v2777 = vsel %vm462, %v2670, 0.0
      %v2778 = vadd.f32 %v2776, %v2777
      %v2779 = vsel %vm462, %v2673, 0.0
      %v2780 = vadd.f32 %v2778, %v2779
      %v2781 = vsel %vm462, %v2676, 0.0
      %v2782 = vadd.f32 %v2780, %v2781
      %v2783 = vsel %vm462, %v2679, 0.0
      %v2784 = vadd.f32 %v2782, %v2783
      %v2785 = vsel %vm462, %v2682, 0.0
      %v2786 = vadd.f32 %v2784, %v2785
      %v2787 = vsel %vm462, %v2685, 0.0
      %v2788 = vadd.f32 %v2786, %v2787
      %v2789 = vsel %vm462, %v2688, 0.0
      %v2790 = vadd.f32 %v2788, %v2789
      %v2791 = vsel %vm462, %v2691, 0.0
      %v2792 = vadd.f32 %v2790, %v2791
      %v2793 = vsel %vm462, %v2694, 0.0
      %v2794 = vadd.f32 %v2792, %v2793
      %v2795 = vsel %vm462, %v2697, 0.0
      %v2796 = vadd.f32 %v2794, %v2795
      %v2797 = vsel %vm462, %v2700, 0.0
      %v2798 = vadd.f32 %v2796, %v2797
      %v2799 = vsel %vm462, %v2703, 0.0
      %v2800 = vadd.f32 %v2798, %v2799
      %v2801 = vsel %vm462, %v2706, 0.0
      %v2802 = vadd.f32 %v2800, %v2801
      %v2803 = vrot.slane %v2802, 4
      %v2804 = vadd.f32 %v2802, %v2803
      %v2805 = vrot.slane %v2804, 2
      %v2806 = vadd.f32 %v2804, %v2805
      %v2807 = vrot.slane %v2806, 1
      %v2808 = vadd.f32 %v2806, %v2807
      %vm2809 = vcmask 253952
      %2810 = vst.msk [vmem:[%s322] sm:$0x1] %vm2809, %v2808
      %v2811 = vmul.f32 %v2613, %v2613
      %v2812 = vmul.f32 %v2616, %v2616
      %v2813 = vmul.f32 %v2619, %v2619
      %v2814 = vmul.f32 %v2622, %v2622
      %v2815 = vmul.f32 %v2625, %v2625
      %v2816 = vmul.f32 %v2628, %v2628
      %v2817 = vmul.f32 %v2631, %v2631
      %v2818 = vmul.f32 %v2634, %v2634
      %v2819 = vmul.f32 %v2637, %v2637
      %v2820 = vmul.f32 %v2640, %v2640
      %v2821 = vmul.f32 %v2643, %v2643
      %v2822 = vmul.f32 %v2646, %v2646
      %v2823 = vmul.f32 %v2649, %v2649
      %v2824 = vmul.f32 %v2652, %v2652
      %v2825 = vmul.f32 %v2655, %v2655
      %v2826 = vmul.f32 %v2658, %v2658
      %v2827 = vmul.f32 %v2661, %v2661
      %v2828 = vmul.f32 %v2664, %v2664
      %v2829 = vmul.f32 %v2667, %v2667
      %v2830 = vmul.f32 %v2670, %v2670
      %v2831 = vmul.f32 %v2673, %v2673
      %v2832 = vmul.f32 %v2676, %v2676
      %v2833 = vmul.f32 %v2679, %v2679
      %v2834 = vmul.f32 %v2682, %v2682
      %v2835 = vmul.f32 %v2685, %v2685
      %v2836 = vmul.f32 %v2688, %v2688
      %v2837 = vmul.f32 %v2691, %v2691
      %v2838 = vmul.f32 %v2694, %v2694
      %v2839 = vmul.f32 %v2697, %v2697
      %v2840 = vmul.f32 %v2700, %v2700
      %v2841 = vmul.f32 %v2703, %v2703
      %v2842 = vmul.f32 %v2706, %v2706
      %v2843 = vsel %vm462, %v2811, 0.0
      %v2844 = vsel %vm462, %v2812, 0.0
      %v2845 = vadd.f32 %v2843, %v2844
      %v2846 = vsel %vm462, %v2813, 0.0
      %v2847 = vadd.f32 %v2845, %v2846
      %v2848 = vsel %vm462, %v2814, 0.0
      %v2849 = vadd.f32 %v2847, %v2848
      %v2850 = vsel %vm462, %v2815, 0.0
      %v2851 = vadd.f32 %v2849, %v2850
      %v2852 = vsel %vm462, %v2816, 0.0
      %v2853 = vadd.f32 %v2851, %v2852
      %v2854 = vsel %vm462, %v2817, 0.0
      %v2855 = vadd.f32 %v2853, %v2854
      %v2856 = vsel %vm462, %v2818, 0.0
      %v2857 = vadd.f32 %v2855, %v2856
      %v2858 = vsel %vm462, %v2819, 0.0
      %v2859 = vadd.f32 %v2857, %v2858
      %v2860 = vsel %vm462, %v2820, 0.0
      %v2861 = vadd.f32 %v2859, %v2860
      %v2862 = vsel %vm462, %v2821, 0.0
      %v2863 = vadd.f32 %v2861, %v2862
      %v2864 = vsel %vm462, %v2822, 0.0
      %v2865 = vadd.f32 %v2863, %v2864
      %v2866 = vsel %vm462, %v2823, 0.0
      %v2867 = vadd.f32 %v2865, %v2866
      %v2868 = vsel %vm462, %v2824, 0.0
      %v2869 = vadd.f32 %v2867, %v2868
      %v2870 = vsel %vm462, %v2825, 0.0
      %v2871 = vadd.f32 %v2869, %v2870
      %v2872 = vsel %vm462, %v2826, 0.0
      %v2873 = vadd.f32 %v2871, %v2872
      %v2874 = vsel %vm462, %v2827, 0.0
      %v2875 = vadd.f32 %v2873, %v2874
      %v2876 = vsel %vm462, %v2828, 0.0
      %v2877 = vadd.f32 %v2875, %v2876
      %v2878 = vsel %vm462, %v2829, 0.0
      %v2879 = vadd.f32 %v2877, %v2878
      %v2880 = vsel %vm462, %v2830, 0.0
      %v2881 = vadd.f32 %v2879, %v2880
      %v2882 = vsel %vm462, %v2831, 0.0
      %v2883 = vadd.f32 %v2881, %v2882
      %v2884 = vsel %vm462, %v2832, 0.0
      %v2885 = vadd.f32 %v2883, %v2884
      %v2886 = vsel %vm462, %v2833, 0.0
      %v2887 = vadd.f32 %v2885, %v2886
      %v2888 = vsel %vm462, %v2834, 0.0
      %v2889 = vadd.f32 %v2887, %v2888
      %v2890 = vsel %vm462, %v2835, 0.0
      %v2891 = vadd.f32 %v2889, %v2890
      %v2892 = vsel %vm462, %v2836, 0.0
      %v2893 = vadd.f32 %v2891, %v2892
      %v2894 = vsel %vm462, %v2837, 0.0
      %v2895 = vadd.f32 %v2893, %v2894
      %v2896 = vsel %vm462, %v2838, 0.0
      %v2897 = vadd.f32 %v2895, %v2896
      %v2898 = vsel %vm462, %v2839, 0.0
      %v2899 = vadd.f32 %v2897, %v2898
      %v2900 = vsel %vm462, %v2840, 0.0
      %v2901 = vadd.f32 %v2899, %v2900
      %v2902 = vsel %vm462, %v2841, 0.0
      %v2903 = vadd.f32 %v2901, %v2902
      %v2904 = vsel %vm462, %v2842, 0.0
      %v2905 = vadd.f32 %v2903, %v2904
      %v2906 = vrot.slane %v2905, 4
      %v2907 = vadd.f32 %v2905, %v2906
      %v2908 = vrot.slane %v2907, 2
      %v2909 = vadd.f32 %v2907, %v2908
      %v2910 = vrot.slane %v2909, 1
      %v2911 = vadd.f32 %v2909, %v2910
      %2912 = vst.msk [vmem:[%s325] sm:$0x1] %vm2809, %v2911
      %s2913 = smul.u32 32, %s20
      %p2914 = scmp.lt.s32.totalorder %s2913, 63
      %s2915 = scalar_select %p2914, %s2913, 63
      %s2916 = smul.addr %s2915, 8
      %s2917 = scalar_lea.vmem %s6, %s2916
      %p2918 = scmp.lt.s32.totalorder %s20, 1
      %s2919 = scalar_select %p2918, %s20, 1
      %s2920 = scalar_lea.vmem %s7, %s2919
      %p2921 = scmp.lt.s32.totalorder %s20, 1
      %s2922 = scalar_select %p2921, %s20, 1
      %s2923 = scalar_lea.vmem %s8, %s2922
      // Predicated region
      $region45: #{bottleneck_forward.5} parent=43 // pred_check
        %p2924 = pneg %p169
      $region46: #{bottleneck_forward.5} parent=43 // pred_check_branch
        %2926 = sbr.rel (%p2924) target = $region48
      $region47: #{bottleneck_forward.5} parent=43 // pred_region
        %s2927 = smul.u32 32, %s20
      $region48: #{bottleneck_forward.5} parent=43 // pred_fallthru
        _
      // Predicated region
      $region49: #{bottleneck_forward.5} parent=43 // pred_check
        %p2928 = pneg %p195
      $region50: #{bottleneck_forward.5} parent=43 // pred_check_branch
        %2930 = sbr.rel (%p2928) target = $region52
      $region51: #{bottleneck_forward.5} parent=43 // pred_region
        _
      $region52: #{bottleneck_forward.5} parent=43 // pred_fallthru
        _
      // Predicated region
      $region53: #{bottleneck_forward.5} parent=43 // pred_check
        %p2931 = pneg %p221
      $region54: #{bottleneck_forward.5} parent=43 // pred_check_branch
        %2933 = sbr.rel (%p2931) target = $region56
      $region55: #{bottleneck_forward.5} parent=43 // pred_region
        _
      $region56: #{bottleneck_forward.5} parent=43 // pred_fallthru
        _
    $region44: #{bottleneck_forward.5} parent=5 // pred_fallthru
      _
    %p2934 = scmp.le.s32.totalorder 2, %s15
    // Predicated region
    $region57: #{bottleneck_forward.5} parent=5 // pred_check
      %p2935 = pneg %p2934
    $region58: #{bottleneck_forward.5} parent=5 // pred_check_branch
      %2937 = sbr.rel (%p2935) target = $region60
    $region59: #{bottleneck_forward.5} parent=5 // pred_region
      %s2938 = ssub.s32 %s15, 2
      // Predicated region
      $region61: #{bottleneck_forward.5} parent=59 // pred_check
        %p2939 = pneg %p175
      $region62: #{bottleneck_forward.5} parent=59 // pred_check_branch
        %2941 = sbr.rel (%p2939) target = $region64
      $region63: #{bottleneck_forward.5} parent=59 // pred_region
        %s2942 = smul.u32 32, %s21
        %p2943 = scmp.lt.s32.totalorder %s2942, 63
        %s2944 = scalar_select %p2943, %s2942, 63
        %s2945 = smul.addr %s2944, 8
        %s2946 = scalar_lea.vmem %s6, %s2945
      $region64: #{bottleneck_forward.5} parent=59 // pred_fallthru
        _
      // Predicated region
      $region65: #{bottleneck_forward.5} parent=59 // pred_check
        %p2947 = pneg %p201
      $region66: #{bottleneck_forward.5} parent=59 // pred_check_branch
        %2949 = sbr.rel (%p2947) target = $region68
      $region67: #{bottleneck_forward.5} parent=59 // pred_region
        %p2950 = scmp.lt.s32.totalorder %s21, 1
        %s2951 = scalar_select %p2950, %s21, 1
        %s2952 = scalar_lea.vmem %s7, %s2951
      $region68: #{bottleneck_forward.5} parent=59 // pred_fallthru
        _
      // Predicated region
      $region69: #{bottleneck_forward.5} parent=59 // pred_check
        %p2953 = pneg %p227
      $region70: #{bottleneck_forward.5} parent=59 // pred_check_branch
        %2955 = sbr.rel (%p2953) target = $region72
      $region71: #{bottleneck_forward.5} parent=59 // pred_region
        %p2956 = scmp.lt.s32.totalorder %s21, 1
        %s2957 = scalar_select %p2956, %s21, 1
        %s2958 = scalar_lea.vmem %s8, %s2957
      $region72: #{bottleneck_forward.5} parent=59 // pred_fallthru
        _
    $region60: #{bottleneck_forward.5} parent=5 // pred_fallthru
      _
  $region6: #{bottleneck_forward.5} parent=0 // loop_footer
    %s19 = sadd.s32 1, %s15
  $region7: #{bottleneck_forward.5} parent=0 // loop_footer_branch
    %14 = sbr.rel target = $region3
  $region8: #{bottleneck_forward.5} parent=0 // loop_exit
    _

</llo_original>
